<compile_context>
chip_gen: v5e
topology: v5e:2x2
jax: 0.10.0
libtpu: 0.0.40
codegen_flags: <defaults>
</compile_context>

<pallas_src>
import functools
import math

import jax
import jax.numpy as jnp
from jax.experimental import pallas as pl
from jax.experimental.pallas import tpu as pltpu


# ----------------------------- Pallas kernels --------------------------------

def _enc1_kernel(act_bf16, x_ref, w1, b1, w2, b2, w3, b3, h1_ref):
    """Encoder level 1: x (TR,784) -> fused [mu1 | log_sigma1] (TR,256) f32."""
    f32, bf16 = jnp.float32, jnp.bfloat16

    def lin(h, w_ref, b_ref):
        return jnp.dot(h.astype(bf16), w_ref[...],
                       preferred_element_type=f32) + b_ref[...]

    def act(v):
        return jnp.tanh(v.astype(bf16)) if act_bf16 else jnp.tanh(v)

    h = act(lin(x_ref[...], w1, b1))
    h = act(lin(h, w2, b2))
    # cols 0:128 = mu1 (100 valid), 128:256 = log_sigma1 (100 valid); padded
    # lanes are exactly 0 because the padded weight cols / bias are 0.
    h1_ref[...] = lin(h, w3, b3)


def _main_kernel(act_bf16, h1_ref, eps1_ref, eps2_ref,
                 wz, bz, w5, b5, w6, b6, w7, b7, w8, b8, w9, b9,
                 w11, b11, w12, b12,
                 xo_ref, h2_ref, h3_ref):
    """Everything downstream of the replicated level-1 head."""
    f32, bf16 = jnp.float32, jnp.bfloat16

    def lin(h, w_ref, b_ref):
        return jnp.dot(h.astype(bf16), w_ref[...],
                       preferred_element_type=f32) + b_ref[...]

    def act(v):
        return jnp.tanh(v.astype(bf16)) if act_bf16 else jnp.tanh(v)

    head1 = h1_ref[...]                                   # f32 (TR, 256)
    # padded lanes: mu1_pad = 0, log_sigma1_pad = 0, eps1_pad = 0
    #   -> z1_pad = 0 + exp(0) * 0 = 0  (matches the zero-padded weight rows)
    z1 = head1[:, :128] + jnp.exp(head1[:, 128:]) * eps1_ref[...]   # (TR, 128)

    # ---- fused z1 consumer: [fc4 (lanes 0:128) | fc10 (lanes 128:384)] ----
    hz = act(lin(z1, wz, bz))                             # (TR, 384)

    # ---- encoder level 2: -> fused [mu2 | log_sigma2] (TR, 256) ----
    h = act(lin(hz[:, :128], w5, b5))
    head2 = lin(h, w6, b6)                                # f32
    h2_ref[...] = head2.astype(h2_ref.dtype)
    z2 = head2[:, :128] + jnp.exp(head2[:, 128:]) * eps2_ref[...]   # (TR, 128)

    # ---- decoder level 2: z2 -> fused [mu3 | log_sigma3] (TR, 256) ----
    h = act(lin(z2, w7, b7))
    h = act(lin(h, w8, b8))
    h3_ref[...] = lin(h, w9, b9).astype(h3_ref.dtype)

    # ---- decoder level 1: z1-path -> reconstruction (TR, 896 = 784 padded) ----
    h = act(lin(hz[:, 128:], w11, b11))
    xo_ref[...] = lin(h, w12, b12).astype(xo_ref.dtype)


# ------------------------- parameter packing ---------------------------------

_LAYER_DIMS = [
    (28 * 28, 200),  # fc1
    (200, 200),      # fc2
    (200, 100),      # fc3_mu
    (200, 100),      # fc3_sigma
    (100, 100),      # fc4
    (100, 100),      # fc5
    (100, 50),       # fc6_mu
    (100, 50),       # fc6_sigma
    (50, 100),       # fc7
    (100, 100),      # fc8
    (100, 100),      # fc9_mu
    (100, 100),      # fc9_sigma
    (100, 200),      # fc10
    (200, 200),      # fc11
    (200, 28 * 28),  # fc12
]


def init_params(key):
    """Deterministic init mimicking PyTorch nn.Linear default (uniform +-1/sqrt(fan_in))."""
    params = []
    for fan_in, fan_out in _LAYER_DIMS:
        key, kw, kb = jax.random.split(key, 3)
        bound = 1.0 / math.sqrt(fan_in)
        w = jax.random.uniform(kw, (fan_in, fan_out), jnp.float32, -bound, bound)
        b = jax.random.uniform(kb, (1, fan_out), jnp.float32, -bound, bound)
        params += [w, b]
    return tuple(params)


def pack_params(params):
    """Fuse heads, fuse the fc4|fc10 z1-consumers, zero-pad to lane-aligned
    widths, cast weights to bf16.  Returns (enc1_params, main_params)."""
    w = list(params[0::2])
    b = [p.reshape(1, -1) for p in params[1::2]]

    def pad_cols(a, n):
        return jnp.pad(a, ((0, 0), (0, n - a.shape[1])))

    def pad_rows(a, n):
        return jnp.pad(a, ((0, n - a.shape[0]), (0, 0)))

    def fuse_head(wm, bm, ws, bs):
        # [mu | log_sigma], each zero-padded to 128 output lanes -> 256 wide.
        wf = jnp.concatenate([pad_cols(wm, 128), pad_cols(ws, 128)], axis=1)
        bf = jnp.concatenate([pad_cols(bm, 128), pad_cols(bs, 128)], axis=1)
        return wf, bf

    # ---- encoder level 1 (run once per sample) ----
    W1, B1 = w[0], b[0]                               # (784, 200)
    W2, B2 = w[1], b[1]                               # (200, 200)
    W3, B3 = fuse_head(w[2], b[2], w[3], b[3])        # (200, 256)

    # ---- fused z1 consumer: [fc4 -> 128 lanes | fc10 -> 256 lanes] ----
    w4p = pad_cols(pad_rows(w[4], 128), 128)          # (128, 128)
    b4p = pad_cols(b[4], 128)
    w10p = pad_cols(pad_rows(w[12], 128), 256)        # (128, 256)
    b10p = pad_cols(b[12], 256)
    WZ = jnp.concatenate([w4p, w10p], axis=1)         # (128, 384)
    BZ = jnp.concatenate([b4p, b10p], axis=1)         # (1, 384)

    W5, B5 = pad_rows(w[5], 128), b[5]                # (128, 100)  rows 100: are 0
    W6, B6 = fuse_head(w[6], b[6], w[7], b[7])        # (100, 256)
    W7, B7 = pad_rows(w[8], 128), b[8]                # (128, 100)  rows 50:  are 0
    W8, B8 = w[9], b[9]                               # (100, 100)
    W9, B9 = fuse_head(w[10], b[10], w[11], b[11])    # (100, 256)
    W11, B11 = pad_rows(w[13], 256), b[13]            # (256, 200)  rows 200: are 0
    W12, B12 = pad_cols(w[14], 896), pad_cols(b[14], 896)  # (200, 896)

    def cast(pairs):
        out = []
        for wi, bi in pairs:
            out += [wi.astype(jnp.bfloat16), bi.astype(jnp.float32)]
        return tuple(out)

    enc = cast([(W1, B1), (W2, B2), (W3, B3)])
    main = cast([(WZ, BZ), (W5, B5), (W6, B6), (W7, B7),
                 (W8, B8), (W9, B9), (W11, B11), (W12, B12)])
    return enc, main


# ------------------------------- wrapper -------------------------------------

def _round_up(n, m):
    return ((n + m - 1) // m) * m


def _row_tile(n_rows):
    """Tile size: multiple of 16 (bf16 sublane pack), cap 512, >=2 grid steps
    whenever there is more than one 16-row tile (keeps both v7x TCs busy)."""
    n16 = _round_up(n_rows, 16)
    if n16 <= 16:
        return 16, n16
    tr = min(512, _round_up((n16 + 1) // 2, 16))
    return tr, _round_up(n16, tr)


def _bf16_act_supported():
    """bf16 VPU/EUP exists on v6e/v7x and newer; keep f32 activations on v2-v5."""
    try:
        kind = jax.devices()[0].device_kind.lower()
    except Exception:
        return False
    return not any(t in kind for t in ("v2", "v3", "v4", "v5"))


@functools.partial(jax.jit, static_argnames=("k", "act_bf16"))
def vae2_forward(x, enc_packed, main_packed, eps1, eps2, *, k, act_bf16=True):
    """x: (B,1,28,28) f32; eps1: (B,k,100); eps2: (B,k,50)."""
    f32 = jnp.float32
    B = x.shape[0]
    Bk = B * k

    # ---------------- stage 1: encoder level 1, once per sample --------------
    TR1, B_pad = _row_tile(B)
    x_p = jnp.pad(x.reshape(B, 784).astype(jnp.bfloat16), ((0, B_pad - B), (0, 0)))

    enc_specs = [pl.BlockSpec((TR1, 784), lambda i: (i, 0))]
    # constant index_map -> weights fetched once, VMEM-resident across tiles
    enc_specs += [pl.BlockSpec(p.shape, lambda i: (0, 0)) for p in enc_packed]

    head1 = pl.pallas_call(
        functools.partial(_enc1_kernel, act_bf16),
        out_shape=jax.ShapeDtypeStruct((B_pad, 256), f32),
        grid=(B_pad // TR1,),
        in_specs=enc_specs,
        out_specs=pl.BlockSpec((TR1, 256), lambda i: (i, 0)),
        compiler_params=pltpu.CompilerParams(dimension_semantics=("parallel",)),
    )(x_p, *enc_packed)

    # --------------- stage 2: replicate head1 to B*k rows, rest of VAE -------
    TR, Bk_pad = _row_tile(Bk)

    head1_rep = jnp.repeat(head1[:B], k, axis=0)          # (Bk, 256), f32
    head1_rep = jnp.pad(head1_rep, ((0, Bk_pad - Bk), (0, 0)))
    # eps padding MUST be exactly zero: padded log_sigma lanes are 0, so the
    # padded z lanes are 0 + exp(0)*0 = 0, matching zero-padded weight rows.
    eps1_p = jnp.pad(eps1.reshape(Bk, 100).astype(f32),
                     ((0, Bk_pad - Bk), (0, 128 - 100)))
    eps2_p = jnp.pad(eps2.reshape(Bk, 50).astype(f32),
                     ((0, Bk_pad - Bk), (0, 128 - 50)))

    def row_spec(cols):
        return pl.BlockSpec((TR, cols), lambda i: (i, 0))

    main_specs = [row_spec(256), row_spec(128), row_spec(128)]
    main_specs += [pl.BlockSpec(p.shape, lambda i: (0, 0)) for p in main_packed]

    # Outputs stored lane-dense in bf16 (writeback-bound at batch on v5e/v6e);
    # upcast + slice back to valid columns in the wrapper.
    out_shapes = (
        jax.ShapeDtypeStruct((Bk_pad, 896), jnp.bfloat16),   # reconstruction (784 padded)
        jax.ShapeDtypeStruct((Bk_pad, 256), jnp.bfloat16),   # [mu2 | log_sigma2]
        jax.ShapeDtypeStruct((Bk_pad, 256), jnp.bfloat16),   # [mu3 | log_sigma3]
    )
    out_specs = (row_spec(896), row_spec(256), row_spec(256))

    xo, h2h, h3h = pl.pallas_call(
        functools.partial(_main_kernel, act_bf16),
        out_shape=out_shapes,
        grid=(Bk_pad // TR,),
        in_specs=main_specs,
        out_specs=out_specs,
        compiler_params=pltpu.CompilerParams(dimension_semantics=("parallel",)),
    )(head1_rep, eps1_p, eps2_p, *main_packed)

    # Slice away padding, restore PyTorch output shapes / dtypes.
    x_out = xo[:Bk, :784].astype(f32).reshape(B, k, 784)
    mu1 = head1[:B, 0:100].reshape(B, 1, 100)
    ls1 = head1[:B, 128:228].reshape(B, 1, 100)
    mu2 = h2h[:Bk, 0:50].astype(f32).reshape(B, k, 50)
    ls2 = h2h[:Bk, 128:178].astype(f32).reshape(B, k, 50)
    mu3 = h3h[:Bk, 0:100].astype(f32).reshape(B, k, 100)
    ls3 = h3h[:Bk, 128:228].astype(f32).reshape(B, k, 100)
    return x_out, mu1, mu2, mu3, ls1, ls2, ls3, eps1, eps2


# ------------------------------ reference ------------------------------------

def ref_forward(x, params, eps1, eps2, *, k):
    """Pure-JAX reference following the PyTorch forward exactly (f32)."""
    w = params[0::2]
    b = params[1::2]
    x = x.reshape(-1, 1, 28 * 28).astype(jnp.float32)
    h = jnp.tanh(x @ w[0] + b[0])
    h = jnp.tanh(h @ w[1] + b[1])
    mu1 = h @ w[2] + b[2]
    ls1 = h @ w[3] + b[3]
    h1 = mu1 + jnp.exp(ls1) * eps1            # (B,1,100) broadcast with (B,k,100)
    h = jnp.tanh(h1 @ w[4] + b[4])
    h = jnp.tanh(h @ w[5] + b[5])
    mu2 = h @ w[6] + b[6]
    ls2 = h @ w[7] + b[7]
    h2 = mu2 + jnp.exp(ls2) * eps2
    h = jnp.tanh(h2 @ w[8] + b[8])
    h = jnp.tanh(h @ w[9] + b[9])
    mu3 = h @ w[10] + b[10]
    ls3 = h @ w[11] + b[11]
    h = jnp.tanh(h1 @ w[12] + b[12])
    h = jnp.tanh(h @ w[13] + b[13])
    xo = h @ w[14] + b[14]
    return xo, mu1, mu2, mu3, ls1, ls2, ls3, eps1, eps2


# --------------------------------- main ---------------------------------------

if __name__ == "__main__":
    B, K = 2, 3
    key = jax.random.PRNGKey(0)
    k_params, k_x, k_e1, k_e2 = jax.random.split(key, 4)

    params = init_params(k_params)
    enc_packed, main_packed = pack_params(params)   # fused + padded + bf16 (done once)

    x = jax.random.normal(k_x, (B, 1, 28, 28), jnp.float32)
    eps1 = jax.random.normal(k_e1, (B, K, 100), jnp.float32)
    eps2 = jax.random.normal(k_e2, (B, K, 50), jnp.float32)

    act_bf16 = _bf16_act_supported()
    outs = vae2_forward(x, enc_packed, main_packed, eps1, eps2,
                        k=K, act_bf16=act_bf16)
    outs = jax.block_until_ready(outs)

    # Reference uses the same bf16-rounded weights as the kernel (biases stay
    # f32).  Tolerance accounts for intentional bf16 matmul inputs, bf16
    # activations (v6e/v7x) and bf16 output stores (~0.4% relative each).
    ref_params = tuple(
        p.astype(jnp.bfloat16).astype(jnp.float32) if i % 2 == 0 else p
        for i, p in enumerate(params))
    refs = ref_forward(x, ref_params, eps1, eps2, k=K)

    names = ["x", "mu1", "mu2", "mu3", "log_sigma1", "log_sigma2",
             "log_sigma3", "eps1", "eps2"]
    for name, o, r in zip(names, outs, refs):
        assert o.shape == r.shape, (name, o.shape, r.shape)
        assert jnp.allclose(o, r, atol=2e-2, rtol=2e-2), name

    print("KERNEL_OK")
</pallas_src>

<mosaic_0001>
module attributes {stable_mosaic.version = 11 : i64} {
  func.func @_enc1_kernel(%arg0: i32, %arg1: memref<16x784xbf16, #tpu.memory_space<vmem>>, %arg2: memref<784x200xbf16, #tpu.memory_space<vmem>>, %arg3: memref<1x200xf32, #tpu.memory_space<vmem>>, %arg4: memref<200x200xbf16, #tpu.memory_space<vmem>>, %arg5: memref<1x200xf32, #tpu.memory_space<vmem>>, %arg6: memref<200x256xbf16, #tpu.memory_space<vmem>>, %arg7: memref<1x256xf32, #tpu.memory_space<vmem>>, %arg8: memref<16x256xf32, #tpu.memory_space<vmem>>) attributes {dimension_semantics = [#tpu.dimension_semantics<parallel>], iteration_bounds = array<i64: 1>, scalar_prefetch = 0 : i64, scratch_operands = 0 : i64, tpu.core_type = #tpu.core_type<tc>, window_params = [{transform_indices = @transform_0, window_bounds = array<i64: 16, 784>}, {pipeline_mode = #tpu.pipeline_mode<synchronous>, transform_indices = @transform_1, window_bounds = array<i64: 784, 200>}, {pipeline_mode = #tpu.pipeline_mode<synchronous>, transform_indices = @transform_2, window_bounds = array<i64: 1, 200>}, {pipeline_mode = #tpu.pipeline_mode<synchronous>, transform_indices = @transform_3, window_bounds = array<i64: 200, 200>}, {pipeline_mode = #tpu.pipeline_mode<synchronous>, transform_indices = @transform_4, window_bounds = array<i64: 1, 200>}, {pipeline_mode = #tpu.pipeline_mode<synchronous>, transform_indices = @transform_5, window_bounds = array<i64: 200, 256>}, {pipeline_mode = #tpu.pipeline_mode<synchronous>, transform_indices = @transform_6, window_bounds = array<i64: 1, 256>}, {transform_indices = @transform_7, window_bounds = array<i64: 16, 256>}]} {
    %c0 = arith.constant 0 : index
    %c0_0 = arith.constant 0 : index
    %0 = vector.load %arg1[%c0, %c0_0] : memref<16x784xbf16, #tpu.memory_space<vmem>>, vector<16x784xbf16>
    %c0_1 = arith.constant 0 : index
    %c0_2 = arith.constant 0 : index
    %1 = vector.load %arg2[%c0_1, %c0_2] : memref<784x200xbf16, #tpu.memory_space<vmem>>, vector<784x200xbf16>
    %cst = arith.constant dense<0.000000e+00> : vector<16x200xf32>
    %2 = tpu.matmul %0, %1, %cst {dimension_numbers = #tpu.dot_dimension_numbers<[1], [0], [0], [1], [0, 0, 1, 1], [], []>} : vector<16x784xbf16>, vector<784x200xbf16>, vector<16x200xf32> -> vector<16x200xf32>
    %c0_3 = arith.constant 0 : index
    %c0_4 = arith.constant 0 : index
    %3 = vector.load %arg3[%c0_3, %c0_4] : memref<1x200xf32, #tpu.memory_space<vmem>>, vector<1x200xf32>
    %4 = vector.broadcast %3 : vector<1x200xf32> to vector<16x200xf32>
    %5 = arith.addf %2, %4 : vector<16x200xf32>
    %6 = arith.truncf %5 : vector<16x200xf32> to vector<16x200xbf16>
    %7 = math.tanh %6 : vector<16x200xbf16>
    %c0_5 = arith.constant 0 : index
    %c0_6 = arith.constant 0 : index
    %8 = vector.load %arg4[%c0_5, %c0_6] : memref<200x200xbf16, #tpu.memory_space<vmem>>, vector<200x200xbf16>
    %cst_7 = arith.constant dense<0.000000e+00> : vector<16x200xf32>
    %9 = tpu.matmul %7, %8, %cst_7 {dimension_numbers = #tpu.dot_dimension_numbers<[1], [0], [0], [1], [0, 0, 1, 1], [], []>} : vector<16x200xbf16>, vector<200x200xbf16>, vector<16x200xf32> -> vector<16x200xf32>
    %c0_8 = arith.constant 0 : index
    %c0_9 = arith.constant 0 : index
    %10 = vector.load %arg5[%c0_8, %c0_9] : memref<1x200xf32, #tpu.memory_space<vmem>>, vector<1x200xf32>
    %11 = vector.broadcast %10 : vector<1x200xf32> to vector<16x200xf32>
    %12 = arith.addf %9, %11 : vector<16x200xf32>
    %13 = arith.truncf %12 : vector<16x200xf32> to vector<16x200xbf16>
    %14 = math.tanh %13 : vector<16x200xbf16>
    %c0_10 = arith.constant 0 : index
    %c0_11 = arith.constant 0 : index
    %15 = vector.load %arg6[%c0_10, %c0_11] : memref<200x256xbf16, #tpu.memory_space<vmem>>, vector<200x256xbf16>
    %cst_12 = arith.constant dense<0.000000e+00> : vector<16x256xf32>
    %16 = tpu.matmul %14, %15, %cst_12 {dimension_numbers = #tpu.dot_dimension_numbers<[1], [0], [0], [1], [0, 0, 1, 1], [], []>} : vector<16x200xbf16>, vector<200x256xbf16>, vector<16x256xf32> -> vector<16x256xf32>
    %c0_13 = arith.constant 0 : index
    %c0_14 = arith.constant 0 : index
    %17 = vector.load %arg7[%c0_13, %c0_14] : memref<1x256xf32, #tpu.memory_space<vmem>>, vector<1x256xf32>
    %18 = vector.broadcast %17 : vector<1x256xf32> to vector<16x256xf32>
    %19 = arith.addf %16, %18 : vector<16x256xf32>
    %c0_15 = arith.constant 0 : index
    %c0_16 = arith.constant 0 : index
    %20 = vector.load %arg8[%c0_15, %c0_16] : memref<16x256xf32, #tpu.memory_space<vmem>>, vector<16x256xf32>
    tpu.vector_store %arg8[%c0_15, %c0_16], %19 {strides = array<i32>} : memref<16x256xf32, #tpu.memory_space<vmem>>, vector<16x256xf32>,
    return
  }
  func.func @transform_0(%arg0: i32) -> (i32, i32) {
    %c0_i32 = arith.constant 0 : i32
    %c0_i32_0 = arith.constant 0 : i32
    return %arg0, %c0_i32 : i32, i32
  }
  func.func @transform_1(%arg0: i32) -> (i32, i32) {
    %c0_i32 = arith.constant 0 : i32
    %c0_i32_0 = arith.constant 0 : i32
    %c0_i32_1 = arith.constant 0 : i32
    return %c0_i32, %c0_i32_0 : i32, i32
  }
  func.func @transform_2(%arg0: i32) -> (i32, i32) {
    %c0_i32 = arith.constant 0 : i32
    %c0_i32_0 = arith.constant 0 : i32
    %c0_i32_1 = arith.constant 0 : i32
    return %c0_i32, %c0_i32_0 : i32, i32
  }
  func.func @transform_3(%arg0: i32) -> (i32, i32) {
    %c0_i32 = arith.constant 0 : i32
    %c0_i32_0 = arith.constant 0 : i32
    %c0_i32_1 = arith.constant 0 : i32
    return %c0_i32, %c0_i32_0 : i32, i32
  }
  func.func @transform_4(%arg0: i32) -> (i32, i32) {
    %c0_i32 = arith.constant 0 : i32
    %c0_i32_0 = arith.constant 0 : i32
    %c0_i32_1 = arith.constant 0 : i32
    return %c0_i32, %c0_i32_0 : i32, i32
  }
  func.func @transform_5(%arg0: i32) -> (i32, i32) {
    %c0_i32 = arith.constant 0 : i32
    %c0_i32_0 = arith.constant 0 : i32
    %c0_i32_1 = arith.constant 0 : i32
    return %c0_i32, %c0_i32_0 : i32, i32
  }
  func.func @transform_6(%arg0: i32) -> (i32, i32) {
    %c0_i32 = arith.constant 0 : i32
    %c0_i32_0 = arith.constant 0 : i32
    %c0_i32_1 = arith.constant 0 : i32
    return %c0_i32, %c0_i32_0 : i32, i32
  }
  func.func @transform_7(%arg0: i32) -> (i32, i32) {
    %c0_i32 = arith.constant 0 : i32
    %c0_i32_0 = arith.constant 0 : i32
    return %arg0, %c0_i32 : i32, i32
  }
}

module attributes {stable_mosaic.version = 11 : i64} {
  func.func @_main_kernel(%arg0: i32, %arg1: memref<16x256xf32, #tpu.memory_space<vmem>>, %arg2: memref<16x128xf32, #tpu.memory_space<vmem>>, %arg3: memref<16x128xf32, #tpu.memory_space<vmem>>, %arg4: memref<128x384xbf16, #tpu.memory_space<vmem>>, %arg5: memref<1x384xf32, #tpu.memory_space<vmem>>, %arg6: memref<128x100xbf16, #tpu.memory_space<vmem>>, %arg7: memref<1x100xf32, #tpu.memory_space<vmem>>, %arg8: memref<100x256xbf16, #tpu.memory_space<vmem>>, %arg9: memref<1x256xf32, #tpu.memory_space<vmem>>, %arg10: memref<128x100xbf16, #tpu.memory_space<vmem>>, %arg11: memref<1x100xf32, #tpu.memory_space<vmem>>, %arg12: memref<100x100xbf16, #tpu.memory_space<vmem>>, %arg13: memref<1x100xf32, #tpu.memory_space<vmem>>, %arg14: memref<100x256xbf16, #tpu.memory_space<vmem>>, %arg15: memref<1x256xf32, #tpu.memory_space<vmem>>, %arg16: memref<256x200xbf16, #tpu.memory_space<vmem>>, %arg17: memref<1x200xf32, #tpu.memory_space<vmem>>, %arg18: memref<200x896xbf16, #tpu.memory_space<vmem>>, %arg19: memref<1x896xf32, #tpu.memory_space<vmem>>, %arg20: memref<16x896xbf16, #tpu.memory_space<vmem>>, %arg21: memref<16x256xbf16, #tpu.memory_space<vmem>>, %arg22: memref<16x256xbf16, #tpu.memory_space<vmem>>) attributes {dimension_semantics = [#tpu.dimension_semantics<parallel>], iteration_bounds = array<i64: 1>, scalar_prefetch = 0 : i64, scratch_operands = 0 : i64, tpu.core_type = #tpu.core_type<tc>, window_params = [{transform_indices = @transform_0, window_bounds = array<i64: 16, 256>}, {transform_indices = @transform_1, window_bounds = array<i64: 16, 128>}, {transform_indices = @transform_2, window_bounds = array<i64: 16, 128>}, {pipeline_mode = #tpu.pipeline_mode<synchronous>, transform_indices = @transform_3, window_bounds = array<i64: 128, 384>}, {pipeline_mode = #tpu.pipeline_mode<synchronous>, transform_indices = @transform_4, window_bounds = array<i64: 1, 384>}, {pipeline_mode = #tpu.pipeline_mode<synchronous>, transform_indices = @transform_5, window_bounds = array<i64: 128, 100>}, {pipeline_mode = #tpu.pipeline_mode<synchronous>, transform_indices = @transform_6, window_bounds = array<i64: 1, 100>}, {pipeline_mode = #tpu.pipeline_mode<synchronous>, transform_indices = @transform_7, window_bounds = array<i64: 100, 256>}, {pipeline_mode = #tpu.pipeline_mode<synchronous>, transform_indices = @transform_8, window_bounds = array<i64: 1, 256>}, {pipeline_mode = #tpu.pipeline_mode<synchronous>, transform_indices = @transform_9, window_bounds = array<i64: 128, 100>}, {pipeline_mode = #tpu.pipeline_mode<synchronous>, transform_indices = @transform_10, window_bounds = array<i64: 1, 100>}, {pipeline_mode = #tpu.pipeline_mode<synchronous>, transform_indices = @transform_11, window_bounds = array<i64: 100, 100>}, {pipeline_mode = #tpu.pipeline_mode<synchronous>, transform_indices = @transform_12, window_bounds = array<i64: 1, 100>}, {pipeline_mode = #tpu.pipeline_mode<synchronous>, transform_indices = @transform_13, window_bounds = array<i64: 100, 256>}, {pipeline_mode = #tpu.pipeline_mode<synchronous>, transform_indices = @transform_14, window_bounds = array<i64: 1, 256>}, {pipeline_mode = #tpu.pipeline_mode<synchronous>, transform_indices = @transform_15, window_bounds = array<i64: 256, 200>}, {pipeline_mode = #tpu.pipeline_mode<synchronous>, transform_indices = @transform_16, window_bounds = array<i64: 1, 200>}, {pipeline_mode = #tpu.pipeline_mode<synchronous>, transform_indices = @transform_17, window_bounds = array<i64: 200, 896>}, {pipeline_mode = #tpu.pipeline_mode<synchronous>, transform_indices = @transform_18, window_bounds = array<i64: 1, 896>}, {transform_indices = @transform_19, window_bounds = array<i64: 16, 896>}, {transform_indices = @transform_20, window_bounds = array<i64: 16, 256>}, {transform_indices = @transform_21, window_bounds = array<i64: 16, 256>}]} {
    %c0 = arith.constant 0 : index
    %c0_0 = arith.constant 0 : index
    %0 = vector.load %arg1[%c0, %c0_0] : memref<16x256xf32, #tpu.memory_space<vmem>>, vector<16x256xf32>
    %1 = vector.extract_strided_slice %0 {offsets = [0, 0], sizes = [16, 128], strides = [1, 1]} : vector<16x256xf32> to vector<16x128xf32>
    %2 = vector.extract_strided_slice %0 {offsets = [0, 128], sizes = [16, 128], strides = [1, 1]} : vector<16x256xf32> to vector<16x128xf32>
    %3 = math.exp %2 : vector<16x128xf32>
    %c0_1 = arith.constant 0 : index
    %c0_2 = arith.constant 0 : index
    %4 = vector.load %arg2[%c0_1, %c0_2] : memref<16x128xf32, #tpu.memory_space<vmem>>, vector<16x128xf32>
    %5 = arith.mulf %3, %4 : vector<16x128xf32>
    %6 = arith.addf %1, %5 : vector<16x128xf32>
    %7 = arith.truncf %6 : vector<16x128xf32> to vector<16x128xbf16>
    %c0_3 = arith.constant 0 : index
    %c0_4 = arith.constant 0 : index
    %8 = vector.load %arg4[%c0_3, %c0_4] : memref<128x384xbf16, #tpu.memory_space<vmem>>, vector<128x384xbf16>
    %cst = arith.constant dense<0.000000e+00> : vector<16x384xf32>
    %9 = tpu.matmul %7, %8, %cst {dimension_numbers = #tpu.dot_dimension_numbers<[1], [0], [0], [1], [0, 0, 1, 1], [], []>} : vector<16x128xbf16>, vector<128x384xbf16>, vector<16x384xf32> -> vector<16x384xf32>
    %c0_5 = arith.constant 0 : index
    %c0_6 = arith.constant 0 : index
    %10 = vector.load %arg5[%c0_5, %c0_6] : memref<1x384xf32, #tpu.memory_space<vmem>>, vector<1x384xf32>
    %11 = vector.broadcast %10 : vector<1x384xf32> to vector<16x384xf32>
    %12 = arith.addf %9, %11 : vector<16x384xf32>
    %13 = arith.truncf %12 : vector<16x384xf32> to vector<16x384xbf16>
    %14 = math.tanh %13 : vector<16x384xbf16>
    %15 = vector.extract_strided_slice %14 {offsets = [0, 0], sizes = [16, 128], strides = [1, 1]} : vector<16x384xbf16> to vector<16x128xbf16>
    %c0_7 = arith.constant 0 : index
    %c0_8 = arith.constant 0 : index
    %16 = vector.load %arg6[%c0_7, %c0_8] : memref<128x100xbf16, #tpu.memory_space<vmem>>, vector<128x100xbf16>
    %cst_9 = arith.constant dense<0.000000e+00> : vector<16x100xf32>
    %17 = tpu.matmul %15, %16, %cst_9 {dimension_numbers = #tpu.dot_dimension_numbers<[1], [0], [0], [1], [0, 0, 1, 1], [], []>} : vector<16x128xbf16>, vector<128x100xbf16>, vector<16x100xf32> -> vector<16x100xf32>
    %c0_10 = arith.constant 0 : index
    %c0_11 = arith.constant 0 : index
    %18 = vector.load %arg7[%c0_10, %c0_11] : memref<1x100xf32, #tpu.memory_space<vmem>>, vector<1x100xf32>
    %19 = vector.broadcast %18 : vector<1x100xf32> to vector<16x100xf32>
    %20 = arith.addf %17, %19 : vector<16x100xf32>
    %21 = arith.truncf %20 : vector<16x100xf32> to vector<16x100xbf16>
    %22 = math.tanh %21 : vector<16x100xbf16>
    %c0_12 = arith.constant 0 : index
    %c0_13 = arith.constant 0 : index
    %23 = vector.load %arg8[%c0_12, %c0_13] : memref<100x256xbf16, #tpu.memory_space<vmem>>, vector<100x256xbf16>
    %cst_14 = arith.constant dense<0.000000e+00> : vector<16x256xf32>
    %24 = tpu.matmul %22, %23, %cst_14 {dimension_numbers = #tpu.dot_dimension_numbers<[1], [0], [0], [1], [0, 0, 1, 1], [], []>} : vector<16x100xbf16>, vector<100x256xbf16>, vector<16x256xf32> -> vector<16x256xf32>
    %c0_15 = arith.constant 0 : index
    %c0_16 = arith.constant 0 : index
    %25 = vector.load %arg9[%c0_15, %c0_16] : memref<1x256xf32, #tpu.memory_space<vmem>>, vector<1x256xf32>
    %26 = vector.broadcast %25 : vector<1x256xf32> to vector<16x256xf32>
    %27 = arith.addf %24, %26 : vector<16x256xf32>
    %28 = arith.truncf %27 : vector<16x256xf32> to vector<16x256xbf16>
    %c0_17 = arith.constant 0 : index
    %c0_18 = arith.constant 0 : index
    %29 = vector.load %arg21[%c0_17, %c0_18] : memref<16x256xbf16, #tpu.memory_space<vmem>>, vector<16x256xbf16>
    tpu.vector_store %arg21[%c0_17, %c0_18], %28 {strides = array<i32>} : memref<16x256xbf16, #tpu.memory_space<vmem>>, vector<16x256xbf16>,
    %30 = vector.extract_strided_slice %27 {offsets = [0, 0], sizes = [16, 128], strides = [1, 1]} : vector<16x256xf32> to vector<16x128xf32>
    %31 = vector.extract_strided_slice %27 {offsets = [0, 128], sizes = [16, 128], strides = [1, 1]} : vector<16x256xf32> to vector<16x128xf32>
    %32 = math.exp %31 : vector<16x128xf32>
    %c0_19 = arith.constant 0 : index
    %c0_20 = arith.constant 0 : index
    %33 = vector.load %arg3[%c0_19, %c0_20] : memref<16x128xf32, #tpu.memory_space<vmem>>, vector<16x128xf32>
    %34 = arith.mulf %32, %33 : vector<16x128xf32>
    %35 = arith.addf %30, %34 : vector<16x128xf32>
    %36 = arith.truncf %35 : vector<16x128xf32> to vector<16x128xbf16>
    %c0_21 = arith.constant 0 : index
    %c0_22 = arith.constant 0 : index
    %37 = vector.load %arg10[%c0_21, %c0_22] : memref<128x100xbf16, #tpu.memory_space<vmem>>, vector<128x100xbf16>
    %cst_23 = arith.constant dense<0.000000e+00> : vector<16x100xf32>
    %38 = tpu.matmul %36, %37, %cst_23 {dimension_numbers = #tpu.dot_dimension_numbers<[1], [0], [0], [1], [0, 0, 1, 1], [], []>} : vector<16x128xbf16>, vector<128x100xbf16>, vector<16x100xf32> -> vector<16x100xf32>
    %c0_24 = arith.constant 0 : index
    %c0_25 = arith.constant 0 : index
    %39 = vector.load %arg11[%c0_24, %c0_25] : memref<1x100xf32, #tpu.memory_space<vmem>>, vector<1x100xf32>
    %40 = vector.broadcast %39 : vector<1x100xf32> to vector<16x100xf32>
    %41 = arith.addf %38, %40 : vector<16x100xf32>
    %42 = arith.truncf %41 : vector<16x100xf32> to vector<16x100xbf16>
    %43 = math.tanh %42 : vector<16x100xbf16>
    %c0_26 = arith.constant 0 : index
    %c0_27 = arith.constant 0 : index
    %44 = vector.load %arg12[%c0_26, %c0_27] : memref<100x100xbf16, #tpu.memory_space<vmem>>, vector<100x100xbf16>
    %cst_28 = arith.constant dense<0.000000e+00> : vector<16x100xf32>
    %45 = tpu.matmul %43, %44, %cst_28 {dimension_numbers = #tpu.dot_dimension_numbers<[1], [0], [0], [1], [0, 0, 1, 1], [], []>} : vector<16x100xbf16>, vector<100x100xbf16>, vector<16x100xf32> -> vector<16x100xf32>
    %c0_29 = arith.constant 0 : index
    %c0_30 = arith.constant 0 : index
    %46 = vector.load %arg13[%c0_29, %c0_30] : memref<1x100xf32, #tpu.memory_space<vmem>>, vector<1x100xf32>
    %47 = vector.broadcast %46 : vector<1x100xf32> to vector<16x100xf32>
    %48 = arith.addf %45, %47 : vector<16x100xf32>
    %49 = arith.truncf %48 : vector<16x100xf32> to vector<16x100xbf16>
    %50 = math.tanh %49 : vector<16x100xbf16>
    %c0_31 = arith.constant 0 : index
    %c0_32 = arith.constant 0 : index
    %51 = vector.load %arg14[%c0_31, %c0_32] : memref<100x256xbf16, #tpu.memory_space<vmem>>, vector<100x256xbf16>
    %cst_33 = arith.constant dense<0.000000e+00> : vector<16x256xf32>
    %52 = tpu.matmul %50, %51, %cst_33 {dimension_numbers = #tpu.dot_dimension_numbers<[1], [0], [0], [1], [0, 0, 1, 1], [], []>} : vector<16x100xbf16>, vector<100x256xbf16>, vector<16x256xf32> -> vector<16x256xf32>
    %c0_34 = arith.constant 0 : index
    %c0_35 = arith.constant 0 : index
    %53 = vector.load %arg15[%c0_34, %c0_35] : memref<1x256xf32, #tpu.memory_space<vmem>>, vector<1x256xf32>
    %54 = vector.broadcast %53 : vector<1x256xf32> to vector<16x256xf32>
    %55 = arith.addf %52, %54 : vector<16x256xf32>
    %56 = arith.truncf %55 : vector<16x256xf32> to vector<16x256xbf16>
    %c0_36 = arith.constant 0 : index
    %c0_37 = arith.constant 0 : index
    %57 = vector.load %arg22[%c0_36, %c0_37] : memref<16x256xbf16, #tpu.memory_space<vmem>>, vector<16x256xbf16>
    tpu.vector_store %arg22[%c0_36, %c0_37], %56 {strides = array<i32>} : memref<16x256xbf16, #tpu.memory_space<vmem>>, vector<16x256xbf16>,
    %58 = vector.extract_strided_slice %14 {offsets = [0, 128], sizes = [16, 256], strides = [1, 1]} : vector<16x384xbf16> to vector<16x256xbf16>
    %c0_38 = arith.constant 0 : index
    %c0_39 = arith.constant 0 : index
    %59 = vector.load %arg16[%c0_38, %c0_39] : memref<256x200xbf16, #tpu.memory_space<vmem>>, vector<256x200xbf16>
    %cst_40 = arith.constant dense<0.000000e+00> : vector<16x200xf32>
    %60 = tpu.matmul %58, %59, %cst_40 {dimension_numbers = #tpu.dot_dimension_numbers<[1], [0], [0], [1], [0, 0, 1, 1], [], []>} : vector<16x256xbf16>, vector<256x200xbf16>, vector<16x200xf32> -> vector<16x200xf32>
    %c0_41 = arith.constant 0 : index
    %c0_42 = arith.constant 0 : index
    %61 = vector.load %arg17[%c0_41, %c0_42] : memref<1x200xf32, #tpu.memory_space<vmem>>, vector<1x200xf32>
    %62 = vector.broadcast %61 : vector<1x200xf32> to vector<16x200xf32>
    %63 = arith.addf %60, %62 : vector<16x200xf32>
    %64 = arith.truncf %63 : vector<16x200xf32> to vector<16x200xbf16>
    %65 = math.tanh %64 : vector<16x200xbf16>
    %c0_43 = arith.constant 0 : index
    %c0_44 = arith.constant 0 : index
    %66 = vector.load %arg18[%c0_43, %c0_44] : memref<200x896xbf16, #tpu.memory_space<vmem>>, vector<200x896xbf16>
    %cst_45 = arith.constant dense<0.000000e+00> : vector<16x896xf32>
    %67 = tpu.matmul %65, %66, %cst_45 {dimension_numbers = #tpu.dot_dimension_numbers<[1], [0], [0], [1], [0, 0, 1, 1], [], []>} : vector<16x200xbf16>, vector<200x896xbf16>, vector<16x896xf32> -> vector<16x896xf32>
    %c0_46 = arith.constant 0 : index
    %c0_47 = arith.constant 0 : index
    %68 = vector.load %arg19[%c0_46, %c0_47] : memref<1x896xf32, #tpu.memory_space<vmem>>, vector<1x896xf32>
    %69 = vector.broadcast %68 : vector<1x896xf32> to vector<16x896xf32>
    %70 = arith.addf %67, %69 : vector<16x896xf32>
    %71 = arith.truncf %70 : vector<16x896xf32> to vector<16x896xbf16>
    %c0_48 = arith.constant 0 : index
    %c0_49 = arith.constant 0 : index
    %72 = vector.load %arg20[%c0_48, %c0_49] : memref<16x896xbf16, #tpu.memory_space<vmem>>, vector<16x896xbf16>
    tpu.vector_store %arg20[%c0_48, %c0_49], %71 {strides = array<i32>} : memref<16x896xbf16, #tpu.memory_space<vmem>>, vector<16x896xbf16>,
    return
  }
  func.func @transform_0(%arg0: i32) -> (i32, i32) {
    %c0_i32 = arith.constant 0 : i32
    %c0_i32_0 = arith.constant 0 : i32
    return %arg0, %c0_i32 : i32, i32
  }
  func.func @transform_1(%arg0: i32) -> (i32, i32) {
    %c0_i32 = arith.constant 0 : i32
    %c0_i32_0 = arith.constant 0 : i32
    return %arg0, %c0_i32 : i32, i32
  }
  func.func @transform_2(%arg0: i32) -> (i32, i32) {
    %c0_i32 = arith.constant 0 : i32
    %c0_i32_0 = arith.constant 0 : i32
    return %arg0, %c0_i32 : i32, i32
  }
  func.func @transform_3(%arg0: i32) -> (i32, i32) {
    %c0_i32 = arith.constant 0 : i32
    %c0_i32_0 = arith.constant 0 : i32
    %c0_i32_1 = arith.constant 0 : i32
    return %c0_i32, %c0_i32_0 : i32, i32
  }
  func.func @transform_4(%arg0: i32) -> (i32, i32) {
    %c0_i32 = arith.constant 0 : i32
    %c0_i32_0 = arith.constant 0 : i32
    %c0_i32_1 = arith.constant 0 : i32
    return %c0_i32, %c0_i32_0 : i32, i32
  }
  func.func @transform_5(%arg0: i32) -> (i32, i32) {
    %c0_i32 = arith.constant 0 : i32
    %c0_i32_0 = arith.constant 0 : i32
    %c0_i32_1 = arith.constant 0 : i32
    return %c0_i32, %c0_i32_0 : i32, i32
  }
  func.func @transform_6(%arg0: i32) -> (i32, i32) {
    %c0_i32 = arith.constant 0 : i32
    %c0_i32_0 = arith.constant 0 : i32
    %c0_i32_1 = arith.constant 0 : i32
    return %c0_i32, %c0_i32_0 : i32, i32
  }
  func.func @transform_7(%arg0: i32) -> (i32, i32) {
    %c0_i32 = arith.constant 0 : i32
    %c0_i32_0 = arith.constant 0 : i32
    %c0_i32_1 = arith.constant 0 : i32
    return %c0_i32, %c0_i32_0 : i32, i32
  }
  func.func @transform_8(%arg0: i32) -> (i32, i32) {
    %c0_i32 = arith.constant 0 : i32
    %c0_i32_0 = arith.constant 0 : i32
    %c0_i32_1 = arith.constant 0 : i32
    return %c0_i32, %c0_i32_0 : i32, i32
  }
  func.func @transform_9(%arg0: i32) -> (i32, i32) {
    %c0_i32 = arith.constant 0 : i32
    %c0_i32_0 = arith.constant 0 : i32
    %c0_i32_1 = arith.constant 0 : i32
    return %c0_i32, %c0_i32_0 : i32, i32
  }
  func.func @transform_10(%arg0: i32) -> (i32, i32) {
    %c0_i32 = arith.constant 0 : i32
    %c0_i32_0 = arith.constant 0 : i32
    %c0_i32_1 = arith.constant 0 : i32
    return %c0_i32, %c0_i32_0 : i32, i32
  }
  func.func @transform_11(%arg0: i32) -> (i32, i32) {
    %c0_i32 = arith.constant 0 : i32
    %c0_i32_0 = arith.constant 0 : i32
    %c0_i32_1 = arith.constant 0 : i32
    return %c0_i32, %c0_i32_0 : i32, i32
  }
  func.func @transform_12(%arg0: i32) -> (i32, i32) {
    %c0_i32 = arith.constant 0 : i32
    %c0_i32_0 = arith.constant 0 : i32
    %c0_i32_1 = arith.constant 0 : i32
    return %c0_i32, %c0_i32_0 : i32, i32
  }
  func.func @transform_13(%arg0: i32) -> (i32, i32) {
    %c0_i32 = arith.constant 0 : i32
    %c0_i32_0 = arith.constant 0 : i32
    %c0_i32_1 = arith.constant 0 : i32
    return %c0_i32, %c0_i32_0 : i32, i32
  }
  func.func @transform_14(%arg0: i32) -> (i32, i32) {
    %c0_i32 = arith.constant 0 : i32
    %c0_i32_0 = arith.constant 0 : i32
    %c0_i32_1 = arith.constant 0 : i32
    return %c0_i32, %c0_i32_0 : i32, i32
  }
  func.func @transform_15(%arg0: i32) -> (i32, i32) {
    %c0_i32 = arith.constant 0 : i32
    %c0_i32_0 = arith.constant 0 : i32
    %c0_i32_1 = arith.constant 0 : i32
    return %c0_i32, %c0_i32_0 : i32, i32
  }
  func.func @transform_16(%arg0: i32) -> (i32, i32) {
    %c0_i32 = arith.constant 0 : i32
    %c0_i32_0 = arith.constant 0 : i32
    %c0_i32_1 = arith.constant 0 : i32
    return %c0_i32, %c0_i32_0 : i32, i32
  }
  func.func @transform_17(%arg0: i32) -> (i32, i32) {
    %c0_i32 = arith.constant 0 : i32
    %c0_i32_0 = arith.constant 0 : i32
    %c0_i32_1 = arith.constant 0 : i32
    return %c0_i32, %c0_i32_0 : i32, i32
  }
  func.func @transform_18(%arg0: i32) -> (i32, i32) {
    %c0_i32 = arith.constant 0 : i32
    %c0_i32_0 = arith.constant 0 : i32
    %c0_i32_1 = arith.constant 0 : i32
    return %c0_i32, %c0_i32_0 : i32, i32
  }
  func.func @transform_19(%arg0: i32) -> (i32, i32) {
    %c0_i32 = arith.constant 0 : i32
    %c0_i32_0 = arith.constant 0 : i32
    return %arg0, %c0_i32 : i32, i32
  }
  func.func @transform_20(%arg0: i32) -> (i32, i32) {
    %c0_i32 = arith.constant 0 : i32
    %c0_i32_0 = arith.constant 0 : i32
    return %arg0, %c0_i32 : i32, i32
  }
  func.func @transform_21(%arg0: i32) -> (i32, i32) {
    %c0_i32 = arith.constant 0 : i32
    %c0_i32_0 = arith.constant 0 : i32
    return %arg0, %c0_i32 : i32, i32
  }
}

</mosaic_0001>

<llo_original>
// kernel: vae2_forward.2
$region0: #{vae2_forward.2}
  #allocation0 [shape = 'u32[]', space=smem, size = 0x4, offset = 0x4, fixed_abs, tag = 'smem constant byte address 0x4 - core index']
  #allocation1 [shape = 'u32[72,128]{1,0:T(1,128)}', space=vmem, size = 0x9000, scoped, tag = 'internal scratch']
  %s0 = inlined_call_operand.vmem [shape: bf16[16,784], index: 0, kind: input, shape index: {}]
  %s1 = inlined_call_operand.vmem [shape: bf16[784,200], index: 1, kind: input, shape index: {}]
  %s2 = inlined_call_operand.vmem [shape: f32[1,200], index: 2, kind: input, shape index: {}]
  %s3 = inlined_call_operand.vmem [shape: bf16[200,200], index: 3, kind: input, shape index: {}]
  %s4 = inlined_call_operand.vmem [shape: f32[1,200], index: 4, kind: input, shape index: {}]
  %s5 = inlined_call_operand.vmem [shape: bf16[200,256], index: 5, kind: input, shape index: {}]
  %s6 = inlined_call_operand.vmem [shape: f32[1,256], index: 6, kind: input, shape index: {}]
  %s7 = inlined_call_operand.vmem [shape: f32[16,256], index: 7, kind: output, shape index: {}]
  %s8 = sld [smem:[#allocation0]]
  $region38: #{vae2_forward.2} parent=0
    _
  %s10 = ssub.s32 1, %s8
  %s11 = scalar_select 0, %s10, %s8
  // Predicated region
  $region2: #{vae2_forward.2} parent=0 // pred_check
    _
  $region3: #{vae2_forward.2} parent=0 // pred_check_branch
    %13 = sbr.rel (0) target = $region5
  $region4: #{vae2_forward.2} parent=0 // pred_region
    _
  $region5: #{vae2_forward.2} parent=0 // pred_fallthru
    _
  // Predicated region
  $region6: #{vae2_forward.2} parent=0 // pred_check
    _
  $region7: #{vae2_forward.2} parent=0 // pred_check_branch
    %15 = sbr.rel (0) target = $region9
  $region8: #{vae2_forward.2} parent=0 // pred_region
    _
  $region9: #{vae2_forward.2} parent=0 // pred_fallthru
    _
  // Predicated region
  $region10: #{vae2_forward.2} parent=0 // pred_check
    _
  $region11: #{vae2_forward.2} parent=0 // pred_check_branch
    %17 = sbr.rel (0) target = $region13
  $region12: #{vae2_forward.2} parent=0 // pred_region
    _
  $region13: #{vae2_forward.2} parent=0 // pred_fallthru
    _
  // Predicated region
  $region14: #{vae2_forward.2} parent=0 // pred_check
    _
  $region15: #{vae2_forward.2} parent=0 // pred_check_branch
    %19 = sbr.rel (0) target = $region17
  $region16: #{vae2_forward.2} parent=0 // pred_region
    _
  $region17: #{vae2_forward.2} parent=0 // pred_fallthru
    _
  // Predicated region
  $region18: #{vae2_forward.2} parent=0 // pred_check
    _
  $region19: #{vae2_forward.2} parent=0 // pred_check_branch
    %21 = sbr.rel (0) target = $region21
  $region20: #{vae2_forward.2} parent=0 // pred_region
    _
  $region21: #{vae2_forward.2} parent=0 // pred_fallthru
    _
  // Predicated region
  $region22: #{vae2_forward.2} parent=0 // pred_check
    _
  $region23: #{vae2_forward.2} parent=0 // pred_check_branch
    %23 = sbr.rel (0) target = $region25
  $region24: #{vae2_forward.2} parent=0 // pred_region
    _
  $region25: #{vae2_forward.2} parent=0 // pred_fallthru
    _
  // Predicated region
  $region26: #{vae2_forward.2} parent=0 // pred_check
    _
  $region27: #{vae2_forward.2} parent=0 // pred_check_branch
    %25 = sbr.rel (0) target = $region29
  $region28: #{vae2_forward.2} parent=0 // pred_region
    _
  $region29: #{vae2_forward.2} parent=0 // pred_fallthru
    _
  %v27 = vld [vmem:[%s0] sm:$0xff]
  %v28 = vld [vmem:[%s0 + $0x8] sm:$0xff]
  %v29 = vld [vmem:[%s0 + $0x10] sm:$0xff]
  %v30 = vld [vmem:[%s0 + $0x18] sm:$0xf]
  %v31 = vld [vmem:[%s0 + $0x1c] sm:$0xff]
  %v32 = vld [vmem:[%s0 + $0x24] sm:$0xff]
  %v33 = vld [vmem:[%s0 + $0x2c] sm:$0xff]
  %v34 = vld [vmem:[%s0 + $0x34] sm:$0xf]
  %v35 = vld [vmem:[%s1] sm:$0xff]
  %v36 = vld [vmem:[%s1 + $0x8] sm:$0xff]
  %v37 = vld [vmem:[%s1 + $0x10] sm:$0xff]
  %v38 = vld [vmem:[%s1 + $0x18] sm:$0xff]
  %v39 = vld [vmem:[%s1 + $0x20] sm:$0xff]
  %v40 = vld [vmem:[%s1 + $0x28] sm:$0xff]
  %v41 = vld [vmem:[%s1 + $0x30] sm:$0xff]
  %v42 = vld [vmem:[%s1 + $0x38] sm:$0xff]
  %v43 = vld [vmem:[%s1 + $0x40] sm:$0xff]
  %v44 = vld [vmem:[%s1 + $0x48] sm:$0xff]
  %v45 = vld [vmem:[%s1 + $0x50] sm:$0xff]
  %v46 = vld [vmem:[%s1 + $0x58] sm:$0xff]
  %v47 = vld [vmem:[%s1 + $0x60] sm:$0xff]
  %v48 = vld [vmem:[%s1 + $0x68] sm:$0xff]
  %v49 = vld [vmem:[%s1 + $0x70] sm:$0xff]
  %v50 = vld [vmem:[%s1 + $0x78] sm:$0xff]
  %v51 = vld [vmem:[%s1 + $0x80] sm:$0xff]
  %v52 = vld [vmem:[%s1 + $0x88] sm:$0xff]
  %v53 = vld [vmem:[%s1 + $0x90] sm:$0xff]
  %v54 = vld [vmem:[%s1 + $0x98] sm:$0xff]
  %v55 = vld [vmem:[%s1 + $0xa0] sm:$0xff]
  %v56 = vld [vmem:[%s1 + $0xa8] sm:$0xff]
  %v57 = vld [vmem:[%s1 + $0xb0] sm:$0xff]
  %v58 = vld [vmem:[%s1 + $0xb8] sm:$0xff]
  %v59 = vld [vmem:[%s1 + $0xc0] sm:$0xff]
  %v60 = vld [vmem:[%s1 + $0xc8] sm:$0xff]
  %v61 = vld [vmem:[%s1 + $0xd0] sm:$0xff]
  %v62 = vld [vmem:[%s1 + $0xd8] sm:$0xff]
  %v63 = vld [vmem:[%s1 + $0xe0] sm:$0xff]
  %v64 = vld [vmem:[%s1 + $0xe8] sm:$0xff]
  %v65 = vld [vmem:[%s1 + $0xf0] sm:$0xff]
  %v66 = vld [vmem:[%s1 + $0xf8] sm:$0xff]
  %v67 = vld [vmem:[%s1 + $0x100] sm:$0xff]
  %v68 = vld [vmem:[%s1 + $0x108] sm:$0xff]
  %v69 = vld [vmem:[%s1 + $0x110] sm:$0xff]
  %v70 = vld [vmem:[%s1 + $0x118] sm:$0xff]
  %v71 = vld [vmem:[%s1 + $0x120] sm:$0xff]
  %v72 = vld [vmem:[%s1 + $0x128] sm:$0xff]
  %v73 = vld [vmem:[%s1 + $0x130] sm:$0xff]
  %v74 = vld [vmem:[%s1 + $0x138] sm:$0xff]
  %v75 = vld [vmem:[%s1 + $0x140] sm:$0xff]
  %v76 = vld [vmem:[%s1 + $0x148] sm:$0xff]
  %v77 = vld [vmem:[%s1 + $0x150] sm:$0xff]
  %v78 = vld [vmem:[%s1 + $0x158] sm:$0xff]
  %v79 = vld [vmem:[%s1 + $0x160] sm:$0xff]
  %v80 = vld [vmem:[%s1 + $0x168] sm:$0xff]
  %v81 = vld [vmem:[%s1 + $0x170] sm:$0xff]
  %v82 = vld [vmem:[%s1 + $0x178] sm:$0xff]
  %v83 = vld [vmem:[%s1 + $0x180] sm:$0xff]
  %v84 = vld [vmem:[%s1 + $0x188] sm:$0xff]
  %v85 = vld [vmem:[%s1 + $0x190] sm:$0xff]
  %v86 = vld [vmem:[%s1 + $0x198] sm:$0xff]
  %v87 = vld [vmem:[%s1 + $0x1a0] sm:$0xff]
  %v88 = vld [vmem:[%s1 + $0x1a8] sm:$0xff]
  %v89 = vld [vmem:[%s1 + $0x1b0] sm:$0xff]
  %v90 = vld [vmem:[%s1 + $0x1b8] sm:$0xff]
  %v91 = vld [vmem:[%s1 + $0x1c0] sm:$0xff]
  %v92 = vld [vmem:[%s1 + $0x1c8] sm:$0xff]
  %v93 = vld [vmem:[%s1 + $0x1d0] sm:$0xff]
  %v94 = vld [vmem:[%s1 + $0x1d8] sm:$0xff]
  %v95 = vld [vmem:[%s1 + $0x1e0] sm:$0xff]
  %v96 = vld [vmem:[%s1 + $0x1e8] sm:$0xff]
  %v97 = vld [vmem:[%s1 + $0x1f0] sm:$0xff]
  %v98 = vld [vmem:[%s1 + $0x1f8] sm:$0xff]
  %v99 = vld [vmem:[%s1 + $0x200] sm:$0xff]
  %v100 = vld [vmem:[%s1 + $0x208] sm:$0xff]
  %v101 = vld [vmem:[%s1 + $0x210] sm:$0xff]
  %v102 = vld [vmem:[%s1 + $0x218] sm:$0xff]
  %v103 = vld [vmem:[%s1 + $0x220] sm:$0xff]
  %v104 = vld [vmem:[%s1 + $0x228] sm:$0xff]
  %v105 = vld [vmem:[%s1 + $0x230] sm:$0xff]
  %v106 = vld [vmem:[%s1 + $0x238] sm:$0xff]
  %v107 = vld [vmem:[%s1 + $0x240] sm:$0xff]
  %v108 = vld [vmem:[%s1 + $0x248] sm:$0xff]
  %v109 = vld [vmem:[%s1 + $0x250] sm:$0xff]
  %v110 = vld [vmem:[%s1 + $0x258] sm:$0xff]
  %v111 = vld [vmem:[%s1 + $0x260] sm:$0xff]
  %v112 = vld [vmem:[%s1 + $0x268] sm:$0xff]
  %v113 = vld [vmem:[%s1 + $0x270] sm:$0xff]
  %v114 = vld [vmem:[%s1 + $0x278] sm:$0xff]
  %v115 = vld [vmem:[%s1 + $0x280] sm:$0xff]
  %v116 = vld [vmem:[%s1 + $0x288] sm:$0xff]
  %v117 = vld [vmem:[%s1 + $0x290] sm:$0xff]
  %v118 = vld [vmem:[%s1 + $0x298] sm:$0xff]
  %v119 = vld [vmem:[%s1 + $0x2a0] sm:$0xff]
  %v120 = vld [vmem:[%s1 + $0x2a8] sm:$0xff]
  %v121 = vld [vmem:[%s1 + $0x2b0] sm:$0xff]
  %v122 = vld [vmem:[%s1 + $0x2b8] sm:$0xff]
  %v123 = vld [vmem:[%s1 + $0x2c0] sm:$0xff]
  %v124 = vld [vmem:[%s1 + $0x2c8] sm:$0xff]
  %v125 = vld [vmem:[%s1 + $0x2d0] sm:$0xff]
  %v126 = vld [vmem:[%s1 + $0x2d8] sm:$0xff]
  %v127 = vld [vmem:[%s1 + $0x2e0] sm:$0xff]
  %v128 = vld [vmem:[%s1 + $0x2e8] sm:$0xff]
  %v129 = vld [vmem:[%s1 + $0x2f0] sm:$0xff]
  %v130 = vld [vmem:[%s1 + $0x2f8] sm:$0xff]
  %v131 = vld [vmem:[%s1 + $0x300] sm:$0xff]
  %v132 = vld [vmem:[%s1 + $0x308] sm:$0xff]
  %v133 = vld [vmem:[%s2] sm:$0x3]
  %v135 = vperm.slane %v133, 0
  %v136 = vperm.slane %v133, 1
  %v147 = vunpack.c.l.b16 %v27
  %v148 = vunpack.c.h.b16 %v27
  %v149 = vunpack.c.l.b16 %v28
  %v150 = vunpack.c.h.b16 %v28
  %v151 = vunpack.c.l.b16 %v29
  %v152 = vunpack.c.h.b16 %v29
  %v153 = vunpack.c.l.b16 %v30
  %v154 = vunpack.c.l.b16 %v31
  %v155 = vunpack.c.h.b16 %v31
  %v156 = vunpack.c.l.b16 %v32
  %v157 = vunpack.c.h.b16 %v32
  %v158 = vunpack.c.l.b16 %v33
  %v159 = vunpack.c.h.b16 %v33
  %v160 = vunpack.c.l.b16 %v34
  %v161 = vpack.c.b16 %v154, %v147
  %v162 = vpack.c.b16 %v155, %v148
  %v163 = vpack.c.b16 %v156, %v149
  %v164 = vpack.c.b16 %v157, %v150
  %v165 = vpack.c.b16 %v158, %v151
  %v166 = vpack.c.b16 %v159, %v152
  %v167 = vpack.c.b16 %v160, %v153
  %v272 = vunpack.c.l.b16 %v35
  %v273 = vunpack.c.h.b16 %v35
  %v274 = vunpack.c.l.b16 %v36
  %v275 = vunpack.c.h.b16 %v36
  %v276 = vunpack.c.l.b16 %v37
  %v277 = vunpack.c.h.b16 %v37
  %v278 = vunpack.c.l.b16 %v38
  %v279 = vunpack.c.h.b16 %v38
  %v280 = vunpack.c.l.b16 %v39
  %v281 = vunpack.c.h.b16 %v39
  %v282 = vunpack.c.l.b16 %v40
  %v283 = vunpack.c.h.b16 %v40
  %v284 = vunpack.c.l.b16 %v41
  %v285 = vunpack.c.h.b16 %v41
  %v286 = vunpack.c.l.b16 %v42
  %v287 = vunpack.c.h.b16 %v42
  %v288 = vunpack.c.l.b16 %v43
  %v289 = vunpack.c.h.b16 %v43
  %v290 = vunpack.c.l.b16 %v44
  %v291 = vunpack.c.h.b16 %v44
  %v292 = vunpack.c.l.b16 %v45
  %v293 = vunpack.c.h.b16 %v45
  %v294 = vunpack.c.l.b16 %v46
  %v295 = vunpack.c.h.b16 %v46
  %v296 = vunpack.c.l.b16 %v47
  %v297 = vunpack.c.h.b16 %v47
  %v298 = vunpack.c.l.b16 %v48
  %v299 = vunpack.c.h.b16 %v48
  %v300 = vunpack.c.l.b16 %v49
  %v301 = vunpack.c.h.b16 %v49
  %v302 = vunpack.c.l.b16 %v50
  %v303 = vunpack.c.h.b16 %v50
  %v304 = vunpack.c.l.b16 %v51
  %v305 = vunpack.c.h.b16 %v51
  %v306 = vunpack.c.l.b16 %v52
  %v307 = vunpack.c.h.b16 %v52
  %v308 = vunpack.c.l.b16 %v53
  %v309 = vunpack.c.h.b16 %v53
  %v310 = vunpack.c.l.b16 %v54
  %v311 = vunpack.c.h.b16 %v54
  %v312 = vunpack.c.l.b16 %v55
  %v313 = vunpack.c.h.b16 %v55
  %v314 = vunpack.c.l.b16 %v56
  %v315 = vunpack.c.h.b16 %v56
  %v316 = vunpack.c.l.b16 %v57
  %v317 = vunpack.c.h.b16 %v57
  %v318 = vunpack.c.l.b16 %v58
  %v319 = vunpack.c.h.b16 %v58
  %v320 = vunpack.c.l.b16 %v59
  %v321 = vunpack.c.h.b16 %v59
  %v322 = vunpack.c.l.b16 %v60
  %v323 = vunpack.c.h.b16 %v60
  %v324 = vunpack.c.l.b16 %v61
  %v325 = vunpack.c.h.b16 %v61
  %v326 = vunpack.c.l.b16 %v62
  %v327 = vunpack.c.h.b16 %v62
  %v328 = vunpack.c.l.b16 %v63
  %v329 = vunpack.c.h.b16 %v63
  %v330 = vunpack.c.l.b16 %v64
  %v331 = vunpack.c.h.b16 %v64
  %v332 = vunpack.c.l.b16 %v65
  %v333 = vunpack.c.h.b16 %v65
  %v334 = vunpack.c.l.b16 %v66
  %v335 = vunpack.c.h.b16 %v66
  %v336 = vunpack.c.l.b16 %v67
  %v337 = vunpack.c.h.b16 %v67
  %v338 = vunpack.c.l.b16 %v68
  %v339 = vunpack.c.h.b16 %v68
  %v340 = vunpack.c.l.b16 %v69
  %v341 = vunpack.c.h.b16 %v69
  %v342 = vunpack.c.l.b16 %v70
  %v343 = vunpack.c.h.b16 %v70
  %v344 = vunpack.c.l.b16 %v71
  %v345 = vunpack.c.h.b16 %v71
  %v346 = vunpack.c.l.b16 %v72
  %v347 = vunpack.c.h.b16 %v72
  %v348 = vunpack.c.l.b16 %v73
  %v349 = vunpack.c.h.b16 %v73
  %v350 = vunpack.c.l.b16 %v74
  %v351 = vunpack.c.h.b16 %v74
  %v352 = vunpack.c.l.b16 %v75
  %v353 = vunpack.c.h.b16 %v75
  %v354 = vunpack.c.l.b16 %v76
  %v355 = vunpack.c.h.b16 %v76
  %v356 = vunpack.c.l.b16 %v77
  %v357 = vunpack.c.h.b16 %v77
  %v358 = vunpack.c.l.b16 %v78
  %v359 = vunpack.c.h.b16 %v78
  %v360 = vunpack.c.l.b16 %v79
  %v361 = vunpack.c.h.b16 %v79
  %v362 = vunpack.c.l.b16 %v80
  %v363 = vunpack.c.h.b16 %v80
  %v364 = vunpack.c.l.b16 %v81
  %v365 = vunpack.c.h.b16 %v81
  %v366 = vunpack.c.l.b16 %v82
  %v367 = vunpack.c.h.b16 %v82
  %v368 = vunpack.c.l.b16 %v83
  %v369 = vunpack.c.h.b16 %v83
  %v370 = vunpack.c.l.b16 %v84
  %v371 = vunpack.c.h.b16 %v84
  %v372 = vunpack.c.l.b16 %v85
  %v373 = vunpack.c.h.b16 %v85
  %v374 = vunpack.c.l.b16 %v86
  %v375 = vunpack.c.h.b16 %v86
  %v376 = vunpack.c.l.b16 %v87
  %v377 = vunpack.c.h.b16 %v87
  %v378 = vunpack.c.l.b16 %v88
  %v379 = vunpack.c.h.b16 %v88
  %v380 = vunpack.c.l.b16 %v89
  %v381 = vunpack.c.h.b16 %v89
  %v382 = vunpack.c.l.b16 %v90
  %v383 = vunpack.c.h.b16 %v90
  %v384 = vunpack.c.l.b16 %v91
  %v385 = vunpack.c.h.b16 %v91
  %v386 = vunpack.c.l.b16 %v92
  %v387 = vunpack.c.h.b16 %v92
  %v388 = vunpack.c.l.b16 %v93
  %v389 = vunpack.c.h.b16 %v93
  %v390 = vunpack.c.l.b16 %v94
  %v391 = vunpack.c.h.b16 %v94
  %v392 = vunpack.c.l.b16 %v95
  %v393 = vunpack.c.h.b16 %v95
  %v394 = vunpack.c.l.b16 %v96
  %v395 = vunpack.c.h.b16 %v96
  %v396 = vunpack.c.l.b16 %v97
  %v397 = vunpack.c.h.b16 %v97
  %v398 = vunpack.c.l.b16 %v98
  %v399 = vunpack.c.h.b16 %v98
  %v400 = vunpack.c.l.b16 %v99
  %v401 = vunpack.c.h.b16 %v99
  %v402 = vunpack.c.l.b16 %v100
  %v403 = vunpack.c.h.b16 %v100
  %v404 = vunpack.c.l.b16 %v101
  %v405 = vunpack.c.h.b16 %v101
  %v406 = vunpack.c.l.b16 %v102
  %v407 = vunpack.c.h.b16 %v102
  %v408 = vunpack.c.l.b16 %v103
  %v409 = vunpack.c.h.b16 %v103
  %v410 = vunpack.c.l.b16 %v104
  %v411 = vunpack.c.h.b16 %v104
  %v412 = vunpack.c.l.b16 %v105
  %v413 = vunpack.c.h.b16 %v105
  %v414 = vunpack.c.l.b16 %v106
  %v415 = vunpack.c.h.b16 %v106
  %v416 = vunpack.c.l.b16 %v107
  %v417 = vunpack.c.h.b16 %v107
  %v418 = vunpack.c.l.b16 %v108
  %v419 = vunpack.c.h.b16 %v108
  %v420 = vunpack.c.l.b16 %v109
  %v421 = vunpack.c.h.b16 %v109
  %v422 = vunpack.c.l.b16 %v110
  %v423 = vunpack.c.h.b16 %v110
  %v424 = vunpack.c.l.b16 %v111
  %v425 = vunpack.c.h.b16 %v111
  %v426 = vunpack.c.l.b16 %v112
  %v427 = vunpack.c.h.b16 %v112
  %v428 = vunpack.c.l.b16 %v113
  %v429 = vunpack.c.h.b16 %v113
  %v430 = vunpack.c.l.b16 %v114
  %v431 = vunpack.c.h.b16 %v114
  %v432 = vunpack.c.l.b16 %v115
  %v433 = vunpack.c.h.b16 %v115
  %v434 = vunpack.c.l.b16 %v116
  %v435 = vunpack.c.h.b16 %v116
  %v436 = vunpack.c.l.b16 %v117
  %v437 = vunpack.c.h.b16 %v117
  %v438 = vunpack.c.l.b16 %v118
  %v439 = vunpack.c.h.b16 %v118
  %v440 = vunpack.c.l.b16 %v119
  %v441 = vunpack.c.h.b16 %v119
  %v442 = vunpack.c.l.b16 %v120
  %v443 = vunpack.c.h.b16 %v120
  %v444 = vunpack.c.l.b16 %v121
  %v445 = vunpack.c.h.b16 %v121
  %v446 = vunpack.c.l.b16 %v122
  %v447 = vunpack.c.h.b16 %v122
  %v448 = vunpack.c.l.b16 %v123
  %v449 = vunpack.c.h.b16 %v123
  %v450 = vunpack.c.l.b16 %v124
  %v451 = vunpack.c.h.b16 %v124
  %v452 = vunpack.c.l.b16 %v125
  %v453 = vunpack.c.h.b16 %v125
  %v454 = vunpack.c.l.b16 %v126
  %v455 = vunpack.c.h.b16 %v126
  %v456 = vunpack.c.l.b16 %v127
  %v457 = vunpack.c.h.b16 %v127
  %v458 = vunpack.c.l.b16 %v128
  %v459 = vunpack.c.h.b16 %v128
  %v460 = vunpack.c.l.b16 %v129
  %v461 = vunpack.c.h.b16 %v129
  %v462 = vunpack.c.l.b16 %v130
  %v463 = vunpack.c.h.b16 %v130
  %v464 = vunpack.c.l.b16 %v131
  %v465 = vunpack.c.h.b16 %v131
  %v466 = vunpack.c.l.b16 %v132
  %v467 = vunpack.c.h.b16 %v132
  %v468 = vpack.c.b16 %v274, %v272
  %v469 = vpack.c.b16 %v275, %v273
  %v470 = vpack.c.b16 %v278, %v276
  %v471 = vpack.c.b16 %v279, %v277
  %v472 = vpack.c.b16 %v282, %v280
  %v473 = vpack.c.b16 %v283, %v281
  %v474 = vpack.c.b16 %v286, %v284
  %v475 = vpack.c.b16 %v287, %v285
  %v476 = vpack.c.b16 %v290, %v288
  %v477 = vpack.c.b16 %v291, %v289
  %v478 = vpack.c.b16 %v294, %v292
  %v479 = vpack.c.b16 %v295, %v293
  %v480 = vpack.c.b16 %v298, %v296
  %v481 = vpack.c.b16 %v299, %v297
  %v482 = vpack.c.b16 %v302, %v300
  %v483 = vpack.c.b16 %v303, %v301
  %v484 = vpack.c.b16 %v306, %v304
  %v485 = vpack.c.b16 %v307, %v305
  %v486 = vpack.c.b16 %v310, %v308
  %v487 = vpack.c.b16 %v311, %v309
  %v488 = vpack.c.b16 %v314, %v312
  %v489 = vpack.c.b16 %v315, %v313
  %v490 = vpack.c.b16 %v318, %v316
  %v491 = vpack.c.b16 %v319, %v317
  %v492 = vpack.c.b16 %v322, %v320
  %v493 = vpack.c.b16 %v323, %v321
  %v494 = vpack.c.b16 %v326, %v324
  %v495 = vpack.c.b16 %v327, %v325
  %v496 = vpack.c.b16 %v330, %v328
  %v497 = vpack.c.b16 %v331, %v329
  %v498 = vpack.c.b16 %v334, %v332
  %v499 = vpack.c.b16 %v335, %v333
  %v500 = vpack.c.b16 %v338, %v336
  %v501 = vpack.c.b16 %v339, %v337
  %v502 = vpack.c.b16 %v342, %v340
  %v503 = vpack.c.b16 %v343, %v341
  %v504 = vpack.c.b16 %v346, %v344
  %v505 = vpack.c.b16 %v347, %v345
  %v506 = vpack.c.b16 %v350, %v348
  %v507 = vpack.c.b16 %v351, %v349
  %v508 = vpack.c.b16 %v354, %v352
  %v509 = vpack.c.b16 %v355, %v353
  %v510 = vpack.c.b16 %v358, %v356
  %v511 = vpack.c.b16 %v359, %v357
  %v512 = vpack.c.b16 %v362, %v360
  %v513 = vpack.c.b16 %v363, %v361
  %v514 = vpack.c.b16 %v366, %v364
  %v515 = vpack.c.b16 %v367, %v365
  %v516 = vpack.c.b16 %v370, %v368
  %v517 = vpack.c.b16 %v371, %v369
  %v518 = vpack.c.b16 %v374, %v372
  %v519 = vpack.c.b16 %v375, %v373
  %v520 = vpack.c.b16 %v378, %v376
  %v521 = vpack.c.b16 %v379, %v377
  %v522 = vpack.c.b16 %v382, %v380
  %v523 = vpack.c.b16 %v383, %v381
  %v524 = vpack.c.b16 %v386, %v384
  %v525 = vpack.c.b16 %v387, %v385
  %v526 = vpack.c.b16 %v390, %v388
  %v527 = vpack.c.b16 %v391, %v389
  %v528 = vpack.c.b16 %v394, %v392
  %v529 = vpack.c.b16 %v395, %v393
  %v530 = vpack.c.b16 %v398, %v396
  %v531 = vpack.c.b16 %v399, %v397
  %v532 = vpack.c.b16 %v402, %v400
  %v533 = vpack.c.b16 %v403, %v401
  %v534 = vpack.c.b16 %v406, %v404
  %v535 = vpack.c.b16 %v407, %v405
  %v536 = vpack.c.b16 %v410, %v408
  %v537 = vpack.c.b16 %v411, %v409
  %v538 = vpack.c.b16 %v414, %v412
  %v539 = vpack.c.b16 %v415, %v413
  %v540 = vpack.c.b16 %v418, %v416
  %v541 = vpack.c.b16 %v419, %v417
  %v542 = vpack.c.b16 %v422, %v420
  %v543 = vpack.c.b16 %v423, %v421
  %v544 = vpack.c.b16 %v426, %v424
  %v545 = vpack.c.b16 %v427, %v425
  %v546 = vpack.c.b16 %v430, %v428
  %v547 = vpack.c.b16 %v431, %v429
  %v548 = vpack.c.b16 %v434, %v432
  %v549 = vpack.c.b16 %v435, %v433
  %v550 = vpack.c.b16 %v438, %v436
  %v551 = vpack.c.b16 %v439, %v437
  %v552 = vpack.c.b16 %v442, %v440
  %v553 = vpack.c.b16 %v443, %v441
  %v554 = vpack.c.b16 %v446, %v444
  %v555 = vpack.c.b16 %v447, %v445
  %v556 = vpack.c.b16 %v450, %v448
  %v557 = vpack.c.b16 %v451, %v449
  %v558 = vpack.c.b16 %v454, %v452
  %v559 = vpack.c.b16 %v455, %v453
  %v560 = vpack.c.b16 %v458, %v456
  %v561 = vpack.c.b16 %v459, %v457
  %v562 = vpack.c.b16 %v462, %v460
  %v563 = vpack.c.b16 %v463, %v461
  %v564 = vpack.c.b16 %v466, %v464
  %v565 = vpack.c.b16 %v467, %v465
  %vm664 = vcmask 130048
  %v666 = vsel %vm664, %v167, 0
  %668 = vmatpush.bf16.msra.mxu0 %v482
  %669 = vmatpush.bf16.msra.mxu0 %v480
  %670 = vmatpush.bf16.msra.mxu0 %v478
  %671 = vmatpush.bf16.msra.mxu0 %v476
  %672 = vmatpush.bf16.msra.mxu0 %v474
  %673 = vmatpush.bf16.msra.mxu0 %v472
  %674 = vmatpush.bf16.msra.mxu0 %v470
  %675 = vmatpush.bf16.msra.mxu0 %v468
  %676 = vmatmul.bf16.gmra.mxu0 %v161
  %v677 = vpop.f32.mrf.mxu0
  %v678 = vadd.f32 %v135, %v677
  %v679 = vpop.f32.mrf.mxu0
  %v680 = vadd.f32 %v135, %v679
  %681 = vdwg.mxu0
  %682 = vmatpush.bf16.msra.mxu0 %v498
  %683 = vmatpush.bf16.msra.mxu0 %v496
  %684 = vmatpush.bf16.msra.mxu0 %v494
  %685 = vmatpush.bf16.msra.mxu0 %v492
  %686 = vmatpush.bf16.msra.mxu0 %v490
  %687 = vmatpush.bf16.msra.mxu0 %v488
  %688 = vmatpush.bf16.msra.mxu0 %v486
  %689 = vmatpush.bf16.msra.mxu0 %v484
  %690 = vmatmul.bf16.gmra.mxu0 %v162
  %v691 = vpop.f32.mrf.mxu0
  %v692 = vadd.f32 %v678, %v691
  %v693 = vpop.f32.mrf.mxu0
  %v694 = vadd.f32 %v680, %v693
  %695 = vdwg.mxu0
  %696 = vmatpush.bf16.msra.mxu0 %v514
  %697 = vmatpush.bf16.msra.mxu0 %v512
  %698 = vmatpush.bf16.msra.mxu0 %v510
  %699 = vmatpush.bf16.msra.mxu0 %v508
  %700 = vmatpush.bf16.msra.mxu0 %v506
  %701 = vmatpush.bf16.msra.mxu0 %v504
  %702 = vmatpush.bf16.msra.mxu0 %v502
  %703 = vmatpush.bf16.msra.mxu0 %v500
  %704 = vmatmul.bf16.gmra.mxu0 %v163
  %v705 = vpop.f32.mrf.mxu0
  %v706 = vadd.f32 %v692, %v705
  %v707 = vpop.f32.mrf.mxu0
  %v708 = vadd.f32 %v694, %v707
  %709 = vdwg.mxu0
  %710 = vmatpush.bf16.msra.mxu0 %v530
  %711 = vmatpush.bf16.msra.mxu0 %v528
  %712 = vmatpush.bf16.msra.mxu0 %v526
  %713 = vmatpush.bf16.msra.mxu0 %v524
  %714 = vmatpush.bf16.msra.mxu0 %v522
  %715 = vmatpush.bf16.msra.mxu0 %v520
  %716 = vmatpush.bf16.msra.mxu0 %v518
  %717 = vmatpush.bf16.msra.mxu0 %v516
  %718 = vmatmul.bf16.gmra.mxu0 %v164
  %v719 = vpop.f32.mrf.mxu0
  %v720 = vadd.f32 %v706, %v719
  %v721 = vpop.f32.mrf.mxu0
  %v722 = vadd.f32 %v708, %v721
  %723 = vdwg.mxu0
  %724 = vmatpush.bf16.msra.mxu0 %v546
  %725 = vmatpush.bf16.msra.mxu0 %v544
  %726 = vmatpush.bf16.msra.mxu0 %v542
  %727 = vmatpush.bf16.msra.mxu0 %v540
  %728 = vmatpush.bf16.msra.mxu0 %v538
  %729 = vmatpush.bf16.msra.mxu0 %v536
  %730 = vmatpush.bf16.msra.mxu0 %v534
  %731 = vmatpush.bf16.msra.mxu0 %v532
  %732 = vmatmul.bf16.gmra.mxu0 %v165
  %v733 = vpop.f32.mrf.mxu0
  %v734 = vadd.f32 %v720, %v733
  %v735 = vpop.f32.mrf.mxu0
  %v736 = vadd.f32 %v722, %v735
  %737 = vdwg.mxu0
  %738 = vmatpush.bf16.msra.mxu0 %v562
  %739 = vmatpush.bf16.msra.mxu0 %v560
  %740 = vmatpush.bf16.msra.mxu0 %v558
  %741 = vmatpush.bf16.msra.mxu0 %v556
  %742 = vmatpush.bf16.msra.mxu0 %v554
  %743 = vmatpush.bf16.msra.mxu0 %v552
  %744 = vmatpush.bf16.msra.mxu0 %v550
  %745 = vmatpush.bf16.msra.mxu0 %v548
  %746 = vmatmul.bf16.gmra.mxu0 %v166
  %v747 = vpop.f32.mrf.mxu0
  %v748 = vadd.f32 %v734, %v747
  %v749 = vpop.f32.mrf.mxu0
  %v750 = vadd.f32 %v736, %v749
  %751 = vdwg.mxu0
  %752 = vmatpush.bf16.msra.mxu0 0
  %753 = vmatpush.bf16.msra.mxu0 0
  %754 = vmatpush.bf16.msra.mxu0 0
  %755 = vmatpush.bf16.msra.mxu0 0
  %756 = vmatpush.bf16.msra.mxu0 0
  %757 = vmatpush.bf16.msra.mxu0 0
  %758 = vmatpush.bf16.msra.mxu0 0
  %759 = vmatpush.bf16.msra.mxu0 %v564
  %760 = vmatmul.bf16.gmra.mxu0 %v666
  %v761 = vpop.f32.mrf.mxu0
  %v762 = vadd.f32 %v748, %v761
  %v763 = vpop.f32.mrf.mxu0
  %v764 = vadd.f32 %v750, %v763
  %765 = vdwg.mxu0
  %766 = vmatpush.bf16.msra.mxu0 %v483
  %767 = vmatpush.bf16.msra.mxu0 %v481
  %768 = vmatpush.bf16.msra.mxu0 %v479
  %769 = vmatpush.bf16.msra.mxu0 %v477
  %770 = vmatpush.bf16.msra.mxu0 %v475
  %771 = vmatpush.bf16.msra.mxu0 %v473
  %772 = vmatpush.bf16.msra.mxu0 %v471
  %773 = vmatpush.bf16.msra.mxu0 %v469
  %774 = vmatmul.bf16.gmra.mxu0 %v161
  %v775 = vpop.f32.mrf.mxu0
  %v776 = vadd.f32 %v136, %v775
  %v777 = vpop.f32.mrf.mxu0
  %v778 = vadd.f32 %v136, %v777
  %779 = vdwg.mxu0
  %780 = vmatpush.bf16.msra.mxu0 %v499
  %781 = vmatpush.bf16.msra.mxu0 %v497
  %782 = vmatpush.bf16.msra.mxu0 %v495
  %783 = vmatpush.bf16.msra.mxu0 %v493
  %784 = vmatpush.bf16.msra.mxu0 %v491
  %785 = vmatpush.bf16.msra.mxu0 %v489
  %786 = vmatpush.bf16.msra.mxu0 %v487
  %787 = vmatpush.bf16.msra.mxu0 %v485
  %788 = vmatmul.bf16.gmra.mxu0 %v162
  %v789 = vpop.f32.mrf.mxu0
  %v790 = vadd.f32 %v776, %v789
  %v791 = vpop.f32.mrf.mxu0
  %v792 = vadd.f32 %v778, %v791
  %793 = vdwg.mxu0
  %794 = vmatpush.bf16.msra.mxu0 %v515
  %795 = vmatpush.bf16.msra.mxu0 %v513
  %796 = vmatpush.bf16.msra.mxu0 %v511
  %797 = vmatpush.bf16.msra.mxu0 %v509
  %798 = vmatpush.bf16.msra.mxu0 %v507
  %799 = vmatpush.bf16.msra.mxu0 %v505
  %800 = vmatpush.bf16.msra.mxu0 %v503
  %801 = vmatpush.bf16.msra.mxu0 %v501
  %802 = vmatmul.bf16.gmra.mxu0 %v163
  %v803 = vpop.f32.mrf.mxu0
  %v804 = vadd.f32 %v790, %v803
  %v805 = vpop.f32.mrf.mxu0
  %v806 = vadd.f32 %v792, %v805
  %807 = vdwg.mxu0
  %808 = vmatpush.bf16.msra.mxu0 %v531
  %809 = vmatpush.bf16.msra.mxu0 %v529
  %810 = vmatpush.bf16.msra.mxu0 %v527
  %811 = vmatpush.bf16.msra.mxu0 %v525
  %812 = vmatpush.bf16.msra.mxu0 %v523
  %813 = vmatpush.bf16.msra.mxu0 %v521
  %814 = vmatpush.bf16.msra.mxu0 %v519
  %815 = vmatpush.bf16.msra.mxu0 %v517
  %816 = vmatmul.bf16.gmra.mxu0 %v164
  %v817 = vpop.f32.mrf.mxu0
  %v818 = vadd.f32 %v804, %v817
  %v819 = vpop.f32.mrf.mxu0
  %v820 = vadd.f32 %v806, %v819
  %821 = vdwg.mxu0
  %822 = vmatpush.bf16.msra.mxu0 %v547
  %823 = vmatpush.bf16.msra.mxu0 %v545
  %824 = vmatpush.bf16.msra.mxu0 %v543
  %825 = vmatpush.bf16.msra.mxu0 %v541
  %826 = vmatpush.bf16.msra.mxu0 %v539
  %827 = vmatpush.bf16.msra.mxu0 %v537
  %828 = vmatpush.bf16.msra.mxu0 %v535
  %829 = vmatpush.bf16.msra.mxu0 %v533
  %830 = vmatmul.bf16.gmra.mxu0 %v165
  %v831 = vpop.f32.mrf.mxu0
  %v832 = vadd.f32 %v818, %v831
  %v833 = vpop.f32.mrf.mxu0
  %v834 = vadd.f32 %v820, %v833
  %835 = vdwg.mxu0
  %836 = vmatpush.bf16.msra.mxu0 %v563
  %837 = vmatpush.bf16.msra.mxu0 %v561
  %838 = vmatpush.bf16.msra.mxu0 %v559
  %839 = vmatpush.bf16.msra.mxu0 %v557
  %840 = vmatpush.bf16.msra.mxu0 %v555
  %841 = vmatpush.bf16.msra.mxu0 %v553
  %842 = vmatpush.bf16.msra.mxu0 %v551
  %843 = vmatpush.bf16.msra.mxu0 %v549
  %844 = vmatmul.bf16.gmra.mxu0 %v166
  %v845 = vpop.f32.mrf.mxu0
  %v846 = vadd.f32 %v832, %v845
  %v847 = vpop.f32.mrf.mxu0
  %v848 = vadd.f32 %v834, %v847
  %849 = vdwg.mxu0
  %850 = vmatpush.bf16.msra.mxu0 0
  %851 = vmatpush.bf16.msra.mxu0 0
  %852 = vmatpush.bf16.msra.mxu0 0
  %853 = vmatpush.bf16.msra.mxu0 0
  %854 = vmatpush.bf16.msra.mxu0 0
  %855 = vmatpush.bf16.msra.mxu0 0
  %856 = vmatpush.bf16.msra.mxu0 0
  %857 = vmatpush.bf16.msra.mxu0 %v565
  %858 = vmatmul.bf16.gmra.mxu0 %v666
  %v859 = vpop.f32.mrf.mxu0
  %v860 = vadd.f32 %v846, %v859
  %v861 = vpop.f32.mrf.mxu0
  %v862 = vadd.f32 %v848, %v861
  %863 = vdwg.mxu0
  %v864 = vpack.c.bf16 %v764, %v762
  %v865 = vpack.c.bf16 %v862, %v860
  %v866 = vunpack.c.l.bf16 %v864
  %v867 = vunpack.c.l.bf16 %v865
  %v868 = vunpack.c.h.bf16 %v864
  %v869 = vunpack.c.h.bf16 %v865
  %v870 = vtanh.pop %v866
  %v871 = vtanh.pop %v867
  %v872 = vtanh.pop %v868
  %v873 = vtanh.pop %v869
  %v874 = vpack.c.bf16 %v872, %v870
  %v875 = vpack.c.bf16 %v873, %v871
  %v876 = vld [vmem:[%s3] sm:$0xff]
  %v877 = vld [vmem:[%s3 + $0x8] sm:$0xff]
  %v878 = vld [vmem:[%s3 + $0x10] sm:$0xff]
  %v879 = vld [vmem:[%s3 + $0x18] sm:$0xff]
  %v880 = vld [vmem:[%s3 + $0x20] sm:$0xff]
  %v881 = vld [vmem:[%s3 + $0x28] sm:$0xff]
  %v882 = vld [vmem:[%s3 + $0x30] sm:$0xff]
  %v883 = vld [vmem:[%s3 + $0x38] sm:$0xff]
  %v884 = vld [vmem:[%s3 + $0x40] sm:$0xff]
  %v885 = vld [vmem:[%s3 + $0x48] sm:$0xff]
  %v886 = vld [vmem:[%s3 + $0x50] sm:$0xff]
  %v887 = vld [vmem:[%s3 + $0x58] sm:$0xff]
  %v888 = vld [vmem:[%s3 + $0x60] sm:$0xff]
  %v889 = vld [vmem:[%s3 + $0x68] sm:$0xff]
  %v890 = vld [vmem:[%s3 + $0x70] sm:$0xff]
  %v891 = vld [vmem:[%s3 + $0x78] sm:$0xff]
  %v892 = vld [vmem:[%s3 + $0x80] sm:$0xff]
  %v893 = vld [vmem:[%s3 + $0x88] sm:$0xff]
  %v894 = vld [vmem:[%s3 + $0x90] sm:$0xff]
  %v895 = vld [vmem:[%s3 + $0x98] sm:$0xff]
  %v896 = vld [vmem:[%s3 + $0xa0] sm:$0xff]
  %v897 = vld [vmem:[%s3 + $0xa8] sm:$0xff]
  %v898 = vld [vmem:[%s3 + $0xb0] sm:$0xff]
  %v899 = vld [vmem:[%s3 + $0xb8] sm:$0xff]
  %v900 = vld [vmem:[%s3 + $0xc0] sm:$0xff]
  %v901 = vld [vmem:[%s4] sm:$0x3]
  %v903 = vperm.slane %v901, 0
  %v904 = vperm.slane %v901, 1
  %v932 = vunpack.c.l.b16 %v876
  %v933 = vunpack.c.h.b16 %v876
  %v934 = vunpack.c.l.b16 %v877
  %v935 = vunpack.c.h.b16 %v877
  %v936 = vunpack.c.l.b16 %v878
  %v937 = vunpack.c.h.b16 %v878
  %v938 = vunpack.c.l.b16 %v879
  %v939 = vunpack.c.h.b16 %v879
  %v940 = vunpack.c.l.b16 %v880
  %v941 = vunpack.c.h.b16 %v880
  %v942 = vunpack.c.l.b16 %v881
  %v943 = vunpack.c.h.b16 %v881
  %v944 = vunpack.c.l.b16 %v882
  %v945 = vunpack.c.h.b16 %v882
  %v946 = vunpack.c.l.b16 %v883
  %v947 = vunpack.c.h.b16 %v883
  %v948 = vunpack.c.l.b16 %v884
  %v949 = vunpack.c.h.b16 %v884
  %v950 = vunpack.c.l.b16 %v885
  %v951 = vunpack.c.h.b16 %v885
  %v952 = vunpack.c.l.b16 %v886
  %v953 = vunpack.c.h.b16 %v886
  %v954 = vunpack.c.l.b16 %v887
  %v955 = vunpack.c.h.b16 %v887
  %v956 = vunpack.c.l.b16 %v888
  %v957 = vunpack.c.h.b16 %v888
  %v958 = vunpack.c.l.b16 %v889
  %v959 = vunpack.c.h.b16 %v889
  %v960 = vunpack.c.l.b16 %v890
  %v961 = vunpack.c.h.b16 %v890
  %v962 = vunpack.c.l.b16 %v891
  %v963 = vunpack.c.h.b16 %v891
  %v964 = vunpack.c.l.b16 %v892
  %v965 = vunpack.c.h.b16 %v892
  %v966 = vunpack.c.l.b16 %v893
  %v967 = vunpack.c.h.b16 %v893
  %v968 = vunpack.c.l.b16 %v894
  %v969 = vunpack.c.h.b16 %v894
  %v970 = vunpack.c.l.b16 %v895
  %v971 = vunpack.c.h.b16 %v895
  %v972 = vunpack.c.l.b16 %v896
  %v973 = vunpack.c.h.b16 %v896
  %v974 = vunpack.c.l.b16 %v897
  %v975 = vunpack.c.h.b16 %v897
  %v976 = vunpack.c.l.b16 %v898
  %v977 = vunpack.c.h.b16 %v898
  %v978 = vunpack.c.l.b16 %v899
  %v979 = vunpack.c.h.b16 %v899
  %v980 = vunpack.c.l.b16 %v900
  %v981 = vunpack.c.h.b16 %v900
  %v982 = vpack.c.b16 %v934, %v932
  %v983 = vpack.c.b16 %v935, %v933
  %v984 = vpack.c.b16 %v938, %v936
  %v985 = vpack.c.b16 %v939, %v937
  %v986 = vpack.c.b16 %v942, %v940
  %v987 = vpack.c.b16 %v943, %v941
  %v988 = vpack.c.b16 %v946, %v944
  %v989 = vpack.c.b16 %v947, %v945
  %v990 = vpack.c.b16 %v950, %v948
  %v991 = vpack.c.b16 %v951, %v949
  %v992 = vpack.c.b16 %v954, %v952
  %v993 = vpack.c.b16 %v955, %v953
  %v994 = vpack.c.b16 %v958, %v956
  %v995 = vpack.c.b16 %v959, %v957
  %v996 = vpack.c.b16 %v962, %v960
  %v997 = vpack.c.b16 %v963, %v961
  %v998 = vpack.c.b16 %v966, %v964
  %v999 = vpack.c.b16 %v967, %v965
  %v1000 = vpack.c.b16 %v970, %v968
  %v1001 = vpack.c.b16 %v971, %v969
  %v1002 = vpack.c.b16 %v974, %v972
  %v1003 = vpack.c.b16 %v975, %v973
  %v1004 = vpack.c.b16 %v978, %v976
  %v1005 = vpack.c.b16 %v979, %v977
  %v1006 = vpack.c.b16 %v980, %v980
  %v1007 = vpack.c.b16 %v981, %v981
  %vm1032 = vcmask 588800
  %v1034 = vsel %vm1032, %v875, 0
  %vm1036 = vcmask 1043456
  %v1038 = vsel %vm1036, %v1006, 0
  %v1041 = vsel %vm1036, %v1007, 0
  %1043 = vmatpush.bf16.msra.mxu0 %v996
  %1044 = vmatpush.bf16.msra.mxu0 %v994
  %1045 = vmatpush.bf16.msra.mxu0 %v992
  %1046 = vmatpush.bf16.msra.mxu0 %v990
  %1047 = vmatpush.bf16.msra.mxu0 %v988
  %1048 = vmatpush.bf16.msra.mxu0 %v986
  %1049 = vmatpush.bf16.msra.mxu0 %v984
  %1050 = vmatpush.bf16.msra.mxu0 %v982
  %1051 = vmatmul.bf16.gmra.mxu0 %v874
  %v1052 = vpop.f32.mrf.mxu0
  %v1053 = vadd.f32 %v903, %v1052
  %v1054 = vpop.f32.mrf.mxu0
  %v1055 = vadd.f32 %v903, %v1054
  %1056 = vdwg.mxu0
  %1057 = vmatpush.bf16.msra.mxu0 0
  %1058 = vmatpush.bf16.msra.mxu0 0
  %1059 = vmatpush.bf16.msra.mxu0 0
  %1060 = vmatpush.bf16.msra.mxu0 %v1038
  %1061 = vmatpush.bf16.msra.mxu0 %v1004
  %1062 = vmatpush.bf16.msra.mxu0 %v1002
  %1063 = vmatpush.bf16.msra.mxu0 %v1000
  %1064 = vmatpush.bf16.msra.mxu0 %v998
  %1065 = vmatmul.bf16.gmra.mxu0 %v1034
  %v1066 = vpop.f32.mrf.mxu0
  %v1067 = vadd.f32 %v1053, %v1066
  %v1068 = vpop.f32.mrf.mxu0
  %v1069 = vadd.f32 %v1055, %v1068
  %1070 = vdwg.mxu0
  %1071 = vmatpush.bf16.msra.mxu0 %v997
  %1072 = vmatpush.bf16.msra.mxu0 %v995
  %1073 = vmatpush.bf16.msra.mxu0 %v993
  %1074 = vmatpush.bf16.msra.mxu0 %v991
  %1075 = vmatpush.bf16.msra.mxu0 %v989
  %1076 = vmatpush.bf16.msra.mxu0 %v987
  %1077 = vmatpush.bf16.msra.mxu0 %v985
  %1078 = vmatpush.bf16.msra.mxu0 %v983
  %1079 = vmatmul.bf16.gmra.mxu0 %v874
  %v1080 = vpop.f32.mrf.mxu0
  %v1081 = vadd.f32 %v904, %v1080
  %v1082 = vpop.f32.mrf.mxu0
  %v1083 = vadd.f32 %v904, %v1082
  %1084 = vdwg.mxu0
  %1085 = vmatpush.bf16.msra.mxu0 0
  %1086 = vmatpush.bf16.msra.mxu0 0
  %1087 = vmatpush.bf16.msra.mxu0 0
  %1088 = vmatpush.bf16.msra.mxu0 %v1041
  %1089 = vmatpush.bf16.msra.mxu0 %v1005
  %1090 = vmatpush.bf16.msra.mxu0 %v1003
  %1091 = vmatpush.bf16.msra.mxu0 %v1001
  %1092 = vmatpush.bf16.msra.mxu0 %v999
  %1093 = vmatmul.bf16.gmra.mxu0 %v1034
  %v1094 = vpop.f32.mrf.mxu0
  %v1095 = vadd.f32 %v1081, %v1094
  %v1096 = vpop.f32.mrf.mxu0
  %v1097 = vadd.f32 %v1083, %v1096
  %1098 = vdwg.mxu0
  %v1099 = vpack.c.bf16 %v1069, %v1067
  %v1100 = vpack.c.bf16 %v1097, %v1095
  %v1101 = vunpack.c.l.bf16 %v1099
  %v1102 = vunpack.c.l.bf16 %v1100
  %v1103 = vunpack.c.h.bf16 %v1099
  %v1104 = vunpack.c.h.bf16 %v1100
  %v1105 = vtanh.pop %v1101
  %v1106 = vtanh.pop %v1102
  %v1107 = vtanh.pop %v1103
  %v1108 = vtanh.pop %v1104
  %v1109 = vpack.c.bf16 %v1107, %v1105
  %v1110 = vpack.c.bf16 %v1108, %v1106
  %v1111 = vld [vmem:[%s5] sm:$0xff]
  %v1112 = vld [vmem:[%s5 + $0x8] sm:$0xff]
  %v1113 = vld [vmem:[%s5 + $0x10] sm:$0xff]
  %v1114 = vld [vmem:[%s5 + $0x18] sm:$0xff]
  %v1115 = vld [vmem:[%s5 + $0x20] sm:$0xff]
  %v1116 = vld [vmem:[%s5 + $0x28] sm:$0xff]
  %v1117 = vld [vmem:[%s5 + $0x30] sm:$0xff]
  %v1118 = vld [vmem:[%s5 + $0x38] sm:$0xff]
  %v1119 = vld [vmem:[%s5 + $0x40] sm:$0xff]
  %v1120 = vld [vmem:[%s5 + $0x48] sm:$0xff]
  %v1121 = vld [vmem:[%s5 + $0x50] sm:$0xff]
  %v1122 = vld [vmem:[%s5 + $0x58] sm:$0xff]
  %v1123 = vld [vmem:[%s5 + $0x60] sm:$0xff]
  %v1124 = vld [vmem:[%s5 + $0x68] sm:$0xff]
  %v1125 = vld [vmem:[%s5 + $0x70] sm:$0xff]
  %v1126 = vld [vmem:[%s5 + $0x78] sm:$0xff]
  %v1127 = vld [vmem:[%s5 + $0x80] sm:$0xff]
  %v1128 = vld [vmem:[%s5 + $0x88] sm:$0xff]
  %v1129 = vld [vmem:[%s5 + $0x90] sm:$0xff]
  %v1130 = vld [vmem:[%s5 + $0x98] sm:$0xff]
  %v1131 = vld [vmem:[%s5 + $0xa0] sm:$0xff]
  %v1132 = vld [vmem:[%s5 + $0xa8] sm:$0xff]
  %v1133 = vld [vmem:[%s5 + $0xb0] sm:$0xff]
  %v1134 = vld [vmem:[%s5 + $0xb8] sm:$0xff]
  %v1135 = vld [vmem:[%s5 + $0xc0] sm:$0xff]
  %v1136 = vld [vmem:[%s6] sm:$0x3]
  %v1138 = vperm.slane %v1136, 0
  %v1139 = vperm.slane %v1136, 1
  %v1167 = vunpack.c.l.b16 %v1111
  %v1168 = vunpack.c.h.b16 %v1111
  %v1169 = vunpack.c.l.b16 %v1112
  %v1170 = vunpack.c.h.b16 %v1112
  %v1171 = vunpack.c.l.b16 %v1113
  %v1172 = vunpack.c.h.b16 %v1113
  %v1173 = vunpack.c.l.b16 %v1114
  %v1174 = vunpack.c.h.b16 %v1114
  %v1175 = vunpack.c.l.b16 %v1115
  %v1176 = vunpack.c.h.b16 %v1115
  %v1177 = vunpack.c.l.b16 %v1116
  %v1178 = vunpack.c.h.b16 %v1116
  %v1179 = vunpack.c.l.b16 %v1117
  %v1180 = vunpack.c.h.b16 %v1117
  %v1181 = vunpack.c.l.b16 %v1118
  %v1182 = vunpack.c.h.b16 %v1118
  %v1183 = vunpack.c.l.b16 %v1119
  %v1184 = vunpack.c.h.b16 %v1119
  %v1185 = vunpack.c.l.b16 %v1120
  %v1186 = vunpack.c.h.b16 %v1120
  %v1187 = vunpack.c.l.b16 %v1121
  %v1188 = vunpack.c.h.b16 %v1121
  %v1189 = vunpack.c.l.b16 %v1122
  %v1190 = vunpack.c.h.b16 %v1122
  %v1191 = vunpack.c.l.b16 %v1123
  %v1192 = vunpack.c.h.b16 %v1123
  %v1193 = vunpack.c.l.b16 %v1124
  %v1194 = vunpack.c.h.b16 %v1124
  %v1195 = vunpack.c.l.b16 %v1125
  %v1196 = vunpack.c.h.b16 %v1125
  %v1197 = vunpack.c.l.b16 %v1126
  %v1198 = vunpack.c.h.b16 %v1126
  %v1199 = vunpack.c.l.b16 %v1127
  %v1200 = vunpack.c.h.b16 %v1127
  %v1201 = vunpack.c.l.b16 %v1128
  %v1202 = vunpack.c.h.b16 %v1128
  %v1203 = vunpack.c.l.b16 %v1129
  %v1204 = vunpack.c.h.b16 %v1129
  %v1205 = vunpack.c.l.b16 %v1130
  %v1206 = vunpack.c.h.b16 %v1130
  %v1207 = vunpack.c.l.b16 %v1131
  %v1208 = vunpack.c.h.b16 %v1131
  %v1209 = vunpack.c.l.b16 %v1132
  %v1210 = vunpack.c.h.b16 %v1132
  %v1211 = vunpack.c.l.b16 %v1133
  %v1212 = vunpack.c.h.b16 %v1133
  %v1213 = vunpack.c.l.b16 %v1134
  %v1214 = vunpack.c.h.b16 %v1134
  %v1215 = vunpack.c.l.b16 %v1135
  %v1216 = vunpack.c.h.b16 %v1135
  %v1217 = vpack.c.b16 %v1169, %v1167
  %v1218 = vpack.c.b16 %v1170, %v1168
  %v1219 = vpack.c.b16 %v1173, %v1171
  %v1220 = vpack.c.b16 %v1174, %v1172
  %v1221 = vpack.c.b16 %v1177, %v1175
  %v1222 = vpack.c.b16 %v1178, %v1176
  %v1223 = vpack.c.b16 %v1181, %v1179
  %v1224 = vpack.c.b16 %v1182, %v1180
  %v1225 = vpack.c.b16 %v1185, %v1183
  %v1226 = vpack.c.b16 %v1186, %v1184
  %v1227 = vpack.c.b16 %v1189, %v1187
  %v1228 = vpack.c.b16 %v1190, %v1188
  %v1229 = vpack.c.b16 %v1193, %v1191
  %v1230 = vpack.c.b16 %v1194, %v1192
  %v1231 = vpack.c.b16 %v1197, %v1195
  %v1232 = vpack.c.b16 %v1198, %v1196
  %v1233 = vpack.c.b16 %v1201, %v1199
  %v1234 = vpack.c.b16 %v1202, %v1200
  %v1235 = vpack.c.b16 %v1205, %v1203
  %v1236 = vpack.c.b16 %v1206, %v1204
  %v1237 = vpack.c.b16 %v1209, %v1207
  %v1238 = vpack.c.b16 %v1210, %v1208
  %v1239 = vpack.c.b16 %v1213, %v1211
  %v1240 = vpack.c.b16 %v1214, %v1212
  %v1241 = vpack.c.b16 %v1215, %v1215
  %v1242 = vpack.c.b16 %v1216, %v1216
  %v1268 = vsel %vm1032, %v1110, 0
  %v1271 = vsel %vm1036, %v1241, 0
  %v1274 = vsel %vm1036, %v1242, 0
  %1276 = vmatpush.bf16.msra.mxu0 %v1231
  %1277 = vmatpush.bf16.msra.mxu0 %v1229
  %1278 = vmatpush.bf16.msra.mxu0 %v1227
  %1279 = vmatpush.bf16.msra.mxu0 %v1225
  %1280 = vmatpush.bf16.msra.mxu0 %v1223
  %1281 = vmatpush.bf16.msra.mxu0 %v1221
  %1282 = vmatpush.bf16.msra.mxu0 %v1219
  %1283 = vmatpush.bf16.msra.mxu0 %v1217
  %1284 = vmatmul.bf16.gmra.mxu0 %v1109
  %v1285 = vpop.f32.mrf.mxu0
  %v1286 = vadd.f32 %v1138, %v1285
  %v1287 = vpop.f32.mrf.mxu0
  %v1288 = vadd.f32 %v1138, %v1287
  %1289 = vdwg.mxu0
  %1290 = vmatpush.bf16.msra.mxu0 0
  %1291 = vmatpush.bf16.msra.mxu0 0
  %1292 = vmatpush.bf16.msra.mxu0 0
  %1293 = vmatpush.bf16.msra.mxu0 %v1271
  %1294 = vmatpush.bf16.msra.mxu0 %v1239
  %1295 = vmatpush.bf16.msra.mxu0 %v1237
  %1296 = vmatpush.bf16.msra.mxu0 %v1235
  %1297 = vmatpush.bf16.msra.mxu0 %v1233
  %1298 = vmatmul.bf16.gmra.mxu0 %v1268
  %v1299 = vpop.f32.mrf.mxu0
  %v1300 = vadd.f32 %v1286, %v1299
  %v1301 = vpop.f32.mrf.mxu0
  %v1302 = vadd.f32 %v1288, %v1301
  %1303 = vdwg.mxu0
  %1304 = vmatpush.bf16.msra.mxu0 %v1232
  %1305 = vmatpush.bf16.msra.mxu0 %v1230
  %1306 = vmatpush.bf16.msra.mxu0 %v1228
  %1307 = vmatpush.bf16.msra.mxu0 %v1226
  %1308 = vmatpush.bf16.msra.mxu0 %v1224
  %1309 = vmatpush.bf16.msra.mxu0 %v1222
  %1310 = vmatpush.bf16.msra.mxu0 %v1220
  %1311 = vmatpush.bf16.msra.mxu0 %v1218
  %1312 = vmatmul.bf16.gmra.mxu0 %v1109
  %v1313 = vpop.f32.mrf.mxu0
  %v1314 = vadd.f32 %v1139, %v1313
  %v1315 = vpop.f32.mrf.mxu0
  %v1316 = vadd.f32 %v1139, %v1315
  %1317 = vdwg.mxu0
  %1318 = vmatpush.bf16.msra.mxu0 0
  %1319 = vmatpush.bf16.msra.mxu0 0
  %1320 = vmatpush.bf16.msra.mxu0 0
  %1321 = vmatpush.bf16.msra.mxu0 %v1274
  %1322 = vmatpush.bf16.msra.mxu0 %v1240
  %1323 = vmatpush.bf16.msra.mxu0 %v1238
  %1324 = vmatpush.bf16.msra.mxu0 %v1236
  %1325 = vmatpush.bf16.msra.mxu0 %v1234
  %1326 = vmatmul.bf16.gmra.mxu0 %v1268
  %v1327 = vpop.f32.mrf.mxu0
  %v1328 = vadd.f32 %v1314, %v1327
  %v1329 = vpop.f32.mrf.mxu0
  %v1330 = vadd.f32 %v1316, %v1329
  %1331 = vdwg.mxu0
  %1332 = vst [vmem:[%s7] sm:$0xff] %v1300
  %1333 = vst [vmem:[%s7 + $0x8] sm:$0xff] %v1328
  %1334 = vst [vmem:[%s7 + $0x10] sm:$0xff] %v1302
  %1335 = vst [vmem:[%s7 + $0x18] sm:$0xff] %v1330
  // Predicated region
  $region30: #{vae2_forward.2} parent=0 // pred_check
    _
  $region31: #{vae2_forward.2} parent=0 // pred_check_branch
    %1337 = sbr.rel (0) target = $region33
  $region32: #{vae2_forward.2} parent=0 // pred_region
    _
  $region33: #{vae2_forward.2} parent=0 // pred_fallthru
    _
  // Predicated region
  $region34: #{vae2_forward.2} parent=0 // pred_check
    _
  $region35: #{vae2_forward.2} parent=0 // pred_check_branch
    %1339 = sbr.rel (0) target = $region37
  $region36: #{vae2_forward.2} parent=0 // pred_region
    _
  $region37: #{vae2_forward.2} parent=0 // pred_fallthru
    _

// kernel: vae2_forward.3
$region0: #{vae2_forward.3}
  #allocation0 [shape = 'u32[]', space=smem, size = 0x4, offset = 0x4, fixed_abs, tag = 'smem constant byte address 0x4 - core index']
  #allocation1 [shape = 'u32[72,128]{1,0:T(1,128)}', space=vmem, size = 0x9000, scoped, tag = 'internal scratch']
  %s0 = inlined_call_operand.vmem [shape: f32[16,256], index: 0, kind: input, shape index: {}]
  %s1 = inlined_call_operand.vmem [shape: f32[16,128], index: 1, kind: input, shape index: {}]
  %s2 = inlined_call_operand.vmem [shape: f32[16,128], index: 2, kind: input, shape index: {}]
  %s3 = inlined_call_operand.vmem [shape: bf16[128,384], index: 3, kind: input, shape index: {}]
  %s4 = inlined_call_operand.vmem [shape: f32[1,384], index: 4, kind: input, shape index: {}]
  %s5 = inlined_call_operand.vmem [shape: bf16[128,100], index: 5, kind: input, shape index: {}]
  %s6 = inlined_call_operand.vmem [shape: f32[1,100], index: 6, kind: input, shape index: {}]
  %s7 = inlined_call_operand.vmem [shape: bf16[100,256], index: 7, kind: input, shape index: {}]
  %s8 = inlined_call_operand.vmem [shape: f32[1,256], index: 8, kind: input, shape index: {}]
  %s9 = inlined_call_operand.vmem [shape: bf16[128,100], index: 9, kind: input, shape index: {}]
  %s10 = inlined_call_operand.vmem [shape: f32[1,100], index: 10, kind: input, shape index: {}]
  %s11 = inlined_call_operand.vmem [shape: bf16[100,100], index: 11, kind: input, shape index: {}]
  %s12 = inlined_call_operand.vmem [shape: f32[1,100], index: 12, kind: input, shape index: {}]
  %s13 = inlined_call_operand.vmem [shape: bf16[100,256], index: 13, kind: input, shape index: {}]
  %s14 = inlined_call_operand.vmem [shape: f32[1,256], index: 14, kind: input, shape index: {}]
  %s15 = inlined_call_operand.vmem [shape: bf16[256,200], index: 15, kind: input, shape index: {}]
  %s16 = inlined_call_operand.vmem [shape: f32[1,200], index: 16, kind: input, shape index: {}]
  %s17 = inlined_call_operand.vmem [shape: bf16[200,896], index: 17, kind: input, shape index: {}]
  %s18 = inlined_call_operand.vmem [shape: f32[1,896], index: 18, kind: input, shape index: {}]
  %s19 = inlined_call_operand.vmem [shape: bf16[16,896], index: 19, kind: output, shape index: {0}]
  %s20 = inlined_call_operand.vmem [shape: bf16[16,256], index: 20, kind: output, shape index: {1}]
  %s21 = inlined_call_operand.vmem [shape: bf16[16,256], index: 21, kind: output, shape index: {2}]
  %22 = xla_tuple %s19, %s20, %s21
  %s23 = sld [smem:[#allocation0]]
  $region102: #{vae2_forward.3} parent=0
    _
  %s25 = ssub.s32 1, %s23
  %s26 = scalar_select 0, %s25, %s23
  // Predicated region
  $region2: #{vae2_forward.3} parent=0 // pred_check
    _
  $region3: #{vae2_forward.3} parent=0 // pred_check_branch
    %28 = sbr.rel (0) target = $region5
  $region4: #{vae2_forward.3} parent=0 // pred_region
    _
  $region5: #{vae2_forward.3} parent=0 // pred_fallthru
    _
  // Predicated region
  $region6: #{vae2_forward.3} parent=0 // pred_check
    _
  $region7: #{vae2_forward.3} parent=0 // pred_check_branch
    %30 = sbr.rel (0) target = $region9
  $region8: #{vae2_forward.3} parent=0 // pred_region
    _
  $region9: #{vae2_forward.3} parent=0 // pred_fallthru
    _
  // Predicated region
  $region10: #{vae2_forward.3} parent=0 // pred_check
    _
  $region11: #{vae2_forward.3} parent=0 // pred_check_branch
    %32 = sbr.rel (0) target = $region13
  $region12: #{vae2_forward.3} parent=0 // pred_region
    _
  $region13: #{vae2_forward.3} parent=0 // pred_fallthru
    _
  // Predicated region
  $region14: #{vae2_forward.3} parent=0 // pred_check
    _
  $region15: #{vae2_forward.3} parent=0 // pred_check_branch
    %34 = sbr.rel (0) target = $region17
  $region16: #{vae2_forward.3} parent=0 // pred_region
    _
  $region17: #{vae2_forward.3} parent=0 // pred_fallthru
    _
  // Predicated region
  $region18: #{vae2_forward.3} parent=0 // pred_check
    _
  $region19: #{vae2_forward.3} parent=0 // pred_check_branch
    %36 = sbr.rel (0) target = $region21
  $region20: #{vae2_forward.3} parent=0 // pred_region
    _
  $region21: #{vae2_forward.3} parent=0 // pred_fallthru
    _
  // Predicated region
  $region22: #{vae2_forward.3} parent=0 // pred_check
    _
  $region23: #{vae2_forward.3} parent=0 // pred_check_branch
    %38 = sbr.rel (0) target = $region25
  $region24: #{vae2_forward.3} parent=0 // pred_region
    _
  $region25: #{vae2_forward.3} parent=0 // pred_fallthru
    _
  // Predicated region
  $region26: #{vae2_forward.3} parent=0 // pred_check
    _
  $region27: #{vae2_forward.3} parent=0 // pred_check_branch
    %40 = sbr.rel (0) target = $region29
  $region28: #{vae2_forward.3} parent=0 // pred_region
    _
  $region29: #{vae2_forward.3} parent=0 // pred_fallthru
    _
  // Predicated region
  $region30: #{vae2_forward.3} parent=0 // pred_check
    _
  $region31: #{vae2_forward.3} parent=0 // pred_check_branch
    %42 = sbr.rel (0) target = $region33
  $region32: #{vae2_forward.3} parent=0 // pred_region
    _
  $region33: #{vae2_forward.3} parent=0 // pred_fallthru
    _
  // Predicated region
  $region34: #{vae2_forward.3} parent=0 // pred_check
    _
  $region35: #{vae2_forward.3} parent=0 // pred_check_branch
    %44 = sbr.rel (0) target = $region37
  $region36: #{vae2_forward.3} parent=0 // pred_region
    _
  $region37: #{vae2_forward.3} parent=0 // pred_fallthru
    _
  // Predicated region
  $region38: #{vae2_forward.3} parent=0 // pred_check
    _
  $region39: #{vae2_forward.3} parent=0 // pred_check_branch
    %46 = sbr.rel (0) target = $region41
  $region40: #{vae2_forward.3} parent=0 // pred_region
    _
  $region41: #{vae2_forward.3} parent=0 // pred_fallthru
    _
  // Predicated region
  $region42: #{vae2_forward.3} parent=0 // pred_check
    _
  $region43: #{vae2_forward.3} parent=0 // pred_check_branch
    %48 = sbr.rel (0) target = $region45
  $region44: #{vae2_forward.3} parent=0 // pred_region
    _
  $region45: #{vae2_forward.3} parent=0 // pred_fallthru
    _
  // Predicated region
  $region46: #{vae2_forward.3} parent=0 // pred_check
    _
  $region47: #{vae2_forward.3} parent=0 // pred_check_branch
    %50 = sbr.rel (0) target = $region49
  $region48: #{vae2_forward.3} parent=0 // pred_region
    _
  $region49: #{vae2_forward.3} parent=0 // pred_fallthru
    _
  // Predicated region
  $region50: #{vae2_forward.3} parent=0 // pred_check
    _
  $region51: #{vae2_forward.3} parent=0 // pred_check_branch
    %52 = sbr.rel (0) target = $region53
  $region52: #{vae2_forward.3} parent=0 // pred_region
    _
  $region53: #{vae2_forward.3} parent=0 // pred_fallthru
    _
  // Predicated region
  $region54: #{vae2_forward.3} parent=0 // pred_check
    _
  $region55: #{vae2_forward.3} parent=0 // pred_check_branch
    %54 = sbr.rel (0) target = $region57
  $region56: #{vae2_forward.3} parent=0 // pred_region
    _
  $region57: #{vae2_forward.3} parent=0 // pred_fallthru
    _
  // Predicated region
  $region58: #{vae2_forward.3} parent=0 // pred_check
    _
  $region59: #{vae2_forward.3} parent=0 // pred_check_branch
    %56 = sbr.rel (0) target = $region61
  $region60: #{vae2_forward.3} parent=0 // pred_region
    _
  $region61: #{vae2_forward.3} parent=0 // pred_fallthru
    _
  // Predicated region
  $region62: #{vae2_forward.3} parent=0 // pred_check
    _
  $region63: #{vae2_forward.3} parent=0 // pred_check_branch
    %58 = sbr.rel (0) target = $region65
  $region64: #{vae2_forward.3} parent=0 // pred_region
    _
  $region65: #{vae2_forward.3} parent=0 // pred_fallthru
    _
  // Predicated region
  $region66: #{vae2_forward.3} parent=0 // pred_check
    _
  $region67: #{vae2_forward.3} parent=0 // pred_check_branch
    %60 = sbr.rel (0) target = $region69
  $region68: #{vae2_forward.3} parent=0 // pred_region
    _
  $region69: #{vae2_forward.3} parent=0 // pred_fallthru
    _
  // Predicated region
  $region70: #{vae2_forward.3} parent=0 // pred_check
    _
  $region71: #{vae2_forward.3} parent=0 // pred_check_branch
    %62 = sbr.rel (0) target = $region73
  $region72: #{vae2_forward.3} parent=0 // pred_region
    _
  $region73: #{vae2_forward.3} parent=0 // pred_fallthru
    _
  // Predicated region
  $region74: #{vae2_forward.3} parent=0 // pred_check
    _
  $region75: #{vae2_forward.3} parent=0 // pred_check_branch
    %64 = sbr.rel (0) target = $region77
  $region76: #{vae2_forward.3} parent=0 // pred_region
    _
  $region77: #{vae2_forward.3} parent=0 // pred_fallthru
    _
  %v66 = vld [vmem:[%s0] sm:$0xff]
  %v67 = vld [vmem:[%s0 + $0x8] sm:$0xff]
  %v68 = vld [vmem:[%s0 + $0x10] sm:$0xff]
  %v69 = vld [vmem:[%s0 + $0x18] sm:$0xff]
  %v70 = vmul.f32 %v67, 1.442695
  %v71 = vpow.pop %v70
  %v72 = vmul.f32 %v69, 1.442695
  %v73 = vpow.pop %v72
  %v74 = vld [vmem:[%s1] sm:$0xff]
  %v75 = vld [vmem:[%s1 + $0x8] sm:$0xff]
  %v76 = vmul.f32 %v71, %v74
  %v77 = vmul.f32 %v73, %v75
  %v78 = vadd.f32 %v66, %v76
  %v79 = vadd.f32 %v68, %v77
  %v80 = vpack.c.bf16 %v79, %v78
  %v81 = vld [vmem:[%s3] sm:$0xff]
  %v82 = vld [vmem:[%s3 + $0x8] sm:$0xf]
  %v83 = vld [vmem:[%s3 + $0xc] sm:$0xff]
  %v84 = vld [vmem:[%s3 + $0x14] sm:$0xf]
  %v85 = vld [vmem:[%s3 + $0x18] sm:$0xff]
  %v86 = vld [vmem:[%s3 + $0x20] sm:$0xf]
  %v87 = vld [vmem:[%s3 + $0x24] sm:$0xff]
  %v88 = vld [vmem:[%s3 + $0x2c] sm:$0xf]
  %v89 = vld [vmem:[%s3 + $0x30] sm:$0xff]
  %v90 = vld [vmem:[%s3 + $0x38] sm:$0xf]
  %v91 = vld [vmem:[%s3 + $0x3c] sm:$0xff]
  %v92 = vld [vmem:[%s3 + $0x44] sm:$0xf]
  %v93 = vld [vmem:[%s3 + $0x48] sm:$0xff]
  %v94 = vld [vmem:[%s3 + $0x50] sm:$0xf]
  %v95 = vld [vmem:[%s3 + $0x54] sm:$0xff]
  %v96 = vld [vmem:[%s3 + $0x5c] sm:$0xf]
  %v97 = vld [vmem:[%s3 + $0x60] sm:$0xff]
  %v98 = vld [vmem:[%s3 + $0x68] sm:$0xf]
  %v99 = vld [vmem:[%s3 + $0x6c] sm:$0xff]
  %v100 = vld [vmem:[%s3 + $0x74] sm:$0xf]
  %v101 = vld [vmem:[%s3 + $0x78] sm:$0xff]
  %v102 = vld [vmem:[%s3 + $0x80] sm:$0xf]
  %v103 = vld [vmem:[%s3 + $0x84] sm:$0xff]
  %v104 = vld [vmem:[%s3 + $0x8c] sm:$0xf]
  %v105 = vld [vmem:[%s3 + $0x90] sm:$0xff]
  %v106 = vld [vmem:[%s3 + $0x98] sm:$0xf]
  %v107 = vld [vmem:[%s3 + $0x9c] sm:$0xff]
  %v108 = vld [vmem:[%s3 + $0xa4] sm:$0xf]
  %v109 = vld [vmem:[%s3 + $0xa8] sm:$0xff]
  %v110 = vld [vmem:[%s3 + $0xb0] sm:$0xf]
  %v111 = vld [vmem:[%s3 + $0xb4] sm:$0xff]
  %v112 = vld [vmem:[%s3 + $0xbc] sm:$0xf]
  %v113 = vld [vmem:[%s4] sm:$0x7]
  %v115 = vperm.slane %v113, 0
  %v116 = vperm.slane %v113, 1
  %v117 = vperm.slane %v113, 2
  %v153 = vunpack.c.l.b16 %v81
  %v154 = vunpack.c.h.b16 %v81
  %v155 = vunpack.c.l.b16 %v82
  %v156 = vunpack.c.l.b16 %v83
  %v157 = vunpack.c.h.b16 %v83
  %v158 = vunpack.c.l.b16 %v84
  %v159 = vunpack.c.l.b16 %v85
  %v160 = vunpack.c.h.b16 %v85
  %v161 = vunpack.c.l.b16 %v86
  %v162 = vunpack.c.l.b16 %v87
  %v163 = vunpack.c.h.b16 %v87
  %v164 = vunpack.c.l.b16 %v88
  %v165 = vunpack.c.l.b16 %v89
  %v166 = vunpack.c.h.b16 %v89
  %v167 = vunpack.c.l.b16 %v90
  %v168 = vunpack.c.l.b16 %v91
  %v169 = vunpack.c.h.b16 %v91
  %v170 = vunpack.c.l.b16 %v92
  %v171 = vunpack.c.l.b16 %v93
  %v172 = vunpack.c.h.b16 %v93
  %v173 = vunpack.c.l.b16 %v94
  %v174 = vunpack.c.l.b16 %v95
  %v175 = vunpack.c.h.b16 %v95
  %v176 = vunpack.c.l.b16 %v96
  %v177 = vunpack.c.l.b16 %v97
  %v178 = vunpack.c.h.b16 %v97
  %v179 = vunpack.c.l.b16 %v98
  %v180 = vunpack.c.l.b16 %v99
  %v181 = vunpack.c.h.b16 %v99
  %v182 = vunpack.c.l.b16 %v100
  %v183 = vunpack.c.l.b16 %v101
  %v184 = vunpack.c.h.b16 %v101
  %v185 = vunpack.c.l.b16 %v102
  %v186 = vunpack.c.l.b16 %v103
  %v187 = vunpack.c.h.b16 %v103
  %v188 = vunpack.c.l.b16 %v104
  %v189 = vunpack.c.l.b16 %v105
  %v190 = vunpack.c.h.b16 %v105
  %v191 = vunpack.c.l.b16 %v106
  %v192 = vunpack.c.l.b16 %v107
  %v193 = vunpack.c.h.b16 %v107
  %v194 = vunpack.c.l.b16 %v108
  %v195 = vunpack.c.l.b16 %v109
  %v196 = vunpack.c.h.b16 %v109
  %v197 = vunpack.c.l.b16 %v110
  %v198 = vunpack.c.l.b16 %v111
  %v199 = vunpack.c.h.b16 %v111
  %v200 = vunpack.c.l.b16 %v112
  %v201 = vpack.c.b16 %v156, %v153
  %v202 = vpack.c.b16 %v157, %v154
  %v203 = vpack.c.b16 %v158, %v155
  %v204 = vpack.c.b16 %v162, %v159
  %v205 = vpack.c.b16 %v163, %v160
  %v206 = vpack.c.b16 %v164, %v161
  %v207 = vpack.c.b16 %v168, %v165
  %v208 = vpack.c.b16 %v169, %v166
  %v209 = vpack.c.b16 %v170, %v167
  %v210 = vpack.c.b16 %v174, %v171
  %v211 = vpack.c.b16 %v175, %v172
  %v212 = vpack.c.b16 %v176, %v173
  %v213 = vpack.c.b16 %v180, %v177
  %v214 = vpack.c.b16 %v181, %v178
  %v215 = vpack.c.b16 %v182, %v179
  %v216 = vpack.c.b16 %v186, %v183
  %v217 = vpack.c.b16 %v187, %v184
  %v218 = vpack.c.b16 %v188, %v185
  %v219 = vpack.c.b16 %v192, %v189
  %v220 = vpack.c.b16 %v193, %v190
  %v221 = vpack.c.b16 %v194, %v191
  %v222 = vpack.c.b16 %v198, %v195
  %v223 = vpack.c.b16 %v199, %v196
  %v224 = vpack.c.b16 %v200, %v197
  %249 = vmatpush.bf16.msra.mxu0 %v222
  %250 = vmatpush.bf16.msra.mxu0 %v219
  %251 = vmatpush.bf16.msra.mxu0 %v216
  %252 = vmatpush.bf16.msra.mxu0 %v213
  %253 = vmatpush.bf16.msra.mxu0 %v210
  %254 = vmatpush.bf16.msra.mxu0 %v207
  %255 = vmatpush.bf16.msra.mxu0 %v204
  %256 = vmatpush.bf16.msra.mxu0 %v201
  %257 = vmatmul.bf16.gmra.mxu0 %v80
  %v258 = vpop.f32.mrf.mxu0
  %v259 = vadd.f32 %v115, %v258
  %v260 = vpop.f32.mrf.mxu0
  %v261 = vadd.f32 %v115, %v260
  %262 = vdwg.mxu0
  %263 = vmatpush.bf16.msra.mxu0 %v223
  %264 = vmatpush.bf16.msra.mxu0 %v220
  %265 = vmatpush.bf16.msra.mxu0 %v217
  %266 = vmatpush.bf16.msra.mxu0 %v214
  %267 = vmatpush.bf16.msra.mxu0 %v211
  %268 = vmatpush.bf16.msra.mxu0 %v208
  %269 = vmatpush.bf16.msra.mxu0 %v205
  %270 = vmatpush.bf16.msra.mxu0 %v202
  %271 = vmatmul.bf16.gmra.mxu0 %v80
  %v272 = vpop.f32.mrf.mxu0
  %v273 = vadd.f32 %v116, %v272
  %v274 = vpop.f32.mrf.mxu0
  %v275 = vadd.f32 %v116, %v274
  %276 = vdwg.mxu0
  %277 = vmatpush.bf16.msra.mxu0 %v224
  %278 = vmatpush.bf16.msra.mxu0 %v221
  %279 = vmatpush.bf16.msra.mxu0 %v218
  %280 = vmatpush.bf16.msra.mxu0 %v215
  %281 = vmatpush.bf16.msra.mxu0 %v212
  %282 = vmatpush.bf16.msra.mxu0 %v209
  %283 = vmatpush.bf16.msra.mxu0 %v206
  %284 = vmatpush.bf16.msra.mxu0 %v203
  %285 = vmatmul.bf16.gmra.mxu0 %v80
  %v286 = vpop.f32.mrf.mxu0
  %v287 = vadd.f32 %v117, %v286
  %v288 = vpop.f32.mrf.mxu0
  %v289 = vadd.f32 %v117, %v288
  %290 = vdwg.mxu0
  %v291 = vpack.c.bf16 %v273, %v259
  %v292 = vpack.c.bf16 %v287, %v287
  %v293 = vpack.c.bf16 %v275, %v261
  %v294 = vpack.c.bf16 %v289, %v289
  %v295 = vunpack.c.l.bf16 %v291
  %v296 = vunpack.c.h.bf16 %v291
  %v297 = vunpack.c.l.bf16 %v292
  %v298 = vunpack.c.l.bf16 %v293
  %v299 = vunpack.c.h.bf16 %v293
  %v300 = vunpack.c.l.bf16 %v294
  %v301 = vtanh.pop %v295
  %v302 = vtanh.pop %v296
  %v303 = vtanh.pop %v297
  %v304 = vtanh.pop %v298
  %v305 = vtanh.pop %v299
  %v306 = vtanh.pop %v300
  %v307 = vpack.c.bf16 %v302, %v301
  %v308 = vpack.c.bf16 %v303, %v303
  %v309 = vpack.c.bf16 %v305, %v304
  %v310 = vpack.c.bf16 %v306, %v306
  %v311 = vld [vmem:[%s5] sm:$0xf]
  %v312 = vld [vmem:[%s5 + $0x4] sm:$0xf]
  %v313 = vld [vmem:[%s5 + $0x8] sm:$0xf]
  %v314 = vld [vmem:[%s5 + $0xc] sm:$0xf]
  %v315 = vld [vmem:[%s5 + $0x10] sm:$0xf]
  %v316 = vld [vmem:[%s5 + $0x14] sm:$0xf]
  %v317 = vld [vmem:[%s5 + $0x18] sm:$0xf]
  %v318 = vld [vmem:[%s5 + $0x1c] sm:$0xf]
  %v319 = vld [vmem:[%s5 + $0x20] sm:$0xf]
  %v320 = vld [vmem:[%s5 + $0x24] sm:$0xf]
  %v321 = vld [vmem:[%s5 + $0x28] sm:$0xf]
  %v322 = vld [vmem:[%s5 + $0x2c] sm:$0xf]
  %v323 = vld [vmem:[%s5 + $0x30] sm:$0xf]
  %v324 = vld [vmem:[%s5 + $0x34] sm:$0xf]
  %v325 = vld [vmem:[%s5 + $0x38] sm:$0xf]
  %v326 = vld [vmem:[%s5 + $0x3c] sm:$0xf]
  %v327 = vld [vmem:[%s6] sm:$0x1]
  %v329 = vperm.slane %v327, 0
  %v333 = vunpack.c.l.b16 %v307
  %v334 = vunpack.c.l.b16 %v309
  %v335 = vpack.c.b16 %v334, %v333
  %v353 = vunpack.c.l.b16 %v311
  %v354 = vunpack.c.l.b16 %v312
  %v355 = vunpack.c.l.b16 %v313
  %v356 = vunpack.c.l.b16 %v314
  %v357 = vunpack.c.l.b16 %v315
  %v358 = vunpack.c.l.b16 %v316
  %v359 = vunpack.c.l.b16 %v317
  %v360 = vunpack.c.l.b16 %v318
  %v361 = vunpack.c.l.b16 %v319
  %v362 = vunpack.c.l.b16 %v320
  %v363 = vunpack.c.l.b16 %v321
  %v364 = vunpack.c.l.b16 %v322
  %v365 = vunpack.c.l.b16 %v323
  %v366 = vunpack.c.l.b16 %v324
  %v367 = vunpack.c.l.b16 %v325
  %v368 = vunpack.c.l.b16 %v326
  %v369 = vpack.c.b16 %v354, %v353
  %v370 = vpack.c.b16 %v356, %v355
  %v371 = vpack.c.b16 %v358, %v357
  %v372 = vpack.c.b16 %v360, %v359
  %v373 = vpack.c.b16 %v362, %v361
  %v374 = vpack.c.b16 %v364, %v363
  %v375 = vpack.c.b16 %v366, %v365
  %v376 = vpack.c.b16 %v368, %v367
  %385 = vmatpush.bf16.msra.mxu0 %v376
  %386 = vmatpush.bf16.msra.mxu0 %v375
  %387 = vmatpush.bf16.msra.mxu0 %v374
  %388 = vmatpush.bf16.msra.mxu0 %v373
  %389 = vmatpush.bf16.msra.mxu0 %v372
  %390 = vmatpush.bf16.msra.mxu0 %v371
  %391 = vmatpush.bf16.msra.mxu0 %v370
  %392 = vmatpush.bf16.msra.mxu0 %v369
  %393 = vmatmul.bf16.gmra.mxu0 %v335
  %v394 = vpop.f32.mrf.mxu0
  %v395 = vadd.f32 %v329, %v394
  %v396 = vpop.f32.mrf.mxu0
  %v397 = vadd.f32 %v329, %v396
  %398 = vdwg.mxu0
  %v399 = vpack.c.bf16 %v397, %v395
  %v400 = vunpack.c.l.bf16 %v399
  %v401 = vunpack.c.h.bf16 %v399
  %v402 = vtanh.pop %v400
  %v403 = vtanh.pop %v401
  %v404 = vpack.c.bf16 %v403, %v402
  %v405 = vld [vmem:[%s7] sm:$0xff]
  %v406 = vld [vmem:[%s7 + $0x8] sm:$0xff]
  %v407 = vld [vmem:[%s7 + $0x10] sm:$0xff]
  %v408 = vld [vmem:[%s7 + $0x18] sm:$0xff]
  %v409 = vld [vmem:[%s7 + $0x20] sm:$0xff]
  %v410 = vld [vmem:[%s7 + $0x28] sm:$0xff]
  %v411 = vld [vmem:[%s7 + $0x30] sm:$0xff]
  %v412 = vld [vmem:[%s7 + $0x38] sm:$0xff]
  %v413 = vld [vmem:[%s7 + $0x40] sm:$0xff]
  %v414 = vld [vmem:[%s7 + $0x48] sm:$0xff]
  %v415 = vld [vmem:[%s7 + $0x50] sm:$0xff]
  %v416 = vld [vmem:[%s7 + $0x58] sm:$0xff]
  %v417 = vld [vmem:[%s7 + $0x60] sm:$0x33]
  %v418 = vld [vmem:[%s8] sm:$0x3]
  %v420 = vperm.slane %v418, 0
  %v421 = vperm.slane %v418, 1
  %v437 = vunpack.c.l.b16 %v405
  %v438 = vunpack.c.h.b16 %v405
  %v439 = vunpack.c.l.b16 %v406
  %v440 = vunpack.c.h.b16 %v406
  %v441 = vunpack.c.l.b16 %v407
  %v442 = vunpack.c.h.b16 %v407
  %v443 = vunpack.c.l.b16 %v408
  %v444 = vunpack.c.h.b16 %v408
  %v445 = vunpack.c.l.b16 %v409
  %v446 = vunpack.c.h.b16 %v409
  %v447 = vunpack.c.l.b16 %v410
  %v448 = vunpack.c.h.b16 %v410
  %v449 = vunpack.c.l.b16 %v411
  %v450 = vunpack.c.h.b16 %v411
  %v451 = vunpack.c.l.b16 %v412
  %v452 = vunpack.c.h.b16 %v412
  %v453 = vunpack.c.l.b16 %v413
  %v454 = vunpack.c.h.b16 %v413
  %v455 = vunpack.c.l.b16 %v414
  %v456 = vunpack.c.h.b16 %v414
  %v457 = vunpack.c.l.b16 %v415
  %v458 = vunpack.c.h.b16 %v415
  %v459 = vunpack.c.l.b16 %v416
  %v460 = vunpack.c.h.b16 %v416
  %v461 = vunpack.c.l.b16 %v417
  %v462 = vunpack.c.h.b16 %v417
  %v463 = vpack.c.b16 %v439, %v437
  %v464 = vpack.c.b16 %v440, %v438
  %v465 = vpack.c.b16 %v443, %v441
  %v466 = vpack.c.b16 %v444, %v442
  %v467 = vpack.c.b16 %v447, %v445
  %v468 = vpack.c.b16 %v448, %v446
  %v469 = vpack.c.b16 %v451, %v449
  %v470 = vpack.c.b16 %v452, %v450
  %v471 = vpack.c.b16 %v455, %v453
  %v472 = vpack.c.b16 %v456, %v454
  %v473 = vpack.c.b16 %v459, %v457
  %v474 = vpack.c.b16 %v460, %v458
  %v475 = vpack.c.b16 %v461, %v461
  %v476 = vpack.c.b16 %v462, %v462
  %vm489 = vcmask 818176
  %v491 = vsel %vm489, %v404, 0
  %vm493 = vcmask 1041408
  %v495 = vsel %vm493, %v475, 0
  %v498 = vsel %vm493, %v476, 0
  %500 = vmatpush.bf16.msra.mxu0 0
  %501 = vmatpush.bf16.msra.mxu0 %v495
  %502 = vmatpush.bf16.msra.mxu0 %v473
  %503 = vmatpush.bf16.msra.mxu0 %v471
  %504 = vmatpush.bf16.msra.mxu0 %v469
  %505 = vmatpush.bf16.msra.mxu0 %v467
  %506 = vmatpush.bf16.msra.mxu0 %v465
  %507 = vmatpush.bf16.msra.mxu0 %v463
  %508 = vmatmul.bf16.gmra.mxu0 %v491
  %v509 = vpop.f32.mrf.mxu0
  %v510 = vadd.f32 %v420, %v509
  %v511 = vpop.f32.mrf.mxu0
  %v512 = vadd.f32 %v420, %v511
  %513 = vdwg.mxu0
  %514 = vmatpush.bf16.msra.mxu0 0
  %515 = vmatpush.bf16.msra.mxu0 %v498
  %516 = vmatpush.bf16.msra.mxu0 %v474
  %517 = vmatpush.bf16.msra.mxu0 %v472
  %518 = vmatpush.bf16.msra.mxu0 %v470
  %519 = vmatpush.bf16.msra.mxu0 %v468
  %520 = vmatpush.bf16.msra.mxu0 %v466
  %521 = vmatpush.bf16.msra.mxu0 %v464
  %522 = vmatmul.bf16.gmra.mxu0 %v491
  %v523 = vpop.f32.mrf.mxu0
  %v524 = vadd.f32 %v421, %v523
  %v525 = vpop.f32.mrf.mxu0
  %v526 = vadd.f32 %v421, %v525
  %527 = vdwg.mxu0
  %v528 = vpack.c.bf16 %v524, %v510
  %v529 = vpack.c.bf16 %v526, %v512
  %530 = vst [vmem:[%s20] sm:$0xff] %v528
  %531 = vst [vmem:[%s20 + $0x8] sm:$0xff] %v529
  %v532 = vmul.f32 %v524, 1.442695
  %v533 = vpow.pop %v532
  %v534 = vmul.f32 %v526, 1.442695
  %v535 = vpow.pop %v534
  %v536 = vld [vmem:[%s2] sm:$0xff]
  %v537 = vld [vmem:[%s2 + $0x8] sm:$0xff]
  %v538 = vmul.f32 %v533, %v536
  %v539 = vmul.f32 %v535, %v537
  %v540 = vadd.f32 %v510, %v538
  %v541 = vadd.f32 %v512, %v539
  %v542 = vpack.c.bf16 %v541, %v540
  %v543 = vld [vmem:[%s9] sm:$0xf]
  %v544 = vld [vmem:[%s9 + $0x4] sm:$0xf]
  %v545 = vld [vmem:[%s9 + $0x8] sm:$0xf]
  %v546 = vld [vmem:[%s9 + $0xc] sm:$0xf]
  %v547 = vld [vmem:[%s9 + $0x10] sm:$0xf]
  %v548 = vld [vmem:[%s9 + $0x14] sm:$0xf]
  %v549 = vld [vmem:[%s9 + $0x18] sm:$0xf]
  %v550 = vld [vmem:[%s9 + $0x1c] sm:$0xf]
  %v551 = vld [vmem:[%s9 + $0x20] sm:$0xf]
  %v552 = vld [vmem:[%s9 + $0x24] sm:$0xf]
  %v553 = vld [vmem:[%s9 + $0x28] sm:$0xf]
  %v554 = vld [vmem:[%s9 + $0x2c] sm:$0xf]
  %v555 = vld [vmem:[%s9 + $0x30] sm:$0xf]
  %v556 = vld [vmem:[%s9 + $0x34] sm:$0xf]
  %v557 = vld [vmem:[%s9 + $0x38] sm:$0xf]
  %v558 = vld [vmem:[%s9 + $0x3c] sm:$0xf]
  %v559 = vld [vmem:[%s10] sm:$0x1]
  %v561 = vperm.slane %v559, 0
  %v579 = vunpack.c.l.b16 %v543
  %v580 = vunpack.c.l.b16 %v544
  %v581 = vunpack.c.l.b16 %v545
  %v582 = vunpack.c.l.b16 %v546
  %v583 = vunpack.c.l.b16 %v547
  %v584 = vunpack.c.l.b16 %v548
  %v585 = vunpack.c.l.b16 %v549
  %v586 = vunpack.c.l.b16 %v550
  %v587 = vunpack.c.l.b16 %v551
  %v588 = vunpack.c.l.b16 %v552
  %v589 = vunpack.c.l.b16 %v553
  %v590 = vunpack.c.l.b16 %v554
  %v591 = vunpack.c.l.b16 %v555
  %v592 = vunpack.c.l.b16 %v556
  %v593 = vunpack.c.l.b16 %v557
  %v594 = vunpack.c.l.b16 %v558
  %v595 = vpack.c.b16 %v580, %v579
  %v596 = vpack.c.b16 %v582, %v581
  %v597 = vpack.c.b16 %v584, %v583
  %v598 = vpack.c.b16 %v586, %v585
  %v599 = vpack.c.b16 %v588, %v587
  %v600 = vpack.c.b16 %v590, %v589
  %v601 = vpack.c.b16 %v592, %v591
  %v602 = vpack.c.b16 %v594, %v593
  %611 = vmatpush.bf16.msra.mxu0 %v602
  %612 = vmatpush.bf16.msra.mxu0 %v601
  %613 = vmatpush.bf16.msra.mxu0 %v600
  %614 = vmatpush.bf16.msra.mxu0 %v599
  %615 = vmatpush.bf16.msra.mxu0 %v598
  %616 = vmatpush.bf16.msra.mxu0 %v597
  %617 = vmatpush.bf16.msra.mxu0 %v596
  %618 = vmatpush.bf16.msra.mxu0 %v595
  %619 = vmatmul.bf16.gmra.mxu0 %v542
  %v620 = vpop.f32.mrf.mxu0
  %v621 = vadd.f32 %v561, %v620
  %v622 = vpop.f32.mrf.mxu0
  %v623 = vadd.f32 %v561, %v622
  %624 = vdwg.mxu0
  %v625 = vpack.c.bf16 %v623, %v621
  %v626 = vunpack.c.l.bf16 %v625
  %v627 = vunpack.c.h.bf16 %v625
  %v628 = vtanh.pop %v626
  %v629 = vtanh.pop %v627
  %v630 = vpack.c.bf16 %v629, %v628
  %v631 = vld [vmem:[%s11] sm:$0xf]
  %v632 = vld [vmem:[%s11 + $0x4] sm:$0xf]
  %v633 = vld [vmem:[%s11 + $0x8] sm:$0xf]
  %v634 = vld [vmem:[%s11 + $0xc] sm:$0xf]
  %v635 = vld [vmem:[%s11 + $0x10] sm:$0xf]
  %v636 = vld [vmem:[%s11 + $0x14] sm:$0xf]
  %v637 = vld [vmem:[%s11 + $0x18] sm:$0xf]
  %v638 = vld [vmem:[%s11 + $0x1c] sm:$0xf]
  %v639 = vld [vmem:[%s11 + $0x20] sm:$0xf]
  %v640 = vld [vmem:[%s11 + $0x24] sm:$0xf]
  %v641 = vld [vmem:[%s11 + $0x28] sm:$0xf]
  %v642 = vld [vmem:[%s11 + $0x2c] sm:$0xf]
  %v643 = vld [vmem:[%s11 + $0x30] sm:$0x3]
  %v644 = vld [vmem:[%s12] sm:$0x1]
  %v646 = vperm.slane %v644, 0
  %v661 = vunpack.c.l.b16 %v631
  %v662 = vunpack.c.l.b16 %v632
  %v663 = vunpack.c.l.b16 %v633
  %v664 = vunpack.c.l.b16 %v634
  %v665 = vunpack.c.l.b16 %v635
  %v666 = vunpack.c.l.b16 %v636
  %v667 = vunpack.c.l.b16 %v637
  %v668 = vunpack.c.l.b16 %v638
  %v669 = vunpack.c.l.b16 %v639
  %v670 = vunpack.c.l.b16 %v640
  %v671 = vunpack.c.l.b16 %v641
  %v672 = vunpack.c.l.b16 %v642
  %v673 = vunpack.c.l.b16 %v643
  %v674 = vpack.c.b16 %v662, %v661
  %v675 = vpack.c.b16 %v664, %v663
  %v676 = vpack.c.b16 %v666, %v665
  %v677 = vpack.c.b16 %v668, %v667
  %v678 = vpack.c.b16 %v670, %v669
  %v679 = vpack.c.b16 %v672, %v671
  %v680 = vpack.c.b16 %v673, %v673
  %v688 = vsel %vm489, %v630, 0
  %v691 = vsel %vm493, %v680, 0
  %693 = vmatpush.bf16.msra.mxu0 0
  %694 = vmatpush.bf16.msra.mxu0 %v691
  %695 = vmatpush.bf16.msra.mxu0 %v679
  %696 = vmatpush.bf16.msra.mxu0 %v678
  %697 = vmatpush.bf16.msra.mxu0 %v677
  %698 = vmatpush.bf16.msra.mxu0 %v676
  %699 = vmatpush.bf16.msra.mxu0 %v675
  %700 = vmatpush.bf16.msra.mxu0 %v674
  %701 = vmatmul.bf16.gmra.mxu0 %v688
  %v702 = vpop.f32.mrf.mxu0
  %v703 = vadd.f32 %v646, %v702
  %v704 = vpop.f32.mrf.mxu0
  %v705 = vadd.f32 %v646, %v704
  %706 = vdwg.mxu0
  %v707 = vpack.c.bf16 %v705, %v703
  %v708 = vunpack.c.l.bf16 %v707
  %v709 = vunpack.c.h.bf16 %v707
  %v710 = vtanh.pop %v708
  %v711 = vtanh.pop %v709
  %v712 = vpack.c.bf16 %v711, %v710
  %v713 = vld [vmem:[%s13] sm:$0xff]
  %v714 = vld [vmem:[%s13 + $0x8] sm:$0xff]
  %v715 = vld [vmem:[%s13 + $0x10] sm:$0xff]
  %v716 = vld [vmem:[%s13 + $0x18] sm:$0xff]
  %v717 = vld [vmem:[%s13 + $0x20] sm:$0xff]
  %v718 = vld [vmem:[%s13 + $0x28] sm:$0xff]
  %v719 = vld [vmem:[%s13 + $0x30] sm:$0xff]
  %v720 = vld [vmem:[%s13 + $0x38] sm:$0xff]
  %v721 = vld [vmem:[%s13 + $0x40] sm:$0xff]
  %v722 = vld [vmem:[%s13 + $0x48] sm:$0xff]
  %v723 = vld [vmem:[%s13 + $0x50] sm:$0xff]
  %v724 = vld [vmem:[%s13 + $0x58] sm:$0xff]
  %v725 = vld [vmem:[%s13 + $0x60] sm:$0x33]
  %v726 = vld [vmem:[%s14] sm:$0x3]
  %v728 = vperm.slane %v726, 0
  %v729 = vperm.slane %v726, 1
  %v745 = vunpack.c.l.b16 %v713
  %v746 = vunpack.c.h.b16 %v713
  %v747 = vunpack.c.l.b16 %v714
  %v748 = vunpack.c.h.b16 %v714
  %v749 = vunpack.c.l.b16 %v715
  %v750 = vunpack.c.h.b16 %v715
  %v751 = vunpack.c.l.b16 %v716
  %v752 = vunpack.c.h.b16 %v716
  %v753 = vunpack.c.l.b16 %v717
  %v754 = vunpack.c.h.b16 %v717
  %v755 = vunpack.c.l.b16 %v718
  %v756 = vunpack.c.h.b16 %v718
  %v757 = vunpack.c.l.b16 %v719
  %v758 = vunpack.c.h.b16 %v719
  %v759 = vunpack.c.l.b16 %v720
  %v760 = vunpack.c.h.b16 %v720
  %v761 = vunpack.c.l.b16 %v721
  %v762 = vunpack.c.h.b16 %v721
  %v763 = vunpack.c.l.b16 %v722
  %v764 = vunpack.c.h.b16 %v722
  %v765 = vunpack.c.l.b16 %v723
  %v766 = vunpack.c.h.b16 %v723
  %v767 = vunpack.c.l.b16 %v724
  %v768 = vunpack.c.h.b16 %v724
  %v769 = vunpack.c.l.b16 %v725
  %v770 = vunpack.c.h.b16 %v725
  %v771 = vpack.c.b16 %v747, %v745
  %v772 = vpack.c.b16 %v748, %v746
  %v773 = vpack.c.b16 %v751, %v749
  %v774 = vpack.c.b16 %v752, %v750
  %v775 = vpack.c.b16 %v755, %v753
  %v776 = vpack.c.b16 %v756, %v754
  %v777 = vpack.c.b16 %v759, %v757
  %v778 = vpack.c.b16 %v760, %v758
  %v779 = vpack.c.b16 %v763, %v761
  %v780 = vpack.c.b16 %v764, %v762
  %v781 = vpack.c.b16 %v767, %v765
  %v782 = vpack.c.b16 %v768, %v766
  %v783 = vpack.c.b16 %v769, %v769
  %v784 = vpack.c.b16 %v770, %v770
  %v798 = vsel %vm489, %v712, 0
  %v801 = vsel %vm493, %v783, 0
  %v804 = vsel %vm493, %v784, 0
  %806 = vmatpush.bf16.msra.mxu0 0
  %807 = vmatpush.bf16.msra.mxu0 %v801
  %808 = vmatpush.bf16.msra.mxu0 %v781
  %809 = vmatpush.bf16.msra.mxu0 %v779
  %810 = vmatpush.bf16.msra.mxu0 %v777
  %811 = vmatpush.bf16.msra.mxu0 %v775
  %812 = vmatpush.bf16.msra.mxu0 %v773
  %813 = vmatpush.bf16.msra.mxu0 %v771
  %814 = vmatmul.bf16.gmra.mxu0 %v798
  %v815 = vpop.f32.mrf.mxu0
  %v816 = vadd.f32 %v728, %v815
  %v817 = vpop.f32.mrf.mxu0
  %v818 = vadd.f32 %v728, %v817
  %819 = vdwg.mxu0
  %820 = vmatpush.bf16.msra.mxu0 0
  %821 = vmatpush.bf16.msra.mxu0 %v804
  %822 = vmatpush.bf16.msra.mxu0 %v782
  %823 = vmatpush.bf16.msra.mxu0 %v780
  %824 = vmatpush.bf16.msra.mxu0 %v778
  %825 = vmatpush.bf16.msra.mxu0 %v776
  %826 = vmatpush.bf16.msra.mxu0 %v774
  %827 = vmatpush.bf16.msra.mxu0 %v772
  %828 = vmatmul.bf16.gmra.mxu0 %v798
  %v829 = vpop.f32.mrf.mxu0
  %v830 = vadd.f32 %v729, %v829
  %v831 = vpop.f32.mrf.mxu0
  %v832 = vadd.f32 %v729, %v831
  %833 = vdwg.mxu0
  %v834 = vpack.c.bf16 %v830, %v816
  %v835 = vpack.c.bf16 %v832, %v818
  %836 = vst [vmem:[%s21] sm:$0xff] %v834
  %837 = vst [vmem:[%s21 + $0x8] sm:$0xff] %v835
  %v838 = vld [vmem:[%s15] sm:$0xff]
  %v839 = vld [vmem:[%s15 + $0x8] sm:$0xff]
  %v840 = vld [vmem:[%s15 + $0x10] sm:$0xff]
  %v841 = vld [vmem:[%s15 + $0x18] sm:$0xff]
  %v842 = vld [vmem:[%s15 + $0x20] sm:$0xff]
  %v843 = vld [vmem:[%s15 + $0x28] sm:$0xff]
  %v844 = vld [vmem:[%s15 + $0x30] sm:$0xff]
  %v845 = vld [vmem:[%s15 + $0x38] sm:$0xff]
  %v846 = vld [vmem:[%s15 + $0x40] sm:$0xff]
  %v847 = vld [vmem:[%s15 + $0x48] sm:$0xff]
  %v848 = vld [vmem:[%s15 + $0x50] sm:$0xff]
  %v849 = vld [vmem:[%s15 + $0x58] sm:$0xff]
  %v850 = vld [vmem:[%s15 + $0x60] sm:$0xff]
  %v851 = vld [vmem:[%s15 + $0x68] sm:$0xff]
  %v852 = vld [vmem:[%s15 + $0x70] sm:$0xff]
  %v853 = vld [vmem:[%s15 + $0x78] sm:$0xff]
  %v854 = vld [vmem:[%s15 + $0x80] sm:$0xff]
  %v855 = vld [vmem:[%s15 + $0x88] sm:$0xff]
  %v856 = vld [vmem:[%s15 + $0x90] sm:$0xff]
  %v857 = vld [vmem:[%s15 + $0x98] sm:$0xff]
  %v858 = vld [vmem:[%s15 + $0xa0] sm:$0xff]
  %v859 = vld [vmem:[%s15 + $0xa8] sm:$0xff]
  %v860 = vld [vmem:[%s15 + $0xb0] sm:$0xff]
  %v861 = vld [vmem:[%s15 + $0xb8] sm:$0xff]
  %v862 = vld [vmem:[%s15 + $0xc0] sm:$0xff]
  %v863 = vld [vmem:[%s15 + $0xc8] sm:$0xff]
  %v864 = vld [vmem:[%s15 + $0xd0] sm:$0xff]
  %v865 = vld [vmem:[%s15 + $0xd8] sm:$0xff]
  %v866 = vld [vmem:[%s15 + $0xe0] sm:$0xff]
  %v867 = vld [vmem:[%s15 + $0xe8] sm:$0xff]
  %v868 = vld [vmem:[%s15 + $0xf0] sm:$0xff]
  %v869 = vld [vmem:[%s15 + $0xf8] sm:$0xff]
  %v870 = vld [vmem:[%s16] sm:$0x3]
  %v872 = vperm.slane %v870, 0
  %v873 = vperm.slane %v870, 1
  %v878 = vunpack.c.h.b16 %v307
  %v879 = vunpack.c.l.b16 %v308
  %v880 = vunpack.c.h.b16 %v309
  %v881 = vunpack.c.l.b16 %v310
  %v882 = vpack.c.b16 %v880, %v878
  %v883 = vpack.c.b16 %v881, %v879
  %v918 = vunpack.c.l.b16 %v838
  %v919 = vunpack.c.h.b16 %v838
  %v920 = vunpack.c.l.b16 %v839
  %v921 = vunpack.c.h.b16 %v839
  %v922 = vunpack.c.l.b16 %v840
  %v923 = vunpack.c.h.b16 %v840
  %v924 = vunpack.c.l.b16 %v841
  %v925 = vunpack.c.h.b16 %v841
  %v926 = vunpack.c.l.b16 %v842
  %v927 = vunpack.c.h.b16 %v842
  %v928 = vunpack.c.l.b16 %v843
  %v929 = vunpack.c.h.b16 %v843
  %v930 = vunpack.c.l.b16 %v844
  %v931 = vunpack.c.h.b16 %v844
  %v932 = vunpack.c.l.b16 %v845
  %v933 = vunpack.c.h.b16 %v845
  %v934 = vunpack.c.l.b16 %v846
  %v935 = vunpack.c.h.b16 %v846
  %v936 = vunpack.c.l.b16 %v847
  %v937 = vunpack.c.h.b16 %v847
  %v938 = vunpack.c.l.b16 %v848
  %v939 = vunpack.c.h.b16 %v848
  %v940 = vunpack.c.l.b16 %v849
  %v941 = vunpack.c.h.b16 %v849
  %v942 = vunpack.c.l.b16 %v850
  %v943 = vunpack.c.h.b16 %v850
  %v944 = vunpack.c.l.b16 %v851
  %v945 = vunpack.c.h.b16 %v851
  %v946 = vunpack.c.l.b16 %v852
  %v947 = vunpack.c.h.b16 %v852
  %v948 = vunpack.c.l.b16 %v853
  %v949 = vunpack.c.h.b16 %v853
  %v950 = vunpack.c.l.b16 %v854
  %v951 = vunpack.c.h.b16 %v854
  %v952 = vunpack.c.l.b16 %v855
  %v953 = vunpack.c.h.b16 %v855
  %v954 = vunpack.c.l.b16 %v856
  %v955 = vunpack.c.h.b16 %v856
  %v956 = vunpack.c.l.b16 %v857
  %v957 = vunpack.c.h.b16 %v857
  %v958 = vunpack.c.l.b16 %v858
  %v959 = vunpack.c.h.b16 %v858
  %v960 = vunpack.c.l.b16 %v859
  %v961 = vunpack.c.h.b16 %v859
  %v962 = vunpack.c.l.b16 %v860
  %v963 = vunpack.c.h.b16 %v860
  %v964 = vunpack.c.l.b16 %v861
  %v965 = vunpack.c.h.b16 %v861
  %v966 = vunpack.c.l.b16 %v862
  %v967 = vunpack.c.h.b16 %v862
  %v968 = vunpack.c.l.b16 %v863
  %v969 = vunpack.c.h.b16 %v863
  %v970 = vunpack.c.l.b16 %v864
  %v971 = vunpack.c.h.b16 %v864
  %v972 = vunpack.c.l.b16 %v865
  %v973 = vunpack.c.h.b16 %v865
  %v974 = vunpack.c.l.b16 %v866
  %v975 = vunpack.c.h.b16 %v866
  %v976 = vunpack.c.l.b16 %v867
  %v977 = vunpack.c.h.b16 %v867
  %v978 = vunpack.c.l.b16 %v868
  %v979 = vunpack.c.h.b16 %v868
  %v980 = vunpack.c.l.b16 %v869
  %v981 = vunpack.c.h.b16 %v869
  %v982 = vpack.c.b16 %v920, %v918
  %v983 = vpack.c.b16 %v921, %v919
  %v984 = vpack.c.b16 %v924, %v922
  %v985 = vpack.c.b16 %v925, %v923
  %v986 = vpack.c.b16 %v928, %v926
  %v987 = vpack.c.b16 %v929, %v927
  %v988 = vpack.c.b16 %v932, %v930
  %v989 = vpack.c.b16 %v933, %v931
  %v990 = vpack.c.b16 %v936, %v934
  %v991 = vpack.c.b16 %v937, %v935
  %v992 = vpack.c.b16 %v940, %v938
  %v993 = vpack.c.b16 %v941, %v939
  %v994 = vpack.c.b16 %v944, %v942
  %v995 = vpack.c.b16 %v945, %v943
  %v996 = vpack.c.b16 %v948, %v946
  %v997 = vpack.c.b16 %v949, %v947
  %v998 = vpack.c.b16 %v952, %v950
  %v999 = vpack.c.b16 %v953, %v951
  %v1000 = vpack.c.b16 %v956, %v954
  %v1001 = vpack.c.b16 %v957, %v955
  %v1002 = vpack.c.b16 %v960, %v958
  %v1003 = vpack.c.b16 %v961, %v959
  %v1004 = vpack.c.b16 %v964, %v962
  %v1005 = vpack.c.b16 %v965, %v963
  %v1006 = vpack.c.b16 %v968, %v966
  %v1007 = vpack.c.b16 %v969, %v967
  %v1008 = vpack.c.b16 %v972, %v970
  %v1009 = vpack.c.b16 %v973, %v971
  %v1010 = vpack.c.b16 %v976, %v974
  %v1011 = vpack.c.b16 %v977, %v975
  %v1012 = vpack.c.b16 %v980, %v978
  %v1013 = vpack.c.b16 %v981, %v979
  %1046 = vmatpush.bf16.msra.mxu0 %v996
  %1047 = vmatpush.bf16.msra.mxu0 %v994
  %1048 = vmatpush.bf16.msra.mxu0 %v992
  %1049 = vmatpush.bf16.msra.mxu0 %v990
  %1050 = vmatpush.bf16.msra.mxu0 %v988
  %1051 = vmatpush.bf16.msra.mxu0 %v986
  %1052 = vmatpush.bf16.msra.mxu0 %v984
  %1053 = vmatpush.bf16.msra.mxu0 %v982
  %1054 = vmatmul.bf16.gmra.mxu0 %v882
  %v1055 = vpop.f32.mrf.mxu0
  %v1056 = vadd.f32 %v872, %v1055
  %v1057 = vpop.f32.mrf.mxu0
  %v1058 = vadd.f32 %v872, %v1057
  %1059 = vdwg.mxu0
  %1060 = vmatpush.bf16.msra.mxu0 %v1012
  %1061 = vmatpush.bf16.msra.mxu0 %v1010
  %1062 = vmatpush.bf16.msra.mxu0 %v1008
  %1063 = vmatpush.bf16.msra.mxu0 %v1006
  %1064 = vmatpush.bf16.msra.mxu0 %v1004
  %1065 = vmatpush.bf16.msra.mxu0 %v1002
  %1066 = vmatpush.bf16.msra.mxu0 %v1000
  %1067 = vmatpush.bf16.msra.mxu0 %v998
  %1068 = vmatmul.bf16.gmra.mxu0 %v883
  %v1069 = vpop.f32.mrf.mxu0
  %v1070 = vadd.f32 %v1056, %v1069
  %v1071 = vpop.f32.mrf.mxu0
  %v1072 = vadd.f32 %v1058, %v1071
  %1073 = vdwg.mxu0
  %1074 = vmatpush.bf16.msra.mxu0 %v997
  %1075 = vmatpush.bf16.msra.mxu0 %v995
  %1076 = vmatpush.bf16.msra.mxu0 %v993
  %1077 = vmatpush.bf16.msra.mxu0 %v991
  %1078 = vmatpush.bf16.msra.mxu0 %v989
  %1079 = vmatpush.bf16.msra.mxu0 %v987
  %1080 = vmatpush.bf16.msra.mxu0 %v985
  %1081 = vmatpush.bf16.msra.mxu0 %v983
  %1082 = vmatmul.bf16.gmra.mxu0 %v882
  %v1083 = vpop.f32.mrf.mxu0
  %v1084 = vadd.f32 %v873, %v1083
  %v1085 = vpop.f32.mrf.mxu0
  %v1086 = vadd.f32 %v873, %v1085
  %1087 = vdwg.mxu0
  %1088 = vmatpush.bf16.msra.mxu0 %v1013
  %1089 = vmatpush.bf16.msra.mxu0 %v1011
  %1090 = vmatpush.bf16.msra.mxu0 %v1009
  %1091 = vmatpush.bf16.msra.mxu0 %v1007
  %1092 = vmatpush.bf16.msra.mxu0 %v1005
  %1093 = vmatpush.bf16.msra.mxu0 %v1003
  %1094 = vmatpush.bf16.msra.mxu0 %v1001
  %1095 = vmatpush.bf16.msra.mxu0 %v999
  %1096 = vmatmul.bf16.gmra.mxu0 %v883
  %v1097 = vpop.f32.mrf.mxu0
  %v1098 = vadd.f32 %v1084, %v1097
  %v1099 = vpop.f32.mrf.mxu0
  %v1100 = vadd.f32 %v1086, %v1099
  %1101 = vdwg.mxu0
  %v1102 = vpack.c.bf16 %v1072, %v1070
  %v1103 = vpack.c.bf16 %v1100, %v1098
  %v1104 = vunpack.c.l.bf16 %v1102
  %v1105 = vunpack.c.l.bf16 %v1103
  %v1106 = vunpack.c.h.bf16 %v1102
  %v1107 = vunpack.c.h.bf16 %v1103
  %v1108 = vtanh.pop %v1104
  %v1109 = vtanh.pop %v1105
  %v1110 = vtanh.pop %v1106
  %v1111 = vtanh.pop %v1107
  %v1112 = vpack.c.bf16 %v1110, %v1108
  %v1113 = vpack.c.bf16 %v1111, %v1109
  %v1114 = vld [vmem:[%s17] sm:$0xff]
  %v1115 = vld [vmem:[%s17 + $0x8] sm:$0xff]
  %v1116 = vld [vmem:[%s17 + $0x10] sm:$0xff]
  %v1117 = vld [vmem:[%s17 + $0x18] sm:$0xf]
  %v1118 = vld [vmem:[%s17 + $0x1c] sm:$0xff]
  %v1119 = vld [vmem:[%s17 + $0x24] sm:$0xff]
  %v1120 = vld [vmem:[%s17 + $0x2c] sm:$0xff]
  %v1121 = vld [vmem:[%s17 + $0x34] sm:$0xf]
  %v1122 = vld [vmem:[%s17 + $0x38] sm:$0xff]
  %v1123 = vld [vmem:[%s17 + $0x40] sm:$0xff]
  %v1124 = vld [vmem:[%s17 + $0x48] sm:$0xff]
  %v1125 = vld [vmem:[%s17 + $0x50] sm:$0xf]
  %v1126 = vld [vmem:[%s17 + $0x54] sm:$0xff]
  %v1127 = vld [vmem:[%s17 + $0x5c] sm:$0xff]
  %v1128 = vld [vmem:[%s17 + $0x64] sm:$0xff]
  %v1129 = vld [vmem:[%s17 + $0x6c] sm:$0xf]
  %v1130 = vld [vmem:[%s17 + $0x70] sm:$0xff]
  %v1131 = vld [vmem:[%s17 + $0x78] sm:$0xff]
  %v1132 = vld [vmem:[%s17 + $0x80] sm:$0xff]
  %v1133 = vld [vmem:[%s17 + $0x88] sm:$0xf]
  %v1134 = vld [vmem:[%s17 + $0x8c] sm:$0xff]
  %v1135 = vld [vmem:[%s17 + $0x94] sm:$0xff]
  %v1136 = vld [vmem:[%s17 + $0x9c] sm:$0xff]
  %v1137 = vld [vmem:[%s17 + $0xa4] sm:$0xf]
  %v1138 = vld [vmem:[%s17 + $0xa8] sm:$0xff]
  %v1139 = vld [vmem:[%s17 + $0xb0] sm:$0xff]
  %v1140 = vld [vmem:[%s17 + $0xb8] sm:$0xff]
  %v1141 = vld [vmem:[%s17 + $0xc0] sm:$0xf]
  %v1142 = vld [vmem:[%s17 + $0xc4] sm:$0xff]
  %v1143 = vld [vmem:[%s17 + $0xcc] sm:$0xff]
  %v1144 = vld [vmem:[%s17 + $0xd4] sm:$0xff]
  %v1145 = vld [vmem:[%s17 + $0xdc] sm:$0xf]
  %v1146 = vld [vmem:[%s17 + $0xe0] sm:$0xff]
  %v1147 = vld [vmem:[%s17 + $0xe8] sm:$0xff]
  %v1148 = vld [vmem:[%s17 + $0xf0] sm:$0xff]
  %v1149 = vld [vmem:[%s17 + $0xf8] sm:$0xf]
  %v1150 = vld [vmem:[%s17 + $0xfc] sm:$0xff]
  %v1151 = vld [vmem:[%s17 + $0x104] sm:$0xff]
  %v1152 = vld [vmem:[%s17 + $0x10c] sm:$0xff]
  %v1153 = vld [vmem:[%s17 + $0x114] sm:$0xf]
  %v1154 = vld [vmem:[%s17 + $0x118] sm:$0xff]
  %v1155 = vld [vmem:[%s17 + $0x120] sm:$0xff]
  %v1156 = vld [vmem:[%s17 + $0x128] sm:$0xff]
  %v1157 = vld [vmem:[%s17 + $0x130] sm:$0xf]
  %v1158 = vld [vmem:[%s17 + $0x134] sm:$0xff]
  %v1159 = vld [vmem:[%s17 + $0x13c] sm:$0xff]
  %v1160 = vld [vmem:[%s17 + $0x144] sm:$0xff]
  %v1161 = vld [vmem:[%s17 + $0x14c] sm:$0xf]
  %v1162 = vld [vmem:[%s17 + $0x150] sm:$0xff]
  %v1163 = vld [vmem:[%s17 + $0x158] sm:$0xff]
  %v1164 = vld [vmem:[%s17 + $0x160] sm:$0xff]
  %v1165 = vld [vmem:[%s17 + $0x168] sm:$0xf]
  %v1166 = vld [vmem:[%s17 + $0x16c] sm:$0xff]
  %v1167 = vld [vmem:[%s17 + $0x174] sm:$0xff]
  %v1168 = vld [vmem:[%s17 + $0x17c] sm:$0xff]
  %v1169 = vld [vmem:[%s17 + $0x184] sm:$0xf]
  %v1170 = vld [vmem:[%s17 + $0x188] sm:$0xff]
  %v1171 = vld [vmem:[%s17 + $0x190] sm:$0xff]
  %v1172 = vld [vmem:[%s17 + $0x198] sm:$0xff]
  %v1173 = vld [vmem:[%s17 + $0x1a0] sm:$0xf]
  %v1174 = vld [vmem:[%s17 + $0x1a4] sm:$0xff]
  %v1175 = vld [vmem:[%s17 + $0x1ac] sm:$0xff]
  %v1176 = vld [vmem:[%s17 + $0x1b4] sm:$0xff]
  %v1177 = vld [vmem:[%s17 + $0x1bc] sm:$0xf]
  %v1178 = vld [vmem:[%s17 + $0x1c0] sm:$0xff]
  %v1179 = vld [vmem:[%s17 + $0x1c8] sm:$0xff]
  %v1180 = vld [vmem:[%s17 + $0x1d0] sm:$0xff]
  %v1181 = vld [vmem:[%s17 + $0x1d8] sm:$0xf]
  %v1182 = vld [vmem:[%s17 + $0x1dc] sm:$0xff]
  %v1183 = vld [vmem:[%s17 + $0x1e4] sm:$0xff]
  %v1184 = vld [vmem:[%s17 + $0x1ec] sm:$0xff]
  %v1185 = vld [vmem:[%s17 + $0x1f4] sm:$0xf]
  %v1186 = vld [vmem:[%s17 + $0x1f8] sm:$0xff]
  %v1187 = vld [vmem:[%s17 + $0x200] sm:$0xff]
  %v1188 = vld [vmem:[%s17 + $0x208] sm:$0xff]
  %v1189 = vld [vmem:[%s17 + $0x210] sm:$0xf]
  %v1190 = vld [vmem:[%s17 + $0x214] sm:$0xff]
  %v1191 = vld [vmem:[%s17 + $0x21c] sm:$0xff]
  %v1192 = vld [vmem:[%s17 + $0x224] sm:$0xff]
  %v1193 = vld [vmem:[%s17 + $0x22c] sm:$0xf]
  %v1194 = vld [vmem:[%s17 + $0x230] sm:$0xff]
  %v1195 = vld [vmem:[%s17 + $0x238] sm:$0xff]
  %v1196 = vld [vmem:[%s17 + $0x240] sm:$0xff]
  %v1197 = vld [vmem:[%s17 + $0x248] sm:$0xf]
  %v1198 = vld [vmem:[%s17 + $0x24c] sm:$0xff]
  %v1199 = vld [vmem:[%s17 + $0x254] sm:$0xff]
  %v1200 = vld [vmem:[%s17 + $0x25c] sm:$0xff]
  %v1201 = vld [vmem:[%s17 + $0x264] sm:$0xf]
  %v1202 = vld [vmem:[%s17 + $0x268] sm:$0xff]
  %v1203 = vld [vmem:[%s17 + $0x270] sm:$0xff]
  %v1204 = vld [vmem:[%s17 + $0x278] sm:$0xff]
  %v1205 = vld [vmem:[%s17 + $0x280] sm:$0xf]
  %v1206 = vld [vmem:[%s17 + $0x284] sm:$0xff]
  %v1207 = vld [vmem:[%s17 + $0x28c] sm:$0xff]
  %v1208 = vld [vmem:[%s17 + $0x294] sm:$0xff]
  %v1209 = vld [vmem:[%s17 + $0x29c] sm:$0xf]
  %v1210 = vld [vmem:[%s17 + $0x2a0] sm:$0xff]
  %v1211 = vld [vmem:[%s17 + $0x2a8] sm:$0xff]
  %v1212 = vld [vmem:[%s17 + $0x2b0] sm:$0xff]
  %v1213 = vld [vmem:[%s17 + $0x2b8] sm:$0xf]
  %v1214 = vld [vmem:[%s18] sm:$0xff]
  %v1216 = vperm.slane %v1214, 0
  %v1217 = vperm.slane %v1214, 1
  %v1218 = vperm.slane %v1214, 2
  %v1219 = vperm.slane %v1214, 3
  %v1220 = vperm.slane %v1214, 4
  %v1221 = vperm.slane %v1214, 5
  %v1222 = vperm.slane %v1214, 6
  %v1330 = vunpack.c.l.b16 %v1114
  %v1331 = vunpack.c.h.b16 %v1114
  %v1332 = vunpack.c.l.b16 %v1115
  %v1333 = vunpack.c.h.b16 %v1115
  %v1334 = vunpack.c.l.b16 %v1116
  %v1335 = vunpack.c.h.b16 %v1116
  %v1336 = vunpack.c.l.b16 %v1117
  %v1337 = vunpack.c.l.b16 %v1118
  %v1338 = vunpack.c.h.b16 %v1118
  %v1339 = vunpack.c.l.b16 %v1119
  %v1340 = vunpack.c.h.b16 %v1119
  %v1341 = vunpack.c.l.b16 %v1120
  %v1342 = vunpack.c.h.b16 %v1120
  %v1343 = vunpack.c.l.b16 %v1121
  %v1344 = vunpack.c.l.b16 %v1122
  %v1345 = vunpack.c.h.b16 %v1122
  %v1346 = vunpack.c.l.b16 %v1123
  %v1347 = vunpack.c.h.b16 %v1123
  %v1348 = vunpack.c.l.b16 %v1124
  %v1349 = vunpack.c.h.b16 %v1124
  %v1350 = vunpack.c.l.b16 %v1125
  %v1351 = vunpack.c.l.b16 %v1126
  %v1352 = vunpack.c.h.b16 %v1126
  %v1353 = vunpack.c.l.b16 %v1127
  %v1354 = vunpack.c.h.b16 %v1127
  %v1355 = vunpack.c.l.b16 %v1128
  %v1356 = vunpack.c.h.b16 %v1128
  %v1357 = vunpack.c.l.b16 %v1129
  %v1358 = vunpack.c.l.b16 %v1130
  %v1359 = vunpack.c.h.b16 %v1130
  %v1360 = vunpack.c.l.b16 %v1131
  %v1361 = vunpack.c.h.b16 %v1131
  %v1362 = vunpack.c.l.b16 %v1132
  %v1363 = vunpack.c.h.b16 %v1132
  %v1364 = vunpack.c.l.b16 %v1133
  %v1365 = vunpack.c.l.b16 %v1134
  %v1366 = vunpack.c.h.b16 %v1134
  %v1367 = vunpack.c.l.b16 %v1135
  %v1368 = vunpack.c.h.b16 %v1135
  %v1369 = vunpack.c.l.b16 %v1136
  %v1370 = vunpack.c.h.b16 %v1136
  %v1371 = vunpack.c.l.b16 %v1137
  %v1372 = vunpack.c.l.b16 %v1138
  %v1373 = vunpack.c.h.b16 %v1138
  %v1374 = vunpack.c.l.b16 %v1139
  %v1375 = vunpack.c.h.b16 %v1139
  %v1376 = vunpack.c.l.b16 %v1140
  %v1377 = vunpack.c.h.b16 %v1140
  %v1378 = vunpack.c.l.b16 %v1141
  %v1379 = vunpack.c.l.b16 %v1142
  %v1380 = vunpack.c.h.b16 %v1142
  %v1381 = vunpack.c.l.b16 %v1143
  %v1382 = vunpack.c.h.b16 %v1143
  %v1383 = vunpack.c.l.b16 %v1144
  %v1384 = vunpack.c.h.b16 %v1144
  %v1385 = vunpack.c.l.b16 %v1145
  %v1386 = vunpack.c.l.b16 %v1146
  %v1387 = vunpack.c.h.b16 %v1146
  %v1388 = vunpack.c.l.b16 %v1147
  %v1389 = vunpack.c.h.b16 %v1147
  %v1390 = vunpack.c.l.b16 %v1148
  %v1391 = vunpack.c.h.b16 %v1148
  %v1392 = vunpack.c.l.b16 %v1149
  %v1393 = vunpack.c.l.b16 %v1150
  %v1394 = vunpack.c.h.b16 %v1150
  %v1395 = vunpack.c.l.b16 %v1151
  %v1396 = vunpack.c.h.b16 %v1151
  %v1397 = vunpack.c.l.b16 %v1152
  %v1398 = vunpack.c.h.b16 %v1152
  %v1399 = vunpack.c.l.b16 %v1153
  %v1400 = vunpack.c.l.b16 %v1154
  %v1401 = vunpack.c.h.b16 %v1154
  %v1402 = vunpack.c.l.b16 %v1155
  %v1403 = vunpack.c.h.b16 %v1155
  %v1404 = vunpack.c.l.b16 %v1156
  %v1405 = vunpack.c.h.b16 %v1156
  %v1406 = vunpack.c.l.b16 %v1157
  %v1407 = vunpack.c.l.b16 %v1158
  %v1408 = vunpack.c.h.b16 %v1158
  %v1409 = vunpack.c.l.b16 %v1159
  %v1410 = vunpack.c.h.b16 %v1159
  %v1411 = vunpack.c.l.b16 %v1160
  %v1412 = vunpack.c.h.b16 %v1160
  %v1413 = vunpack.c.l.b16 %v1161
  %v1414 = vunpack.c.l.b16 %v1162
  %v1415 = vunpack.c.h.b16 %v1162
  %v1416 = vunpack.c.l.b16 %v1163
  %v1417 = vunpack.c.h.b16 %v1163
  %v1418 = vunpack.c.l.b16 %v1164
  %v1419 = vunpack.c.h.b16 %v1164
  %v1420 = vunpack.c.l.b16 %v1165
  %v1421 = vunpack.c.l.b16 %v1166
  %v1422 = vunpack.c.h.b16 %v1166
  %v1423 = vunpack.c.l.b16 %v1167
  %v1424 = vunpack.c.h.b16 %v1167
  %v1425 = vunpack.c.l.b16 %v1168
  %v1426 = vunpack.c.h.b16 %v1168
  %v1427 = vunpack.c.l.b16 %v1169
  %v1428 = vunpack.c.l.b16 %v1170
  %v1429 = vunpack.c.h.b16 %v1170
  %v1430 = vunpack.c.l.b16 %v1171
  %v1431 = vunpack.c.h.b16 %v1171
  %v1432 = vunpack.c.l.b16 %v1172
  %v1433 = vunpack.c.h.b16 %v1172
  %v1434 = vunpack.c.l.b16 %v1173
  %v1435 = vunpack.c.l.b16 %v1174
  %v1436 = vunpack.c.h.b16 %v1174
  %v1437 = vunpack.c.l.b16 %v1175
  %v1438 = vunpack.c.h.b16 %v1175
  %v1439 = vunpack.c.l.b16 %v1176
  %v1440 = vunpack.c.h.b16 %v1176
  %v1441 = vunpack.c.l.b16 %v1177
  %v1442 = vunpack.c.l.b16 %v1178
  %v1443 = vunpack.c.h.b16 %v1178
  %v1444 = vunpack.c.l.b16 %v1179
  %v1445 = vunpack.c.h.b16 %v1179
  %v1446 = vunpack.c.l.b16 %v1180
  %v1447 = vunpack.c.h.b16 %v1180
  %v1448 = vunpack.c.l.b16 %v1181
  %v1449 = vunpack.c.l.b16 %v1182
  %v1450 = vunpack.c.h.b16 %v1182
  %v1451 = vunpack.c.l.b16 %v1183
  %v1452 = vunpack.c.h.b16 %v1183
  %v1453 = vunpack.c.l.b16 %v1184
  %v1454 = vunpack.c.h.b16 %v1184
  %v1455 = vunpack.c.l.b16 %v1185
  %v1456 = vunpack.c.l.b16 %v1186
  %v1457 = vunpack.c.h.b16 %v1186
  %v1458 = vunpack.c.l.b16 %v1187
  %v1459 = vunpack.c.h.b16 %v1187
  %v1460 = vunpack.c.l.b16 %v1188
  %v1461 = vunpack.c.h.b16 %v1188
  %v1462 = vunpack.c.l.b16 %v1189
  %v1463 = vunpack.c.l.b16 %v1190
  %v1464 = vunpack.c.h.b16 %v1190
  %v1465 = vunpack.c.l.b16 %v1191
  %v1466 = vunpack.c.h.b16 %v1191
  %v1467 = vunpack.c.l.b16 %v1192
  %v1468 = vunpack.c.h.b16 %v1192
  %v1469 = vunpack.c.l.b16 %v1193
  %v1470 = vunpack.c.l.b16 %v1194
  %v1471 = vunpack.c.h.b16 %v1194
  %v1472 = vunpack.c.l.b16 %v1195
  %v1473 = vunpack.c.h.b16 %v1195
  %v1474 = vunpack.c.l.b16 %v1196
  %v1475 = vunpack.c.h.b16 %v1196
  %v1476 = vunpack.c.l.b16 %v1197
  %v1477 = vunpack.c.l.b16 %v1198
  %v1478 = vunpack.c.h.b16 %v1198
  %v1479 = vunpack.c.l.b16 %v1199
  %v1480 = vunpack.c.h.b16 %v1199
  %v1481 = vunpack.c.l.b16 %v1200
  %v1482 = vunpack.c.h.b16 %v1200
  %v1483 = vunpack.c.l.b16 %v1201
  %v1484 = vunpack.c.l.b16 %v1202
  %v1485 = vunpack.c.h.b16 %v1202
  %v1486 = vunpack.c.l.b16 %v1203
  %v1487 = vunpack.c.h.b16 %v1203
  %v1488 = vunpack.c.l.b16 %v1204
  %v1489 = vunpack.c.h.b16 %v1204
  %v1490 = vunpack.c.l.b16 %v1205
  %v1491 = vunpack.c.l.b16 %v1206
  %v1492 = vunpack.c.h.b16 %v1206
  %v1493 = vunpack.c.l.b16 %v1207
  %v1494 = vunpack.c.h.b16 %v1207
  %v1495 = vunpack.c.l.b16 %v1208
  %v1496 = vunpack.c.h.b16 %v1208
  %v1497 = vunpack.c.l.b16 %v1209
  %v1498 = vunpack.c.l.b16 %v1210
  %v1499 = vunpack.c.h.b16 %v1210
  %v1500 = vunpack.c.l.b16 %v1211
  %v1501 = vunpack.c.h.b16 %v1211
  %v1502 = vunpack.c.l.b16 %v1212
  %v1503 = vunpack.c.h.b16 %v1212
  %v1504 = vunpack.c.l.b16 %v1213
  %v1505 = vpack.c.b16 %v1337, %v1330
  %v1506 = vpack.c.b16 %v1338, %v1331
  %v1507 = vpack.c.b16 %v1339, %v1332
  %v1508 = vpack.c.b16 %v1340, %v1333
  %v1509 = vpack.c.b16 %v1341, %v1334
  %v1510 = vpack.c.b16 %v1342, %v1335
  %v1511 = vpack.c.b16 %v1343, %v1336
  %v1512 = vpack.c.b16 %v1351, %v1344
  %v1513 = vpack.c.b16 %v1352, %v1345
  %v1514 = vpack.c.b16 %v1353, %v1346
  %v1515 = vpack.c.b16 %v1354, %v1347
  %v1516 = vpack.c.b16 %v1355, %v1348
  %v1517 = vpack.c.b16 %v1356, %v1349
  %v1518 = vpack.c.b16 %v1357, %v1350
  %v1519 = vpack.c.b16 %v1365, %v1358
  %v1520 = vpack.c.b16 %v1366, %v1359
  %v1521 = vpack.c.b16 %v1367, %v1360
  %v1522 = vpack.c.b16 %v1368, %v1361
  %v1523 = vpack.c.b16 %v1369, %v1362
  %v1524 = vpack.c.b16 %v1370, %v1363
  %v1525 = vpack.c.b16 %v1371, %v1364
  %v1526 = vpack.c.b16 %v1379, %v1372
  %v1527 = vpack.c.b16 %v1380, %v1373
  %v1528 = vpack.c.b16 %v1381, %v1374
  %v1529 = vpack.c.b16 %v1382, %v1375
  %v1530 = vpack.c.b16 %v1383, %v1376
  %v1531 = vpack.c.b16 %v1384, %v1377
  %v1532 = vpack.c.b16 %v1385, %v1378
  %v1533 = vpack.c.b16 %v1393, %v1386
  %v1534 = vpack.c.b16 %v1394, %v1387
  %v1535 = vpack.c.b16 %v1395, %v1388
  %v1536 = vpack.c.b16 %v1396, %v1389
  %v1537 = vpack.c.b16 %v1397, %v1390
  %v1538 = vpack.c.b16 %v1398, %v1391
  %v1539 = vpack.c.b16 %v1399, %v1392
  %v1540 = vpack.c.b16 %v1407, %v1400
  %v1541 = vpack.c.b16 %v1408, %v1401
  %v1542 = vpack.c.b16 %v1409, %v1402
  %v1543 = vpack.c.b16 %v1410, %v1403
  %v1544 = vpack.c.b16 %v1411, %v1404
  %v1545 = vpack.c.b16 %v1412, %v1405
  %v1546 = vpack.c.b16 %v1413, %v1406
  %v1547 = vpack.c.b16 %v1421, %v1414
  %v1548 = vpack.c.b16 %v1422, %v1415
  %v1549 = vpack.c.b16 %v1423, %v1416
  %v1550 = vpack.c.b16 %v1424, %v1417
  %v1551 = vpack.c.b16 %v1425, %v1418
  %v1552 = vpack.c.b16 %v1426, %v1419
  %v1553 = vpack.c.b16 %v1427, %v1420
  %v1554 = vpack.c.b16 %v1435, %v1428
  %v1555 = vpack.c.b16 %v1436, %v1429
  %v1556 = vpack.c.b16 %v1437, %v1430
  %v1557 = vpack.c.b16 %v1438, %v1431
  %v1558 = vpack.c.b16 %v1439, %v1432
  %v1559 = vpack.c.b16 %v1440, %v1433
  %v1560 = vpack.c.b16 %v1441, %v1434
  %v1561 = vpack.c.b16 %v1449, %v1442
  %v1562 = vpack.c.b16 %v1450, %v1443
  %v1563 = vpack.c.b16 %v1451, %v1444
  %v1564 = vpack.c.b16 %v1452, %v1445
  %v1565 = vpack.c.b16 %v1453, %v1446
  %v1566 = vpack.c.b16 %v1454, %v1447
  %v1567 = vpack.c.b16 %v1455, %v1448
  %v1568 = vpack.c.b16 %v1463, %v1456
  %v1569 = vpack.c.b16 %v1464, %v1457
  %v1570 = vpack.c.b16 %v1465, %v1458
  %v1571 = vpack.c.b16 %v1466, %v1459
  %v1572 = vpack.c.b16 %v1467, %v1460
  %v1573 = vpack.c.b16 %v1468, %v1461
  %v1574 = vpack.c.b16 %v1469, %v1462
  %v1575 = vpack.c.b16 %v1477, %v1470
  %v1576 = vpack.c.b16 %v1478, %v1471
  %v1577 = vpack.c.b16 %v1479, %v1472
  %v1578 = vpack.c.b16 %v1480, %v1473
  %v1579 = vpack.c.b16 %v1481, %v1474
  %v1580 = vpack.c.b16 %v1482, %v1475
  %v1581 = vpack.c.b16 %v1483, %v1476
  %v1582 = vpack.c.b16 %v1491, %v1484
  %v1583 = vpack.c.b16 %v1492, %v1485
  %v1584 = vpack.c.b16 %v1493, %v1486
  %v1585 = vpack.c.b16 %v1494, %v1487
  %v1586 = vpack.c.b16 %v1495, %v1488
  %v1587 = vpack.c.b16 %v1496, %v1489
  %v1588 = vpack.c.b16 %v1497, %v1490
  %v1589 = vpack.c.b16 %v1498, %v1498
  %v1590 = vpack.c.b16 %v1499, %v1499
  %v1591 = vpack.c.b16 %v1500, %v1500
  %v1592 = vpack.c.b16 %v1501, %v1501
  %v1593 = vpack.c.b16 %v1502, %v1502
  %v1594 = vpack.c.b16 %v1503, %v1503
  %v1595 = vpack.c.b16 %v1504, %v1504
  %vm1680 = vcmask 588800
  %v1682 = vsel %vm1680, %v1113, 0
  %vm1684 = vcmask 1043456
  %v1686 = vsel %vm1684, %v1589, 0
  %v1689 = vsel %vm1684, %v1590, 0
  %v1692 = vsel %vm1684, %v1591, 0
  %v1695 = vsel %vm1684, %v1592, 0
  %v1698 = vsel %vm1684, %v1593, 0
  %v1701 = vsel %vm1684, %v1594, 0
  %v1704 = vsel %vm1684, %v1595, 0
  %1706 = vmatpush.bf16.msra.mxu0 %v1554
  %1707 = vmatpush.bf16.msra.mxu0 %v1547
  %1708 = vmatpush.bf16.msra.mxu0 %v1540
  %1709 = vmatpush.bf16.msra.mxu0 %v1533
  %1710 = vmatpush.bf16.msra.mxu0 %v1526
  %1711 = vmatpush.bf16.msra.mxu0 %v1519
  %1712 = vmatpush.bf16.msra.mxu0 %v1512
  %1713 = vmatpush.bf16.msra.mxu0 %v1505
  %1714 = vmatmul.bf16.gmra.mxu0 %v1112
  %v1715 = vpop.f32.mrf.mxu0
  %v1716 = vadd.f32 %v1216, %v1715
  %v1717 = vpop.f32.mrf.mxu0
  %v1718 = vadd.f32 %v1216, %v1717
  %1719 = vdwg.mxu0
  %1720 = vmatpush.bf16.msra.mxu0 0
  %1721 = vmatpush.bf16.msra.mxu0 0
  %1722 = vmatpush.bf16.msra.mxu0 0
  %1723 = vmatpush.bf16.msra.mxu0 %v1686
  %1724 = vmatpush.bf16.msra.mxu0 %v1582
  %1725 = vmatpush.bf16.msra.mxu0 %v1575
  %1726 = vmatpush.bf16.msra.mxu0 %v1568
  %1727 = vmatpush.bf16.msra.mxu0 %v1561
  %1728 = vmatmul.bf16.gmra.mxu0 %v1682
  %v1729 = vpop.f32.mrf.mxu0
  %v1730 = vadd.f32 %v1716, %v1729
  %v1731 = vpop.f32.mrf.mxu0
  %v1732 = vadd.f32 %v1718, %v1731
  %1733 = vdwg.mxu0
  %1734 = vmatpush.bf16.msra.mxu0 %v1555
  %1735 = vmatpush.bf16.msra.mxu0 %v1548
  %1736 = vmatpush.bf16.msra.mxu0 %v1541
  %1737 = vmatpush.bf16.msra.mxu0 %v1534
  %1738 = vmatpush.bf16.msra.mxu0 %v1527
  %1739 = vmatpush.bf16.msra.mxu0 %v1520
  %1740 = vmatpush.bf16.msra.mxu0 %v1513
  %1741 = vmatpush.bf16.msra.mxu0 %v1506
  %1742 = vmatmul.bf16.gmra.mxu0 %v1112
  %v1743 = vpop.f32.mrf.mxu0
  %v1744 = vadd.f32 %v1217, %v1743
  %v1745 = vpop.f32.mrf.mxu0
  %v1746 = vadd.f32 %v1217, %v1745
  %1747 = vdwg.mxu0
  %1748 = vmatpush.bf16.msra.mxu0 0
  %1749 = vmatpush.bf16.msra.mxu0 0
  %1750 = vmatpush.bf16.msra.mxu0 0
  %1751 = vmatpush.bf16.msra.mxu0 %v1689
  %1752 = vmatpush.bf16.msra.mxu0 %v1583
  %1753 = vmatpush.bf16.msra.mxu0 %v1576
  %1754 = vmatpush.bf16.msra.mxu0 %v1569
  %1755 = vmatpush.bf16.msra.mxu0 %v1562
  %1756 = vmatmul.bf16.gmra.mxu0 %v1682
  %v1757 = vpop.f32.mrf.mxu0
  %v1758 = vadd.f32 %v1744, %v1757
  %v1759 = vpop.f32.mrf.mxu0
  %v1760 = vadd.f32 %v1746, %v1759
  %1761 = vdwg.mxu0
  %1762 = vmatpush.bf16.msra.mxu0 %v1556
  %1763 = vmatpush.bf16.msra.mxu0 %v1549
  %1764 = vmatpush.bf16.msra.mxu0 %v1542
  %1765 = vmatpush.bf16.msra.mxu0 %v1535
  %1766 = vmatpush.bf16.msra.mxu0 %v1528
  %1767 = vmatpush.bf16.msra.mxu0 %v1521
  %1768 = vmatpush.bf16.msra.mxu0 %v1514
  %1769 = vmatpush.bf16.msra.mxu0 %v1507
  %1770 = vmatmul.bf16.gmra.mxu0 %v1112
  %v1771 = vpop.f32.mrf.mxu0
  %v1772 = vadd.f32 %v1218, %v1771
  %v1773 = vpop.f32.mrf.mxu0
  %v1774 = vadd.f32 %v1218, %v1773
  %1775 = vdwg.mxu0
  %1776 = vmatpush.bf16.msra.mxu0 0
  %1777 = vmatpush.bf16.msra.mxu0 0
  %1778 = vmatpush.bf16.msra.mxu0 0
  %1779 = vmatpush.bf16.msra.mxu0 %v1692
  %1780 = vmatpush.bf16.msra.mxu0 %v1584
  %1781 = vmatpush.bf16.msra.mxu0 %v1577
  %1782 = vmatpush.bf16.msra.mxu0 %v1570
  %1783 = vmatpush.bf16.msra.mxu0 %v1563
  %1784 = vmatmul.bf16.gmra.mxu0 %v1682
  %v1785 = vpop.f32.mrf.mxu0
  %v1786 = vadd.f32 %v1772, %v1785
  %v1787 = vpop.f32.mrf.mxu0
  %v1788 = vadd.f32 %v1774, %v1787
  %1789 = vdwg.mxu0
  %1790 = vmatpush.bf16.msra.mxu0 %v1557
  %1791 = vmatpush.bf16.msra.mxu0 %v1550
  %1792 = vmatpush.bf16.msra.mxu0 %v1543
  %1793 = vmatpush.bf16.msra.mxu0 %v1536
  %1794 = vmatpush.bf16.msra.mxu0 %v1529
  %1795 = vmatpush.bf16.msra.mxu0 %v1522
  %1796 = vmatpush.bf16.msra.mxu0 %v1515
  %1797 = vmatpush.bf16.msra.mxu0 %v1508
  %1798 = vmatmul.bf16.gmra.mxu0 %v1112
  %v1799 = vpop.f32.mrf.mxu0
  %v1800 = vadd.f32 %v1219, %v1799
  %v1801 = vpop.f32.mrf.mxu0
  %v1802 = vadd.f32 %v1219, %v1801
  %1803 = vdwg.mxu0
  %1804 = vmatpush.bf16.msra.mxu0 0
  %1805 = vmatpush.bf16.msra.mxu0 0
  %1806 = vmatpush.bf16.msra.mxu0 0
  %1807 = vmatpush.bf16.msra.mxu0 %v1695
  %1808 = vmatpush.bf16.msra.mxu0 %v1585
  %1809 = vmatpush.bf16.msra.mxu0 %v1578
  %1810 = vmatpush.bf16.msra.mxu0 %v1571
  %1811 = vmatpush.bf16.msra.mxu0 %v1564
  %1812 = vmatmul.bf16.gmra.mxu0 %v1682
  %v1813 = vpop.f32.mrf.mxu0
  %v1814 = vadd.f32 %v1800, %v1813
  %v1815 = vpop.f32.mrf.mxu0
  %v1816 = vadd.f32 %v1802, %v1815
  %1817 = vdwg.mxu0
  %1818 = vmatpush.bf16.msra.mxu0 %v1558
  %1819 = vmatpush.bf16.msra.mxu0 %v1551
  %1820 = vmatpush.bf16.msra.mxu0 %v1544
  %1821 = vmatpush.bf16.msra.mxu0 %v1537
  %1822 = vmatpush.bf16.msra.mxu0 %v1530
  %1823 = vmatpush.bf16.msra.mxu0 %v1523
  %1824 = vmatpush.bf16.msra.mxu0 %v1516
  %1825 = vmatpush.bf16.msra.mxu0 %v1509
  %1826 = vmatmul.bf16.gmra.mxu0 %v1112
  %v1827 = vpop.f32.mrf.mxu0
  %v1828 = vadd.f32 %v1220, %v1827
  %v1829 = vpop.f32.mrf.mxu0
  %v1830 = vadd.f32 %v1220, %v1829
  %1831 = vdwg.mxu0
  %1832 = vmatpush.bf16.msra.mxu0 0
  %1833 = vmatpush.bf16.msra.mxu0 0
  %1834 = vmatpush.bf16.msra.mxu0 0
  %1835 = vmatpush.bf16.msra.mxu0 %v1698
  %1836 = vmatpush.bf16.msra.mxu0 %v1586
  %1837 = vmatpush.bf16.msra.mxu0 %v1579
  %1838 = vmatpush.bf16.msra.mxu0 %v1572
  %1839 = vmatpush.bf16.msra.mxu0 %v1565
  %1840 = vmatmul.bf16.gmra.mxu0 %v1682
  %v1841 = vpop.f32.mrf.mxu0
  %v1842 = vadd.f32 %v1828, %v1841
  %v1843 = vpop.f32.mrf.mxu0
  %v1844 = vadd.f32 %v1830, %v1843
  %1845 = vdwg.mxu0
  %1846 = vmatpush.bf16.msra.mxu0 %v1559
  %1847 = vmatpush.bf16.msra.mxu0 %v1552
  %1848 = vmatpush.bf16.msra.mxu0 %v1545
  %1849 = vmatpush.bf16.msra.mxu0 %v1538
  %1850 = vmatpush.bf16.msra.mxu0 %v1531
  %1851 = vmatpush.bf16.msra.mxu0 %v1524
  %1852 = vmatpush.bf16.msra.mxu0 %v1517
  %1853 = vmatpush.bf16.msra.mxu0 %v1510
  %1854 = vmatmul.bf16.gmra.mxu0 %v1112
  %v1855 = vpop.f32.mrf.mxu0
  %v1856 = vadd.f32 %v1221, %v1855
  %v1857 = vpop.f32.mrf.mxu0
  %v1858 = vadd.f32 %v1221, %v1857
  %1859 = vdwg.mxu0
  %1860 = vmatpush.bf16.msra.mxu0 0
  %1861 = vmatpush.bf16.msra.mxu0 0
  %1862 = vmatpush.bf16.msra.mxu0 0
  %1863 = vmatpush.bf16.msra.mxu0 %v1701
  %1864 = vmatpush.bf16.msra.mxu0 %v1587
  %1865 = vmatpush.bf16.msra.mxu0 %v1580
  %1866 = vmatpush.bf16.msra.mxu0 %v1573
  %1867 = vmatpush.bf16.msra.mxu0 %v1566
  %1868 = vmatmul.bf16.gmra.mxu0 %v1682
  %v1869 = vpop.f32.mrf.mxu0
  %v1870 = vadd.f32 %v1856, %v1869
  %v1871 = vpop.f32.mrf.mxu0
  %v1872 = vadd.f32 %v1858, %v1871
  %1873 = vdwg.mxu0
  %1874 = vmatpush.bf16.msra.mxu0 %v1560
  %1875 = vmatpush.bf16.msra.mxu0 %v1553
  %1876 = vmatpush.bf16.msra.mxu0 %v1546
  %1877 = vmatpush.bf16.msra.mxu0 %v1539
  %1878 = vmatpush.bf16.msra.mxu0 %v1532
  %1879 = vmatpush.bf16.msra.mxu0 %v1525
  %1880 = vmatpush.bf16.msra.mxu0 %v1518
  %1881 = vmatpush.bf16.msra.mxu0 %v1511
  %1882 = vmatmul.bf16.gmra.mxu0 %v1112
  %v1883 = vpop.f32.mrf.mxu0
  %v1884 = vadd.f32 %v1222, %v1883
  %v1885 = vpop.f32.mrf.mxu0
  %v1886 = vadd.f32 %v1222, %v1885
  %1887 = vdwg.mxu0
  %1888 = vmatpush.bf16.msra.mxu0 0
  %1889 = vmatpush.bf16.msra.mxu0 0
  %1890 = vmatpush.bf16.msra.mxu0 0
  %1891 = vmatpush.bf16.msra.mxu0 %v1704
  %1892 = vmatpush.bf16.msra.mxu0 %v1588
  %1893 = vmatpush.bf16.msra.mxu0 %v1581
  %1894 = vmatpush.bf16.msra.mxu0 %v1574
  %1895 = vmatpush.bf16.msra.mxu0 %v1567
  %1896 = vmatmul.bf16.gmra.mxu0 %v1682
  %v1897 = vpop.f32.mrf.mxu0
  %v1898 = vadd.f32 %v1884, %v1897
  %v1899 = vpop.f32.mrf.mxu0
  %v1900 = vadd.f32 %v1886, %v1899
  %1901 = vdwg.mxu0
  %v1902 = vpack.c.bf16 %v1758, %v1730
  %v1903 = vpack.c.bf16 %v1814, %v1786
  %v1904 = vpack.c.bf16 %v1870, %v1842
  %v1905 = vpack.c.bf16 %v1898, %v1898
  %v1906 = vpack.c.bf16 %v1760, %v1732
  %v1907 = vpack.c.bf16 %v1816, %v1788
  %v1908 = vpack.c.bf16 %v1872, %v1844
  %v1909 = vpack.c.bf16 %v1900, %v1900
  %1910 = vst [vmem:[%s19] sm:$0xff] %v1902
  %1911 = vst [vmem:[%s19 + $0x8] sm:$0xff] %v1903
  %1912 = vst [vmem:[%s19 + $0x10] sm:$0xff] %v1904
  %1913 = vst [vmem:[%s19 + $0x18] sm:$0xf] %v1905
  %1914 = vst [vmem:[%s19 + $0x1c] sm:$0xff] %v1906
  %1915 = vst [vmem:[%s19 + $0x24] sm:$0xff] %v1907
  %1916 = vst [vmem:[%s19 + $0x2c] sm:$0xff] %v1908
  %1917 = vst [vmem:[%s19 + $0x34] sm:$0xf] %v1909
  // Predicated region
  $region78: #{vae2_forward.3} parent=0 // pred_check
    _
  $region79: #{vae2_forward.3} parent=0 // pred_check_branch
    %1919 = sbr.rel (0) target = $region81
  $region80: #{vae2_forward.3} parent=0 // pred_region
    _
  $region81: #{vae2_forward.3} parent=0 // pred_fallthru
    _
  // Predicated region
  $region82: #{vae2_forward.3} parent=0 // pred_check
    _
  $region83: #{vae2_forward.3} parent=0 // pred_check_branch
    %1921 = sbr.rel (0) target = $region85
  $region84: #{vae2_forward.3} parent=0 // pred_region
    _
  $region85: #{vae2_forward.3} parent=0 // pred_fallthru
    _
  // Predicated region
  $region86: #{vae2_forward.3} parent=0 // pred_check
    _
  $region87: #{vae2_forward.3} parent=0 // pred_check_branch
    %1923 = sbr.rel (0) target = $region89
  $region88: #{vae2_forward.3} parent=0 // pred_region
    _
  $region89: #{vae2_forward.3} parent=0 // pred_fallthru
    _
  // Predicated region
  $region90: #{vae2_forward.3} parent=0 // pred_check
    _
  $region91: #{vae2_forward.3} parent=0 // pred_check_branch
    %1925 = sbr.rel (0) target = $region93
  $region92: #{vae2_forward.3} parent=0 // pred_region
    _
  $region93: #{vae2_forward.3} parent=0 // pred_fallthru
    _
  // Predicated region
  $region94: #{vae2_forward.3} parent=0 // pred_check
    _
  $region95: #{vae2_forward.3} parent=0 // pred_check_branch
    %1927 = sbr.rel (0) target = $region97
  $region96: #{vae2_forward.3} parent=0 // pred_region
    _
  $region97: #{vae2_forward.3} parent=0 // pred_fallthru
    _
  // Predicated region
  $region98: #{vae2_forward.3} parent=0 // pred_check
    _
  $region99: #{vae2_forward.3} parent=0 // pred_check_branch
    %1929 = sbr.rel (0) target = $region101
  $region100: #{vae2_forward.3} parent=0 // pred_region
    _
  $region101: #{vae2_forward.3} parent=0 // pred_fallthru
    _

</llo_original>
